<compile_context>
chip_gen: v5e
topology: v5e:2x2
jax: 0.10.0
libtpu: 0.0.40
codegen_flags: <defaults>
</compile_context>

<pallas_src>
import functools

import jax
import jax.numpy as jnp
from jax.experimental import pallas as pl
from jax.experimental.pallas import tpu as pltpu


def _stable_sigmoid(v):
    # sigmoid with exp(-|v|) in (0, 1]: no inf intermediates, exact in f32.
    z = jnp.exp(-jnp.abs(v))
    s = 1.0 / (1.0 + z)
    return jnp.where(v >= 0, s, 1.0 - s)


def _cbam_kernel(x_ref, w1t_ref, w2_ref, mask_ref, wsp_ref, bsp_ref,
                 o_ref, buf_ref, *, H, W, PAD):
    HW = H * W
    x = x_ref[...]                                    # (C, HW) f32

    # ---------------- ChannelGate_Plus ----------------
    avg_p = jnp.mean(x, axis=1, keepdims=True)        # (C, 1) global avg pool
    max_p = jnp.max(x, axis=1, keepdims=True)         # (C, 1) global max pool

    w1t = w1t_ref[...]                                # (C, R) == torch w1.T
    # Shared bias-free MLP; second Linear applied once to the summed branches
    # (mlp(avg) + mlp(max) == (relu(.) + relu(.)) @ W2.T).
    h = (jnp.maximum(jnp.sum(w1t * avg_p, axis=0, keepdims=True), 0.0) +
         jnp.maximum(jnp.sum(w1t * max_p, axis=0, keepdims=True), 0.0))   # (1, R)
    att = jnp.sum(w2_ref[...] * h, axis=1, keepdims=True)                 # (C, 1)
    ch_scale = _stable_sigmoid(att)                                       # (C, 1)

    # ---------------- SpatialGate_Plus ----------------
    # Channel-compress the gated activations; the (C, HW) gated temp is only
    # live for these two reductions (final store recomputes the gating).
    xg = x * ch_scale
    avg_c = jnp.mean(xg, axis=0, keepdims=True)       # (1, HW) mean over C
    max_c = jnp.max(xg, axis=0, keepdims=True)        # (1, HW) max  over C

    # Flat zero-padded buffer: clear only the two PAD edge regions (the center
    # is fully overwritten each step).  PAD is a multiple of 128 so the center
    # write below is a lane-aligned unmasked store.
    buf_ref[:, 0:PAD] = jnp.zeros((2, PAD), jnp.float32)
    buf_ref[:, PAD + HW:2 * PAD + HW] = jnp.zeros((2, PAD), jnp.float32)
    buf_ref[:, PAD:PAD + HW] = jnp.concatenate([avg_c, max_c], axis=0)

    # 7x7 "same" conv over the 2 compressed maps, fully unrolled.  Each tap
    # reads both rows as one (2, HW) window; the per-dx column mask (kills the
    # row wrap-around) is applied once per dx; out-of-image rows hit zero pad.
    sel_avg = jax.lax.broadcasted_iota(jnp.int32, (2, 1), 0) == 0
    conv2 = jnp.zeros((2, HW), jnp.float32)
    for dx in range(-3, 4):
        maskf = mask_ref[dx + 3:dx + 4, :]            # (1, HW) column-valid mask
        part = jnp.zeros((2, HW), jnp.float32)
        for dy in range(-3, 4):
            off = PAD + dy * W + dx
            k = (dy + 3) * 7 + (dx + 3)
            # interleaved SMEM taps: [2k] = avg-channel, [2k+1] = max-channel
            wpair = jnp.where(sel_avg, wsp_ref[2 * k], wsp_ref[2 * k + 1])  # (2,1)
            part = part + wpair * buf_ref[:, off:off + HW]                  # (2,HW)
        conv2 = conv2 + maskf * part
    conv = conv2[0:1, :] + conv2[1:2, :]              # (1, HW) sum both channels
    sp_scale = _stable_sigmoid(conv + bsp_ref[0])     # (1, HW)  (BN folded)

    o_ref[...] = ((x * sp_scale) * ch_scale).astype(o_ref.dtype)


def cbam_plus_forward(x, w1, w2, w_spatial, bn_gamma, bn_beta, bn_mean, bn_var,
                      bn_eps=1e-5):
    """CBAM_Plus forward (share_weights=False, no_spatial=False). NCHW in/out.

    w1: (R, C)   first Linear of the channel MLP (torch weight layout)
    w2: (C, R)   second Linear of the channel MLP
    w_spatial: (1, 2, 7, 7) spatial-gate conv weight
    bn_*: BatchNorm2d(1) parameters (eval-mode running stats, folded).
    """
    B, C, H, W = x.shape
    HW = H * W
    R = w1.shape[0]
    # zero-pad width: >= 3*W + 3 so every shifted window stays in the buffer,
    # rounded up to a lane multiple so the center store is aligned/unmasked.
    PAD = ((3 * W + 3 + 127) // 128) * 128

    x_flat = x.reshape(B, C, HW)                      # free reshape, no transpose

    # Fold eval-mode BatchNorm into the conv taps / bias; interleave the taps
    # as [avg_tap, max_tap] pairs per (ky, kx) for single-pair SMEM fetches.
    bn_s = bn_gamma / jnp.sqrt(bn_var + bn_eps)
    w_sp = (w_spatial.reshape(2, 49) * bn_s).astype(jnp.float32)        # (2, 49)
    w_sp_pairs = jnp.transpose(w_sp).reshape(-1)                        # (98,)
    b_sp_eff = jnp.reshape(bn_beta - bn_mean * bn_s, (1,)).astype(jnp.float32)

    # Per-dx column-validity masks for the flattened 7x7 conv (kill row wrap).
    wcoord = jnp.arange(HW, dtype=jnp.int32) % W
    dxs = jnp.arange(-3, 4, dtype=jnp.int32)[:, None]
    col_mask = ((wcoord[None, :] + dxs >= 0) &
                (wcoord[None, :] + dxs < W)).astype(jnp.float32)        # (7, HW)

    kernel = functools.partial(_cbam_kernel, H=H, W=W, PAD=PAD)

    flops = B * (8 * C * HW + 8 * C * R + 4 * 49 * HW)
    out = pl.pallas_call(
        kernel,
        out_shape=jax.ShapeDtypeStruct((B, C, HW), x.dtype),
        grid=(B,),
        in_specs=[
            pl.BlockSpec((None, C, HW), lambda b: (b, 0, 0)),     # x: one batch item
            pl.BlockSpec((C, R), lambda b: (0, 0)),               # w1.T (VMEM resident)
            pl.BlockSpec((C, R), lambda b: (0, 0)),               # w2   (VMEM resident)
            pl.BlockSpec((7, HW), lambda b: (0, 0)),              # column masks
            pl.BlockSpec(memory_space=pltpu.MemorySpace.SMEM),    # paired conv taps
            pl.BlockSpec(memory_space=pltpu.MemorySpace.SMEM),    # folded conv bias
        ],
        out_specs=pl.BlockSpec((None, C, HW), lambda b: (b, 0, 0)),
        scratch_shapes=[pltpu.VMEM((2, HW + 2 * PAD), jnp.float32)],
        compiler_params=pltpu.CompilerParams(
            dimension_semantics=("parallel",)),
        cost_estimate=pl.CostEstimate(
            flops=flops,
            transcendentals=B * (C + HW),
            bytes_accessed=(2 * B * C * HW + 2 * C * R + 7 * HW + 99) * 4),
    )(x_flat, jnp.transpose(w1), w2, col_mask, w_sp_pairs, b_sp_eff)

    return out.reshape(B, C, H, W)


def cbam_plus_reference(x, w1, w2, w_spatial, bn_gamma, bn_beta, bn_mean, bn_var,
                        bn_eps=1e-5):
    """Pure-JAX reference with identical semantics to the PyTorch forward."""
    avg = jnp.mean(x, axis=(2, 3))                    # (B, C)
    mx = jnp.max(x, axis=(2, 3))                      # (B, C)

    def mlp(v):
        return jnp.maximum(v @ w1.T, 0.0) @ w2.T

    ch_scale = jax.nn.sigmoid(mlp(avg) + mlp(mx))[:, :, None, None]
    x1 = x * ch_scale

    comp = jnp.concatenate([jnp.mean(x1, axis=1, keepdims=True),
                            jnp.max(x1, axis=1, keepdims=True)], axis=1)
    conv = jax.lax.conv_general_dilated(
        comp, w_spatial, window_strides=(1, 1), padding=((3, 3), (3, 3)),
        dimension_numbers=("NCHW", "OIHW", "NCHW"))
    bn = bn_gamma * (conv - bn_mean) / jnp.sqrt(bn_var + bn_eps) + bn_beta
    return x1 * jax.nn.sigmoid(bn)


if __name__ == "__main__":
    key = jax.random.PRNGKey(0)
    kx, k1, k2, k3 = jax.random.split(key, 4)

    B, C, H, W = 2, 64, 16, 16          # gate_channels=64 -> reduced = max(64//32, 4) = 4
    reduction_ratio = 32
    R = max(C // reduction_ratio, 4)

    x = jax.random.normal(kx, (B, C, H, W), jnp.float32)
    w1 = jax.random.normal(k1, (R, C), jnp.float32) * (1.0 / jnp.sqrt(C))
    w2 = jax.random.normal(k2, (C, R), jnp.float32) * (1.0 / jnp.sqrt(R))
    w_spatial = jax.random.normal(k3, (1, 2, 7, 7), jnp.float32) * 0.1
    bn_gamma = jnp.float32(0.9)
    bn_beta = jnp.float32(0.1)
    bn_mean = jnp.float32(0.05)
    bn_var = jnp.float32(0.8)

    out = jax.jit(cbam_plus_forward)(x, w1, w2, w_spatial,
                                     bn_gamma, bn_beta, bn_mean, bn_var)
    jax.block_until_ready(out)

    ref = cbam_plus_reference(x, w1, w2, w_spatial,
                              bn_gamma, bn_beta, bn_mean, bn_var)

    assert out.shape == (B, C, H, W)
    err = float(jnp.max(jnp.abs(out - ref)))
    assert jnp.allclose(out, ref, atol=1e-4, rtol=1e-4), "max abs err = %g" % err

    print("KERNEL_OK")
</pallas_src>

<mosaic_0001>
module attributes {stable_mosaic.version = 11 : i64} {
  func.func @_cbam_kernel(%arg0: i32, %arg1: memref<1x64x256xf32, #tpu.memory_space<vmem>>, %arg2: memref<64x4xf32, #tpu.memory_space<vmem>>, %arg3: memref<64x4xf32, #tpu.memory_space<vmem>>, %arg4: memref<7x256xf32, #tpu.memory_space<vmem>>, %arg5: memref<98xf32, #tpu.memory_space<smem>>, %arg6: memref<1xf32, #tpu.memory_space<smem>>, %arg7: memref<1x64x256xf32, #tpu.memory_space<vmem>>, %arg8: memref<2x512xf32, #tpu.memory_space<vmem>>) attributes {dimension_semantics = [#tpu.dimension_semantics<parallel>], iteration_bounds = array<i64: 2>, scalar_prefetch = 0 : i64, scratch_operands = 1 : i64, tpu.core_type = #tpu.core_type<tc>, window_params = [{transform_indices = @transform_0, window_bounds = array<i64: 1, 64, 256>}, {pipeline_mode = #tpu.pipeline_mode<synchronous>, transform_indices = @transform_1, window_bounds = array<i64: 64, 4>}, {pipeline_mode = #tpu.pipeline_mode<synchronous>, transform_indices = @transform_2, window_bounds = array<i64: 64, 4>}, {pipeline_mode = #tpu.pipeline_mode<synchronous>, transform_indices = @transform_3, window_bounds = array<i64: 7, 256>}, {transform_indices = @transform_4, window_bounds = array<i64: 98>}, {transform_indices = @transform_5, window_bounds = array<i64: 1>}, {transform_indices = @transform_6, window_bounds = array<i64: 1, 64, 256>}]} {
    %c0 = arith.constant 0 : index
    %c0_0 = arith.constant 0 : index
    %c0_1 = arith.constant 0 : index
    %0 = vector.load %arg1[%c0, %c0_0, %c0_1] : memref<1x64x256xf32, #tpu.memory_space<vmem>>, vector<1x64x256xf32>
    %1 = vector.shape_cast %0 : vector<1x64x256xf32> to vector<64x256xf32>
    %cst = arith.constant dense<0.000000e+00> : vector<64xf32>
    %2 = vector.multi_reduction <add>, %1, %cst [1] : vector<64x256xf32> to vector<64xf32>
    %3 = vector.shape_cast %2 : vector<64xf32> to vector<64x1xf32>
    %cst_2 = arith.constant 2.560000e+02 : f32
    %4 = vector.broadcast %cst_2 : f32 to vector<64x1xf32>
    %5 = arith.divf %3, %4 : vector<64x1xf32>
    %cst_3 = arith.constant dense<0xFF800000> : vector<64xf32>
    %6 = vector.multi_reduction <maximumf>, %1, %cst_3 [1] : vector<64x256xf32> to vector<64xf32>
    %7 = vector.shape_cast %6 : vector<64xf32> to vector<64x1xf32>
    %c0_4 = arith.constant 0 : index
    %c0_5 = arith.constant 0 : index
    %8 = vector.load %arg2[%c0_4, %c0_5] : memref<64x4xf32, #tpu.memory_space<vmem>>, vector<64x4xf32>
    %9 = vector.broadcast %5 : vector<64x1xf32> to vector<64x4xf32>
    %10 = arith.mulf %8, %9 : vector<64x4xf32>
    %cst_6 = arith.constant dense<0.000000e+00> : vector<4xf32>
    %11 = vector.multi_reduction <add>, %10, %cst_6 [0] : vector<64x4xf32> to vector<4xf32>
    %12 = vector.shape_cast %11 : vector<4xf32> to vector<1x4xf32>
    %cst_7 = arith.constant 0.000000e+00 : f32
    %13 = vector.broadcast %cst_7 : f32 to vector<1x4xf32>
    %14 = arith.maximumf %12, %13 : vector<1x4xf32>
    %15 = vector.broadcast %7 : vector<64x1xf32> to vector<64x4xf32>
    %16 = arith.mulf %8, %15 : vector<64x4xf32>
    %cst_8 = arith.constant dense<0.000000e+00> : vector<4xf32>
    %17 = vector.multi_reduction <add>, %16, %cst_8 [0] : vector<64x4xf32> to vector<4xf32>
    %18 = vector.shape_cast %17 : vector<4xf32> to vector<1x4xf32>
    %cst_9 = arith.constant 0.000000e+00 : f32
    %19 = vector.broadcast %cst_9 : f32 to vector<1x4xf32>
    %20 = arith.maximumf %18, %19 : vector<1x4xf32>
    %21 = arith.addf %14, %20 : vector<1x4xf32>
    %c0_10 = arith.constant 0 : index
    %c0_11 = arith.constant 0 : index
    %22 = vector.load %arg3[%c0_10, %c0_11] : memref<64x4xf32, #tpu.memory_space<vmem>>, vector<64x4xf32>
    %23 = vector.broadcast %21 : vector<1x4xf32> to vector<64x4xf32>
    %24 = arith.mulf %22, %23 : vector<64x4xf32>
    %cst_12 = arith.constant dense<0.000000e+00> : vector<64xf32>
    %25 = vector.multi_reduction <add>, %24, %cst_12 [1] : vector<64x4xf32> to vector<64xf32>
    %26 = vector.shape_cast %25 : vector<64xf32> to vector<64x1xf32>
    %27 = math.absf %26 : vector<64x1xf32>
    %cst_13 = arith.constant 0.000000e+00 : f32
    %28 = vector.broadcast %cst_13 : f32 to vector<64x1xf32>
    %29 = arith.subf %28, %27 : vector<64x1xf32>
    %30 = math.exp %29 : vector<64x1xf32>
    %cst_14 = arith.constant 1.000000e+00 : f32
    %31 = vector.broadcast %cst_14 : f32 to vector<64x1xf32>
    %32 = arith.addf %31, %30 : vector<64x1xf32>
    %cst_15 = arith.constant 1.000000e+00 : f32
    %33 = vector.broadcast %cst_15 : f32 to vector<64x1xf32>
    %34 = arith.divf %33, %32 : vector<64x1xf32>
    %cst_16 = arith.constant 0.000000e+00 : f32
    %35 = vector.broadcast %cst_16 : f32 to vector<64x1xf32>
    %36 = arith.cmpf oge, %26, %35 : vector<64x1xf32>
    %cst_17 = arith.constant 1.000000e+00 : f32
    %37 = vector.broadcast %cst_17 : f32 to vector<64x1xf32>
    %38 = arith.subf %37, %34 : vector<64x1xf32>
    %39 = arith.select %36, %34, %38 : vector<64x1xi1>, vector<64x1xf32>
    %40 = vector.broadcast %39 : vector<64x1xf32> to vector<64x256xf32>
    %41 = arith.mulf %1, %40 : vector<64x256xf32>
    %cst_18 = arith.constant dense<0.000000e+00> : vector<256xf32>
    %42 = vector.multi_reduction <add>, %41, %cst_18 [0] : vector<64x256xf32> to vector<256xf32>
    %43 = vector.shape_cast %42 : vector<256xf32> to vector<1x256xf32>
    %cst_19 = arith.constant 6.400000e+01 : f32
    %44 = vector.broadcast %cst_19 : f32 to vector<1x256xf32>
    %45 = arith.divf %43, %44 : vector<1x256xf32>
    %cst_20 = arith.constant dense<0xFF800000> : vector<256xf32>
    %46 = vector.multi_reduction <maximumf>, %41, %cst_20 [0] : vector<64x256xf32> to vector<256xf32>
    %47 = vector.shape_cast %46 : vector<256xf32> to vector<1x256xf32>
    %cst_21 = arith.constant 0.000000e+00 : f32
    %48 = vector.broadcast %cst_21 : f32 to vector<2x128xf32>
    %c0_22 = arith.constant 0 : index
    %c0_23 = arith.constant 0 : index
    %49 = vector.load %arg8[%c0_22, %c0_23] : memref<2x512xf32, #tpu.memory_space<vmem>>, vector<2x128xf32>
    tpu.vector_store %arg8[%c0_22, %c0_23], %48 {strides = array<i32>} : memref<2x512xf32, #tpu.memory_space<vmem>>, vector<2x128xf32>,
    %cst_24 = arith.constant 0.000000e+00 : f32
    %50 = vector.broadcast %cst_24 : f32 to vector<2x128xf32>
    %c0_25 = arith.constant 0 : index
    %c384 = arith.constant 384 : index
    %51 = vector.load %arg8[%c0_25, %c384] : memref<2x512xf32, #tpu.memory_space<vmem>>, vector<2x128xf32>
    tpu.vector_store %arg8[%c0_25, %c384], %50 {strides = array<i32>} : memref<2x512xf32, #tpu.memory_space<vmem>>, vector<2x128xf32>,
    %52 = tpu.concatenate %45, %47 in 0 : vector<1x256xf32>, vector<1x256xf32> -> vector<2x256xf32>
    %c0_26 = arith.constant 0 : index
    %c128 = arith.constant 128 : index
    %53 = vector.load %arg8[%c0_26, %c128] : memref<2x512xf32, #tpu.memory_space<vmem>>, vector<2x256xf32>
    tpu.vector_store %arg8[%c0_26, %c128], %52 {strides = array<i32>} : memref<2x512xf32, #tpu.memory_space<vmem>>, vector<2x256xf32>,
    %54 = tpu.iota {dimensions = array<i32: 0>} : vector<2x1xi32>
    %c0_i32 = arith.constant 0 : i32
    %55 = vector.broadcast %c0_i32 : i32 to vector<2x1xi32>
    %56 = arith.cmpi eq, %54, %55 : vector<2x1xi32>
    %cst_27 = arith.constant 0.000000e+00 : f32
    %57 = vector.broadcast %cst_27 : f32 to vector<2x256xf32>
    %c0_28 = arith.constant 0 : index
    %c0_29 = arith.constant 0 : index
    %58 = vector.load %arg4[%c0_28, %c0_29] : memref<7x256xf32, #tpu.memory_space<vmem>>, vector<1x256xf32>
    %cst_30 = arith.constant 0.000000e+00 : f32
    %59 = vector.broadcast %cst_30 : f32 to vector<2x256xf32>
    %c0_31 = arith.constant 0 : index
    %60 = memref.load %arg5[%c0_31] : memref<98xf32, #tpu.memory_space<smem>>
    %c1 = arith.constant 1 : index
    %61 = memref.load %arg5[%c1] : memref<98xf32, #tpu.memory_space<smem>>
    %62 = vector.broadcast %60 : f32 to vector<2x1xf32>
    %63 = vector.broadcast %61 : f32 to vector<2x1xf32>
    %64 = arith.select %56, %62, %63 : vector<2x1xi1>, vector<2x1xf32>
    %c0_32 = arith.constant 0 : index
    %c77 = arith.constant 77 : index
    %65 = vector.load %arg8[%c0_32, %c77] : memref<2x512xf32, #tpu.memory_space<vmem>>, vector<2x256xf32>
    %66 = vector.broadcast %64 : vector<2x1xf32> to vector<2x256xf32>
    %67 = arith.mulf %66, %65 : vector<2x256xf32>
    %68 = arith.addf %59, %67 : vector<2x256xf32>
    %c14 = arith.constant 14 : index
    %69 = memref.load %arg5[%c14] : memref<98xf32, #tpu.memory_space<smem>>
    %c15 = arith.constant 15 : index
    %70 = memref.load %arg5[%c15] : memref<98xf32, #tpu.memory_space<smem>>
    %71 = vector.broadcast %69 : f32 to vector<2x1xf32>
    %72 = vector.broadcast %70 : f32 to vector<2x1xf32>
    %73 = arith.select %56, %71, %72 : vector<2x1xi1>, vector<2x1xf32>
    %c0_33 = arith.constant 0 : index
    %c93 = arith.constant 93 : index
    %74 = vector.load %arg8[%c0_33, %c93] : memref<2x512xf32, #tpu.memory_space<vmem>>, vector<2x256xf32>
    %75 = vector.broadcast %73 : vector<2x1xf32> to vector<2x256xf32>
    %76 = arith.mulf %75, %74 : vector<2x256xf32>
    %77 = arith.addf %68, %76 : vector<2x256xf32>
    %c28 = arith.constant 28 : index
    %78 = memref.load %arg5[%c28] : memref<98xf32, #tpu.memory_space<smem>>
    %c29 = arith.constant 29 : index
    %79 = memref.load %arg5[%c29] : memref<98xf32, #tpu.memory_space<smem>>
    %80 = vector.broadcast %78 : f32 to vector<2x1xf32>
    %81 = vector.broadcast %79 : f32 to vector<2x1xf32>
    %82 = arith.select %56, %80, %81 : vector<2x1xi1>, vector<2x1xf32>
    %c0_34 = arith.constant 0 : index
    %c109 = arith.constant 109 : index
    %83 = vector.load %arg8[%c0_34, %c109] : memref<2x512xf32, #tpu.memory_space<vmem>>, vector<2x256xf32>
    %84 = vector.broadcast %82 : vector<2x1xf32> to vector<2x256xf32>
    %85 = arith.mulf %84, %83 : vector<2x256xf32>
    %86 = arith.addf %77, %85 : vector<2x256xf32>
    %c42 = arith.constant 42 : index
    %87 = memref.load %arg5[%c42] : memref<98xf32, #tpu.memory_space<smem>>
    %c43 = arith.constant 43 : index
    %88 = memref.load %arg5[%c43] : memref<98xf32, #tpu.memory_space<smem>>
    %89 = vector.broadcast %87 : f32 to vector<2x1xf32>
    %90 = vector.broadcast %88 : f32 to vector<2x1xf32>
    %91 = arith.select %56, %89, %90 : vector<2x1xi1>, vector<2x1xf32>
    %c0_35 = arith.constant 0 : index
    %c125 = arith.constant 125 : index
    %92 = vector.load %arg8[%c0_35, %c125] : memref<2x512xf32, #tpu.memory_space<vmem>>, vector<2x256xf32>
    %93 = vector.broadcast %91 : vector<2x1xf32> to vector<2x256xf32>
    %94 = arith.mulf %93, %92 : vector<2x256xf32>
    %95 = arith.addf %86, %94 : vector<2x256xf32>
    %c56 = arith.constant 56 : index
    %96 = memref.load %arg5[%c56] : memref<98xf32, #tpu.memory_space<smem>>
    %c57 = arith.constant 57 : index
    %97 = memref.load %arg5[%c57] : memref<98xf32, #tpu.memory_space<smem>>
    %98 = vector.broadcast %96 : f32 to vector<2x1xf32>
    %99 = vector.broadcast %97 : f32 to vector<2x1xf32>
    %100 = arith.select %56, %98, %99 : vector<2x1xi1>, vector<2x1xf32>
    %c0_36 = arith.constant 0 : index
    %c141 = arith.constant 141 : index
    %101 = vector.load %arg8[%c0_36, %c141] : memref<2x512xf32, #tpu.memory_space<vmem>>, vector<2x256xf32>
    %102 = vector.broadcast %100 : vector<2x1xf32> to vector<2x256xf32>
    %103 = arith.mulf %102, %101 : vector<2x256xf32>
    %104 = arith.addf %95, %103 : vector<2x256xf32>
    %c70 = arith.constant 70 : index
    %105 = memref.load %arg5[%c70] : memref<98xf32, #tpu.memory_space<smem>>
    %c71 = arith.constant 71 : index
    %106 = memref.load %arg5[%c71] : memref<98xf32, #tpu.memory_space<smem>>
    %107 = vector.broadcast %105 : f32 to vector<2x1xf32>
    %108 = vector.broadcast %106 : f32 to vector<2x1xf32>
    %109 = arith.select %56, %107, %108 : vector<2x1xi1>, vector<2x1xf32>
    %c0_37 = arith.constant 0 : index
    %c157 = arith.constant 157 : index
    %110 = vector.load %arg8[%c0_37, %c157] : memref<2x512xf32, #tpu.memory_space<vmem>>, vector<2x256xf32>
    %111 = vector.broadcast %109 : vector<2x1xf32> to vector<2x256xf32>
    %112 = arith.mulf %111, %110 : vector<2x256xf32>
    %113 = arith.addf %104, %112 : vector<2x256xf32>
    %c84 = arith.constant 84 : index
    %114 = memref.load %arg5[%c84] : memref<98xf32, #tpu.memory_space<smem>>
    %c85 = arith.constant 85 : index
    %115 = memref.load %arg5[%c85] : memref<98xf32, #tpu.memory_space<smem>>
    %116 = vector.broadcast %114 : f32 to vector<2x1xf32>
    %117 = vector.broadcast %115 : f32 to vector<2x1xf32>
    %118 = arith.select %56, %116, %117 : vector<2x1xi1>, vector<2x1xf32>
    %c0_38 = arith.constant 0 : index
    %c173 = arith.constant 173 : index
    %119 = vector.load %arg8[%c0_38, %c173] : memref<2x512xf32, #tpu.memory_space<vmem>>, vector<2x256xf32>
    %120 = vector.broadcast %118 : vector<2x1xf32> to vector<2x256xf32>
    %121 = arith.mulf %120, %119 : vector<2x256xf32>
    %122 = arith.addf %113, %121 : vector<2x256xf32>
    %123 = vector.broadcast %58 : vector<1x256xf32> to vector<2x256xf32>
    %124 = arith.mulf %123, %122 : vector<2x256xf32>
    %125 = arith.addf %57, %124 : vector<2x256xf32>
    %c1_39 = arith.constant 1 : index
    %c0_40 = arith.constant 0 : index
    %126 = vector.load %arg4[%c1_39, %c0_40] : memref<7x256xf32, #tpu.memory_space<vmem>>, vector<1x256xf32>
    %cst_41 = arith.constant 0.000000e+00 : f32
    %127 = vector.broadcast %cst_41 : f32 to vector<2x256xf32>
    %c2 = arith.constant 2 : index
    %128 = memref.load %arg5[%c2] : memref<98xf32, #tpu.memory_space<smem>>
    %c3 = arith.constant 3 : index
    %129 = memref.load %arg5[%c3] : memref<98xf32, #tpu.memory_space<smem>>
    %130 = vector.broadcast %128 : f32 to vector<2x1xf32>
    %131 = vector.broadcast %129 : f32 to vector<2x1xf32>
    %132 = arith.select %56, %130, %131 : vector<2x1xi1>, vector<2x1xf32>
    %c0_42 = arith.constant 0 : index
    %c78 = arith.constant 78 : index
    %133 = vector.load %arg8[%c0_42, %c78] : memref<2x512xf32, #tpu.memory_space<vmem>>, vector<2x256xf32>
    %134 = vector.broadcast %132 : vector<2x1xf32> to vector<2x256xf32>
    %135 = arith.mulf %134, %133 : vector<2x256xf32>
    %136 = arith.addf %127, %135 : vector<2x256xf32>
    %c16 = arith.constant 16 : index
    %137 = memref.load %arg5[%c16] : memref<98xf32, #tpu.memory_space<smem>>
    %c17 = arith.constant 17 : index
    %138 = memref.load %arg5[%c17] : memref<98xf32, #tpu.memory_space<smem>>
    %139 = vector.broadcast %137 : f32 to vector<2x1xf32>
    %140 = vector.broadcast %138 : f32 to vector<2x1xf32>
    %141 = arith.select %56, %139, %140 : vector<2x1xi1>, vector<2x1xf32>
    %c0_43 = arith.constant 0 : index
    %c94 = arith.constant 94 : index
    %142 = vector.load %arg8[%c0_43, %c94] : memref<2x512xf32, #tpu.memory_space<vmem>>, vector<2x256xf32>
    %143 = vector.broadcast %141 : vector<2x1xf32> to vector<2x256xf32>
    %144 = arith.mulf %143, %142 : vector<2x256xf32>
    %145 = arith.addf %136, %144 : vector<2x256xf32>
    %c30 = arith.constant 30 : index
    %146 = memref.load %arg5[%c30] : memref<98xf32, #tpu.memory_space<smem>>
    %c31 = arith.constant 31 : index
    %147 = memref.load %arg5[%c31] : memref<98xf32, #tpu.memory_space<smem>>
    %148 = vector.broadcast %146 : f32 to vector<2x1xf32>
    %149 = vector.broadcast %147 : f32 to vector<2x1xf32>
    %150 = arith.select %56, %148, %149 : vector<2x1xi1>, vector<2x1xf32>
    %c0_44 = arith.constant 0 : index
    %c110 = arith.constant 110 : index
    %151 = vector.load %arg8[%c0_44, %c110] : memref<2x512xf32, #tpu.memory_space<vmem>>, vector<2x256xf32>
    %152 = vector.broadcast %150 : vector<2x1xf32> to vector<2x256xf32>
    %153 = arith.mulf %152, %151 : vector<2x256xf32>
    %154 = arith.addf %145, %153 : vector<2x256xf32>
    %c44 = arith.constant 44 : index
    %155 = memref.load %arg5[%c44] : memref<98xf32, #tpu.memory_space<smem>>
    %c45 = arith.constant 45 : index
    %156 = memref.load %arg5[%c45] : memref<98xf32, #tpu.memory_space<smem>>
    %157 = vector.broadcast %155 : f32 to vector<2x1xf32>
    %158 = vector.broadcast %156 : f32 to vector<2x1xf32>
    %159 = arith.select %56, %157, %158 : vector<2x1xi1>, vector<2x1xf32>
    %c0_45 = arith.constant 0 : index
    %c126 = arith.constant 126 : index
    %160 = vector.load %arg8[%c0_45, %c126] : memref<2x512xf32, #tpu.memory_space<vmem>>, vector<2x256xf32>
    %161 = vector.broadcast %159 : vector<2x1xf32> to vector<2x256xf32>
    %162 = arith.mulf %161, %160 : vector<2x256xf32>
    %163 = arith.addf %154, %162 : vector<2x256xf32>
    %c58 = arith.constant 58 : index
    %164 = memref.load %arg5[%c58] : memref<98xf32, #tpu.memory_space<smem>>
    %c59 = arith.constant 59 : index
    %165 = memref.load %arg5[%c59] : memref<98xf32, #tpu.memory_space<smem>>
    %166 = vector.broadcast %164 : f32 to vector<2x1xf32>
    %167 = vector.broadcast %165 : f32 to vector<2x1xf32>
    %168 = arith.select %56, %166, %167 : vector<2x1xi1>, vector<2x1xf32>
    %c0_46 = arith.constant 0 : index
    %c142 = arith.constant 142 : index
    %169 = vector.load %arg8[%c0_46, %c142] : memref<2x512xf32, #tpu.memory_space<vmem>>, vector<2x256xf32>
    %170 = vector.broadcast %168 : vector<2x1xf32> to vector<2x256xf32>
    %171 = arith.mulf %170, %169 : vector<2x256xf32>
    %172 = arith.addf %163, %171 : vector<2x256xf32>
    %c72 = arith.constant 72 : index
    %173 = memref.load %arg5[%c72] : memref<98xf32, #tpu.memory_space<smem>>
    %c73 = arith.constant 73 : index
    %174 = memref.load %arg5[%c73] : memref<98xf32, #tpu.memory_space<smem>>
    %175 = vector.broadcast %173 : f32 to vector<2x1xf32>
    %176 = vector.broadcast %174 : f32 to vector<2x1xf32>
    %177 = arith.select %56, %175, %176 : vector<2x1xi1>, vector<2x1xf32>
    %c0_47 = arith.constant 0 : index
    %c158 = arith.constant 158 : index
    %178 = vector.load %arg8[%c0_47, %c158] : memref<2x512xf32, #tpu.memory_space<vmem>>, vector<2x256xf32>
    %179 = vector.broadcast %177 : vector<2x1xf32> to vector<2x256xf32>
    %180 = arith.mulf %179, %178 : vector<2x256xf32>
    %181 = arith.addf %172, %180 : vector<2x256xf32>
    %c86 = arith.constant 86 : index
    %182 = memref.load %arg5[%c86] : memref<98xf32, #tpu.memory_space<smem>>
    %c87 = arith.constant 87 : index
    %183 = memref.load %arg5[%c87] : memref<98xf32, #tpu.memory_space<smem>>
    %184 = vector.broadcast %182 : f32 to vector<2x1xf32>
    %185 = vector.broadcast %183 : f32 to vector<2x1xf32>
    %186 = arith.select %56, %184, %185 : vector<2x1xi1>, vector<2x1xf32>
    %c0_48 = arith.constant 0 : index
    %c174 = arith.constant 174 : index
    %187 = vector.load %arg8[%c0_48, %c174] : memref<2x512xf32, #tpu.memory_space<vmem>>, vector<2x256xf32>
    %188 = vector.broadcast %186 : vector<2x1xf32> to vector<2x256xf32>
    %189 = arith.mulf %188, %187 : vector<2x256xf32>
    %190 = arith.addf %181, %189 : vector<2x256xf32>
    %191 = vector.broadcast %126 : vector<1x256xf32> to vector<2x256xf32>
    %192 = arith.mulf %191, %190 : vector<2x256xf32>
    %193 = arith.addf %125, %192 : vector<2x256xf32>
    %c2_49 = arith.constant 2 : index
    %c0_50 = arith.constant 0 : index
    %194 = vector.load %arg4[%c2_49, %c0_50] : memref<7x256xf32, #tpu.memory_space<vmem>>, vector<1x256xf32>
    %cst_51 = arith.constant 0.000000e+00 : f32
    %195 = vector.broadcast %cst_51 : f32 to vector<2x256xf32>
    %c4 = arith.constant 4 : index
    %196 = memref.load %arg5[%c4] : memref<98xf32, #tpu.memory_space<smem>>
    %c5 = arith.constant 5 : index
    %197 = memref.load %arg5[%c5] : memref<98xf32, #tpu.memory_space<smem>>
    %198 = vector.broadcast %196 : f32 to vector<2x1xf32>
    %199 = vector.broadcast %197 : f32 to vector<2x1xf32>
    %200 = arith.select %56, %198, %199 : vector<2x1xi1>, vector<2x1xf32>
    %c0_52 = arith.constant 0 : index
    %c79 = arith.constant 79 : index
    %201 = vector.load %arg8[%c0_52, %c79] : memref<2x512xf32, #tpu.memory_space<vmem>>, vector<2x256xf32>
    %202 = vector.broadcast %200 : vector<2x1xf32> to vector<2x256xf32>
    %203 = arith.mulf %202, %201 : vector<2x256xf32>
    %204 = arith.addf %195, %203 : vector<2x256xf32>
    %c18 = arith.constant 18 : index
    %205 = memref.load %arg5[%c18] : memref<98xf32, #tpu.memory_space<smem>>
    %c19 = arith.constant 19 : index
    %206 = memref.load %arg5[%c19] : memref<98xf32, #tpu.memory_space<smem>>
    %207 = vector.broadcast %205 : f32 to vector<2x1xf32>
    %208 = vector.broadcast %206 : f32 to vector<2x1xf32>
    %209 = arith.select %56, %207, %208 : vector<2x1xi1>, vector<2x1xf32>
    %c0_53 = arith.constant 0 : index
    %c95 = arith.constant 95 : index
    %210 = vector.load %arg8[%c0_53, %c95] : memref<2x512xf32, #tpu.memory_space<vmem>>, vector<2x256xf32>
    %211 = vector.broadcast %209 : vector<2x1xf32> to vector<2x256xf32>
    %212 = arith.mulf %211, %210 : vector<2x256xf32>
    %213 = arith.addf %204, %212 : vector<2x256xf32>
    %c32 = arith.constant 32 : index
    %214 = memref.load %arg5[%c32] : memref<98xf32, #tpu.memory_space<smem>>
    %c33 = arith.constant 33 : index
    %215 = memref.load %arg5[%c33] : memref<98xf32, #tpu.memory_space<smem>>
    %216 = vector.broadcast %214 : f32 to vector<2x1xf32>
    %217 = vector.broadcast %215 : f32 to vector<2x1xf32>
    %218 = arith.select %56, %216, %217 : vector<2x1xi1>, vector<2x1xf32>
    %c0_54 = arith.constant 0 : index
    %c111 = arith.constant 111 : index
    %219 = vector.load %arg8[%c0_54, %c111] : memref<2x512xf32, #tpu.memory_space<vmem>>, vector<2x256xf32>
    %220 = vector.broadcast %218 : vector<2x1xf32> to vector<2x256xf32>
    %221 = arith.mulf %220, %219 : vector<2x256xf32>
    %222 = arith.addf %213, %221 : vector<2x256xf32>
    %c46 = arith.constant 46 : index
    %223 = memref.load %arg5[%c46] : memref<98xf32, #tpu.memory_space<smem>>
    %c47 = arith.constant 47 : index
    %224 = memref.load %arg5[%c47] : memref<98xf32, #tpu.memory_space<smem>>
    %225 = vector.broadcast %223 : f32 to vector<2x1xf32>
    %226 = vector.broadcast %224 : f32 to vector<2x1xf32>
    %227 = arith.select %56, %225, %226 : vector<2x1xi1>, vector<2x1xf32>
    %c0_55 = arith.constant 0 : index
    %c127 = arith.constant 127 : index
    %228 = vector.load %arg8[%c0_55, %c127] : memref<2x512xf32, #tpu.memory_space<vmem>>, vector<2x256xf32>
    %229 = vector.broadcast %227 : vector<2x1xf32> to vector<2x256xf32>
    %230 = arith.mulf %229, %228 : vector<2x256xf32>
    %231 = arith.addf %222, %230 : vector<2x256xf32>
    %c60 = arith.constant 60 : index
    %232 = memref.load %arg5[%c60] : memref<98xf32, #tpu.memory_space<smem>>
    %c61 = arith.constant 61 : index
    %233 = memref.load %arg5[%c61] : memref<98xf32, #tpu.memory_space<smem>>
    %234 = vector.broadcast %232 : f32 to vector<2x1xf32>
    %235 = vector.broadcast %233 : f32 to vector<2x1xf32>
    %236 = arith.select %56, %234, %235 : vector<2x1xi1>, vector<2x1xf32>
    %c0_56 = arith.constant 0 : index
    %c143 = arith.constant 143 : index
    %237 = vector.load %arg8[%c0_56, %c143] : memref<2x512xf32, #tpu.memory_space<vmem>>, vector<2x256xf32>
    %238 = vector.broadcast %236 : vector<2x1xf32> to vector<2x256xf32>
    %239 = arith.mulf %238, %237 : vector<2x256xf32>
    %240 = arith.addf %231, %239 : vector<2x256xf32>
    %c74 = arith.constant 74 : index
    %241 = memref.load %arg5[%c74] : memref<98xf32, #tpu.memory_space<smem>>
    %c75 = arith.constant 75 : index
    %242 = memref.load %arg5[%c75] : memref<98xf32, #tpu.memory_space<smem>>
    %243 = vector.broadcast %241 : f32 to vector<2x1xf32>
    %244 = vector.broadcast %242 : f32 to vector<2x1xf32>
    %245 = arith.select %56, %243, %244 : vector<2x1xi1>, vector<2x1xf32>
    %c0_57 = arith.constant 0 : index
    %c159 = arith.constant 159 : index
    %246 = vector.load %arg8[%c0_57, %c159] : memref<2x512xf32, #tpu.memory_space<vmem>>, vector<2x256xf32>
    %247 = vector.broadcast %245 : vector<2x1xf32> to vector<2x256xf32>
    %248 = arith.mulf %247, %246 : vector<2x256xf32>
    %249 = arith.addf %240, %248 : vector<2x256xf32>
    %c88 = arith.constant 88 : index
    %250 = memref.load %arg5[%c88] : memref<98xf32, #tpu.memory_space<smem>>
    %c89 = arith.constant 89 : index
    %251 = memref.load %arg5[%c89] : memref<98xf32, #tpu.memory_space<smem>>
    %252 = vector.broadcast %250 : f32 to vector<2x1xf32>
    %253 = vector.broadcast %251 : f32 to vector<2x1xf32>
    %254 = arith.select %56, %252, %253 : vector<2x1xi1>, vector<2x1xf32>
    %c0_58 = arith.constant 0 : index
    %c175 = arith.constant 175 : index
    %255 = vector.load %arg8[%c0_58, %c175] : memref<2x512xf32, #tpu.memory_space<vmem>>, vector<2x256xf32>
    %256 = vector.broadcast %254 : vector<2x1xf32> to vector<2x256xf32>
    %257 = arith.mulf %256, %255 : vector<2x256xf32>
    %258 = arith.addf %249, %257 : vector<2x256xf32>
    %259 = vector.broadcast %194 : vector<1x256xf32> to vector<2x256xf32>
    %260 = arith.mulf %259, %258 : vector<2x256xf32>
    %261 = arith.addf %193, %260 : vector<2x256xf32>
    %c3_59 = arith.constant 3 : index
    %c0_60 = arith.constant 0 : index
    %262 = vector.load %arg4[%c3_59, %c0_60] : memref<7x256xf32, #tpu.memory_space<vmem>>, vector<1x256xf32>
    %cst_61 = arith.constant 0.000000e+00 : f32
    %263 = vector.broadcast %cst_61 : f32 to vector<2x256xf32>
    %c6 = arith.constant 6 : index
    %264 = memref.load %arg5[%c6] : memref<98xf32, #tpu.memory_space<smem>>
    %c7 = arith.constant 7 : index
    %265 = memref.load %arg5[%c7] : memref<98xf32, #tpu.memory_space<smem>>
    %266 = vector.broadcast %264 : f32 to vector<2x1xf32>
    %267 = vector.broadcast %265 : f32 to vector<2x1xf32>
    %268 = arith.select %56, %266, %267 : vector<2x1xi1>, vector<2x1xf32>
    %c0_62 = arith.constant 0 : index
    %c80 = arith.constant 80 : index
    %269 = vector.load %arg8[%c0_62, %c80] : memref<2x512xf32, #tpu.memory_space<vmem>>, vector<2x256xf32>
    %270 = vector.broadcast %268 : vector<2x1xf32> to vector<2x256xf32>
    %271 = arith.mulf %270, %269 : vector<2x256xf32>
    %272 = arith.addf %263, %271 : vector<2x256xf32>
    %c20 = arith.constant 20 : index
    %273 = memref.load %arg5[%c20] : memref<98xf32, #tpu.memory_space<smem>>
    %c21 = arith.constant 21 : index
    %274 = memref.load %arg5[%c21] : memref<98xf32, #tpu.memory_space<smem>>
    %275 = vector.broadcast %273 : f32 to vector<2x1xf32>
    %276 = vector.broadcast %274 : f32 to vector<2x1xf32>
    %277 = arith.select %56, %275, %276 : vector<2x1xi1>, vector<2x1xf32>
    %c0_63 = arith.constant 0 : index
    %c96 = arith.constant 96 : index
    %278 = vector.load %arg8[%c0_63, %c96] : memref<2x512xf32, #tpu.memory_space<vmem>>, vector<2x256xf32>
    %279 = vector.broadcast %277 : vector<2x1xf32> to vector<2x256xf32>
    %280 = arith.mulf %279, %278 : vector<2x256xf32>
    %281 = arith.addf %272, %280 : vector<2x256xf32>
    %c34 = arith.constant 34 : index
    %282 = memref.load %arg5[%c34] : memref<98xf32, #tpu.memory_space<smem>>
    %c35 = arith.constant 35 : index
    %283 = memref.load %arg5[%c35] : memref<98xf32, #tpu.memory_space<smem>>
    %284 = vector.broadcast %282 : f32 to vector<2x1xf32>
    %285 = vector.broadcast %283 : f32 to vector<2x1xf32>
    %286 = arith.select %56, %284, %285 : vector<2x1xi1>, vector<2x1xf32>
    %c0_64 = arith.constant 0 : index
    %c112 = arith.constant 112 : index
    %287 = vector.load %arg8[%c0_64, %c112] : memref<2x512xf32, #tpu.memory_space<vmem>>, vector<2x256xf32>
    %288 = vector.broadcast %286 : vector<2x1xf32> to vector<2x256xf32>
    %289 = arith.mulf %288, %287 : vector<2x256xf32>
    %290 = arith.addf %281, %289 : vector<2x256xf32>
    %c48 = arith.constant 48 : index
    %291 = memref.load %arg5[%c48] : memref<98xf32, #tpu.memory_space<smem>>
    %c49 = arith.constant 49 : index
    %292 = memref.load %arg5[%c49] : memref<98xf32, #tpu.memory_space<smem>>
    %293 = vector.broadcast %291 : f32 to vector<2x1xf32>
    %294 = vector.broadcast %292 : f32 to vector<2x1xf32>
    %295 = arith.select %56, %293, %294 : vector<2x1xi1>, vector<2x1xf32>
    %c0_65 = arith.constant 0 : index
    %c128_66 = arith.constant 128 : index
    %296 = vector.load %arg8[%c0_65, %c128_66] : memref<2x512xf32, #tpu.memory_space<vmem>>, vector<2x256xf32>
    %297 = vector.broadcast %295 : vector<2x1xf32> to vector<2x256xf32>
    %298 = arith.mulf %297, %296 : vector<2x256xf32>
    %299 = arith.addf %290, %298 : vector<2x256xf32>
    %c62 = arith.constant 62 : index
    %300 = memref.load %arg5[%c62] : memref<98xf32, #tpu.memory_space<smem>>
    %c63 = arith.constant 63 : index
    %301 = memref.load %arg5[%c63] : memref<98xf32, #tpu.memory_space<smem>>
    %302 = vector.broadcast %300 : f32 to vector<2x1xf32>
    %303 = vector.broadcast %301 : f32 to vector<2x1xf32>
    %304 = arith.select %56, %302, %303 : vector<2x1xi1>, vector<2x1xf32>
    %c0_67 = arith.constant 0 : index
    %c144 = arith.constant 144 : index
    %305 = vector.load %arg8[%c0_67, %c144] : memref<2x512xf32, #tpu.memory_space<vmem>>, vector<2x256xf32>
    %306 = vector.broadcast %304 : vector<2x1xf32> to vector<2x256xf32>
    %307 = arith.mulf %306, %305 : vector<2x256xf32>
    %308 = arith.addf %299, %307 : vector<2x256xf32>
    %c76 = arith.constant 76 : index
    %309 = memref.load %arg5[%c76] : memref<98xf32, #tpu.memory_space<smem>>
    %c77_68 = arith.constant 77 : index
    %310 = memref.load %arg5[%c77_68] : memref<98xf32, #tpu.memory_space<smem>>
    %311 = vector.broadcast %309 : f32 to vector<2x1xf32>
    %312 = vector.broadcast %310 : f32 to vector<2x1xf32>
    %313 = arith.select %56, %311, %312 : vector<2x1xi1>, vector<2x1xf32>
    %c0_69 = arith.constant 0 : index
    %c160 = arith.constant 160 : index
    %314 = vector.load %arg8[%c0_69, %c160] : memref<2x512xf32, #tpu.memory_space<vmem>>, vector<2x256xf32>
    %315 = vector.broadcast %313 : vector<2x1xf32> to vector<2x256xf32>
    %316 = arith.mulf %315, %314 : vector<2x256xf32>
    %317 = arith.addf %308, %316 : vector<2x256xf32>
    %c90 = arith.constant 90 : index
    %318 = memref.load %arg5[%c90] : memref<98xf32, #tpu.memory_space<smem>>
    %c91 = arith.constant 91 : index
    %319 = memref.load %arg5[%c91] : memref<98xf32, #tpu.memory_space<smem>>
    %320 = vector.broadcast %318 : f32 to vector<2x1xf32>
    %321 = vector.broadcast %319 : f32 to vector<2x1xf32>
    %322 = arith.select %56, %320, %321 : vector<2x1xi1>, vector<2x1xf32>
    %c0_70 = arith.constant 0 : index
    %c176 = arith.constant 176 : index
    %323 = vector.load %arg8[%c0_70, %c176] : memref<2x512xf32, #tpu.memory_space<vmem>>, vector<2x256xf32>
    %324 = vector.broadcast %322 : vector<2x1xf32> to vector<2x256xf32>
    %325 = arith.mulf %324, %323 : vector<2x256xf32>
    %326 = arith.addf %317, %325 : vector<2x256xf32>
    %327 = vector.broadcast %262 : vector<1x256xf32> to vector<2x256xf32>
    %328 = arith.mulf %327, %326 : vector<2x256xf32>
    %329 = arith.addf %261, %328 : vector<2x256xf32>
    %c4_71 = arith.constant 4 : index
    %c0_72 = arith.constant 0 : index
    %330 = vector.load %arg4[%c4_71, %c0_72] : memref<7x256xf32, #tpu.memory_space<vmem>>, vector<1x256xf32>
    %cst_73 = arith.constant 0.000000e+00 : f32
    %331 = vector.broadcast %cst_73 : f32 to vector<2x256xf32>
    %c8 = arith.constant 8 : index
    %332 = memref.load %arg5[%c8] : memref<98xf32, #tpu.memory_space<smem>>
    %c9 = arith.constant 9 : index
    %333 = memref.load %arg5[%c9] : memref<98xf32, #tpu.memory_space<smem>>
    %334 = vector.broadcast %332 : f32 to vector<2x1xf32>
    %335 = vector.broadcast %333 : f32 to vector<2x1xf32>
    %336 = arith.select %56, %334, %335 : vector<2x1xi1>, vector<2x1xf32>
    %c0_74 = arith.constant 0 : index
    %c81 = arith.constant 81 : index
    %337 = vector.load %arg8[%c0_74, %c81] : memref<2x512xf32, #tpu.memory_space<vmem>>, vector<2x256xf32>
    %338 = vector.broadcast %336 : vector<2x1xf32> to vector<2x256xf32>
    %339 = arith.mulf %338, %337 : vector<2x256xf32>
    %340 = arith.addf %331, %339 : vector<2x256xf32>
    %c22 = arith.constant 22 : index
    %341 = memref.load %arg5[%c22] : memref<98xf32, #tpu.memory_space<smem>>
    %c23 = arith.constant 23 : index
    %342 = memref.load %arg5[%c23] : memref<98xf32, #tpu.memory_space<smem>>
    %343 = vector.broadcast %341 : f32 to vector<2x1xf32>
    %344 = vector.broadcast %342 : f32 to vector<2x1xf32>
    %345 = arith.select %56, %343, %344 : vector<2x1xi1>, vector<2x1xf32>
    %c0_75 = arith.constant 0 : index
    %c97 = arith.constant 97 : index
    %346 = vector.load %arg8[%c0_75, %c97] : memref<2x512xf32, #tpu.memory_space<vmem>>, vector<2x256xf32>
    %347 = vector.broadcast %345 : vector<2x1xf32> to vector<2x256xf32>
    %348 = arith.mulf %347, %346 : vector<2x256xf32>
    %349 = arith.addf %340, %348 : vector<2x256xf32>
    %c36 = arith.constant 36 : index
    %350 = memref.load %arg5[%c36] : memref<98xf32, #tpu.memory_space<smem>>
    %c37 = arith.constant 37 : index
    %351 = memref.load %arg5[%c37] : memref<98xf32, #tpu.memory_space<smem>>
    %352 = vector.broadcast %350 : f32 to vector<2x1xf32>
    %353 = vector.broadcast %351 : f32 to vector<2x1xf32>
    %354 = arith.select %56, %352, %353 : vector<2x1xi1>, vector<2x1xf32>
    %c0_76 = arith.constant 0 : index
    %c113 = arith.constant 113 : index
    %355 = vector.load %arg8[%c0_76, %c113] : memref<2x512xf32, #tpu.memory_space<vmem>>, vector<2x256xf32>
    %356 = vector.broadcast %354 : vector<2x1xf32> to vector<2x256xf32>
    %357 = arith.mulf %356, %355 : vector<2x256xf32>
    %358 = arith.addf %349, %357 : vector<2x256xf32>
    %c50 = arith.constant 50 : index
    %359 = memref.load %arg5[%c50] : memref<98xf32, #tpu.memory_space<smem>>
    %c51 = arith.constant 51 : index
    %360 = memref.load %arg5[%c51] : memref<98xf32, #tpu.memory_space<smem>>
    %361 = vector.broadcast %359 : f32 to vector<2x1xf32>
    %362 = vector.broadcast %360 : f32 to vector<2x1xf32>
    %363 = arith.select %56, %361, %362 : vector<2x1xi1>, vector<2x1xf32>
    %c0_77 = arith.constant 0 : index
    %c129 = arith.constant 129 : index
    %364 = vector.load %arg8[%c0_77, %c129] : memref<2x512xf32, #tpu.memory_space<vmem>>, vector<2x256xf32>
    %365 = vector.broadcast %363 : vector<2x1xf32> to vector<2x256xf32>
    %366 = arith.mulf %365, %364 : vector<2x256xf32>
    %367 = arith.addf %358, %366 : vector<2x256xf32>
    %c64 = arith.constant 64 : index
    %368 = memref.load %arg5[%c64] : memref<98xf32, #tpu.memory_space<smem>>
    %c65 = arith.constant 65 : index
    %369 = memref.load %arg5[%c65] : memref<98xf32, #tpu.memory_space<smem>>
    %370 = vector.broadcast %368 : f32 to vector<2x1xf32>
    %371 = vector.broadcast %369 : f32 to vector<2x1xf32>
    %372 = arith.select %56, %370, %371 : vector<2x1xi1>, vector<2x1xf32>
    %c0_78 = arith.constant 0 : index
    %c145 = arith.constant 145 : index
    %373 = vector.load %arg8[%c0_78, %c145] : memref<2x512xf32, #tpu.memory_space<vmem>>, vector<2x256xf32>
    %374 = vector.broadcast %372 : vector<2x1xf32> to vector<2x256xf32>
    %375 = arith.mulf %374, %373 : vector<2x256xf32>
    %376 = arith.addf %367, %375 : vector<2x256xf32>
    %c78_79 = arith.constant 78 : index
    %377 = memref.load %arg5[%c78_79] : memref<98xf32, #tpu.memory_space<smem>>
    %c79_80 = arith.constant 79 : index
    %378 = memref.load %arg5[%c79_80] : memref<98xf32, #tpu.memory_space<smem>>
    %379 = vector.broadcast %377 : f32 to vector<2x1xf32>
    %380 = vector.broadcast %378 : f32 to vector<2x1xf32>
    %381 = arith.select %56, %379, %380 : vector<2x1xi1>, vector<2x1xf32>
    %c0_81 = arith.constant 0 : index
    %c161 = arith.constant 161 : index
    %382 = vector.load %arg8[%c0_81, %c161] : memref<2x512xf32, #tpu.memory_space<vmem>>, vector<2x256xf32>
    %383 = vector.broadcast %381 : vector<2x1xf32> to vector<2x256xf32>
    %384 = arith.mulf %383, %382 : vector<2x256xf32>
    %385 = arith.addf %376, %384 : vector<2x256xf32>
    %c92 = arith.constant 92 : index
    %386 = memref.load %arg5[%c92] : memref<98xf32, #tpu.memory_space<smem>>
    %c93_82 = arith.constant 93 : index
    %387 = memref.load %arg5[%c93_82] : memref<98xf32, #tpu.memory_space<smem>>
    %388 = vector.broadcast %386 : f32 to vector<2x1xf32>
    %389 = vector.broadcast %387 : f32 to vector<2x1xf32>
    %390 = arith.select %56, %388, %389 : vector<2x1xi1>, vector<2x1xf32>
    %c0_83 = arith.constant 0 : index
    %c177 = arith.constant 177 : index
    %391 = vector.load %arg8[%c0_83, %c177] : memref<2x512xf32, #tpu.memory_space<vmem>>, vector<2x256xf32>
    %392 = vector.broadcast %390 : vector<2x1xf32> to vector<2x256xf32>
    %393 = arith.mulf %392, %391 : vector<2x256xf32>
    %394 = arith.addf %385, %393 : vector<2x256xf32>
    %395 = vector.broadcast %330 : vector<1x256xf32> to vector<2x256xf32>
    %396 = arith.mulf %395, %394 : vector<2x256xf32>
    %397 = arith.addf %329, %396 : vector<2x256xf32>
    %c5_84 = arith.constant 5 : index
    %c0_85 = arith.constant 0 : index
    %398 = vector.load %arg4[%c5_84, %c0_85] : memref<7x256xf32, #tpu.memory_space<vmem>>, vector<1x256xf32>
    %cst_86 = arith.constant 0.000000e+00 : f32
    %399 = vector.broadcast %cst_86 : f32 to vector<2x256xf32>
    %c10 = arith.constant 10 : index
    %400 = memref.load %arg5[%c10] : memref<98xf32, #tpu.memory_space<smem>>
    %c11 = arith.constant 11 : index
    %401 = memref.load %arg5[%c11] : memref<98xf32, #tpu.memory_space<smem>>
    %402 = vector.broadcast %400 : f32 to vector<2x1xf32>
    %403 = vector.broadcast %401 : f32 to vector<2x1xf32>
    %404 = arith.select %56, %402, %403 : vector<2x1xi1>, vector<2x1xf32>
    %c0_87 = arith.constant 0 : index
    %c82 = arith.constant 82 : index
    %405 = vector.load %arg8[%c0_87, %c82] : memref<2x512xf32, #tpu.memory_space<vmem>>, vector<2x256xf32>
    %406 = vector.broadcast %404 : vector<2x1xf32> to vector<2x256xf32>
    %407 = arith.mulf %406, %405 : vector<2x256xf32>
    %408 = arith.addf %399, %407 : vector<2x256xf32>
    %c24 = arith.constant 24 : index
    %409 = memref.load %arg5[%c24] : memref<98xf32, #tpu.memory_space<smem>>
    %c25 = arith.constant 25 : index
    %410 = memref.load %arg5[%c25] : memref<98xf32, #tpu.memory_space<smem>>
    %411 = vector.broadcast %409 : f32 to vector<2x1xf32>
    %412 = vector.broadcast %410 : f32 to vector<2x1xf32>
    %413 = arith.select %56, %411, %412 : vector<2x1xi1>, vector<2x1xf32>
    %c0_88 = arith.constant 0 : index
    %c98 = arith.constant 98 : index
    %414 = vector.load %arg8[%c0_88, %c98] : memref<2x512xf32, #tpu.memory_space<vmem>>, vector<2x256xf32>
    %415 = vector.broadcast %413 : vector<2x1xf32> to vector<2x256xf32>
    %416 = arith.mulf %415, %414 : vector<2x256xf32>
    %417 = arith.addf %408, %416 : vector<2x256xf32>
    %c38 = arith.constant 38 : index
    %418 = memref.load %arg5[%c38] : memref<98xf32, #tpu.memory_space<smem>>
    %c39 = arith.constant 39 : index
    %419 = memref.load %arg5[%c39] : memref<98xf32, #tpu.memory_space<smem>>
    %420 = vector.broadcast %418 : f32 to vector<2x1xf32>
    %421 = vector.broadcast %419 : f32 to vector<2x1xf32>
    %422 = arith.select %56, %420, %421 : vector<2x1xi1>, vector<2x1xf32>
    %c0_89 = arith.constant 0 : index
    %c114 = arith.constant 114 : index
    %423 = vector.load %arg8[%c0_89, %c114] : memref<2x512xf32, #tpu.memory_space<vmem>>, vector<2x256xf32>
    %424 = vector.broadcast %422 : vector<2x1xf32> to vector<2x256xf32>
    %425 = arith.mulf %424, %423 : vector<2x256xf32>
    %426 = arith.addf %417, %425 : vector<2x256xf32>
    %c52 = arith.constant 52 : index
    %427 = memref.load %arg5[%c52] : memref<98xf32, #tpu.memory_space<smem>>
    %c53 = arith.constant 53 : index
    %428 = memref.load %arg5[%c53] : memref<98xf32, #tpu.memory_space<smem>>
    %429 = vector.broadcast %427 : f32 to vector<2x1xf32>
    %430 = vector.broadcast %428 : f32 to vector<2x1xf32>
    %431 = arith.select %56, %429, %430 : vector<2x1xi1>, vector<2x1xf32>
    %c0_90 = arith.constant 0 : index
    %c130 = arith.constant 130 : index
    %432 = vector.load %arg8[%c0_90, %c130] : memref<2x512xf32, #tpu.memory_space<vmem>>, vector<2x256xf32>
    %433 = vector.broadcast %431 : vector<2x1xf32> to vector<2x256xf32>
    %434 = arith.mulf %433, %432 : vector<2x256xf32>
    %435 = arith.addf %426, %434 : vector<2x256xf32>
    %c66 = arith.constant 66 : index
    %436 = memref.load %arg5[%c66] : memref<98xf32, #tpu.memory_space<smem>>
    %c67 = arith.constant 67 : index
    %437 = memref.load %arg5[%c67] : memref<98xf32, #tpu.memory_space<smem>>
    %438 = vector.broadcast %436 : f32 to vector<2x1xf32>
    %439 = vector.broadcast %437 : f32 to vector<2x1xf32>
    %440 = arith.select %56, %438, %439 : vector<2x1xi1>, vector<2x1xf32>
    %c0_91 = arith.constant 0 : index
    %c146 = arith.constant 146 : index
    %441 = vector.load %arg8[%c0_91, %c146] : memref<2x512xf32, #tpu.memory_space<vmem>>, vector<2x256xf32>
    %442 = vector.broadcast %440 : vector<2x1xf32> to vector<2x256xf32>
    %443 = arith.mulf %442, %441 : vector<2x256xf32>
    %444 = arith.addf %435, %443 : vector<2x256xf32>
    %c80_92 = arith.constant 80 : index
    %445 = memref.load %arg5[%c80_92] : memref<98xf32, #tpu.memory_space<smem>>
    %c81_93 = arith.constant 81 : index
    %446 = memref.load %arg5[%c81_93] : memref<98xf32, #tpu.memory_space<smem>>
    %447 = vector.broadcast %445 : f32 to vector<2x1xf32>
    %448 = vector.broadcast %446 : f32 to vector<2x1xf32>
    %449 = arith.select %56, %447, %448 : vector<2x1xi1>, vector<2x1xf32>
    %c0_94 = arith.constant 0 : index
    %c162 = arith.constant 162 : index
    %450 = vector.load %arg8[%c0_94, %c162] : memref<2x512xf32, #tpu.memory_space<vmem>>, vector<2x256xf32>
    %451 = vector.broadcast %449 : vector<2x1xf32> to vector<2x256xf32>
    %452 = arith.mulf %451, %450 : vector<2x256xf32>
    %453 = arith.addf %444, %452 : vector<2x256xf32>
    %c94_95 = arith.constant 94 : index
    %454 = memref.load %arg5[%c94_95] : memref<98xf32, #tpu.memory_space<smem>>
    %c95_96 = arith.constant 95 : index
    %455 = memref.load %arg5[%c95_96] : memref<98xf32, #tpu.memory_space<smem>>
    %456 = vector.broadcast %454 : f32 to vector<2x1xf32>
    %457 = vector.broadcast %455 : f32 to vector<2x1xf32>
    %458 = arith.select %56, %456, %457 : vector<2x1xi1>, vector<2x1xf32>
    %c0_97 = arith.constant 0 : index
    %c178 = arith.constant 178 : index
    %459 = vector.load %arg8[%c0_97, %c178] : memref<2x512xf32, #tpu.memory_space<vmem>>, vector<2x256xf32>
    %460 = vector.broadcast %458 : vector<2x1xf32> to vector<2x256xf32>
    %461 = arith.mulf %460, %459 : vector<2x256xf32>
    %462 = arith.addf %453, %461 : vector<2x256xf32>
    %463 = vector.broadcast %398 : vector<1x256xf32> to vector<2x256xf32>
    %464 = arith.mulf %463, %462 : vector<2x256xf32>
    %465 = arith.addf %397, %464 : vector<2x256xf32>
    %c6_98 = arith.constant 6 : index
    %c0_99 = arith.constant 0 : index
    %466 = vector.load %arg4[%c6_98, %c0_99] : memref<7x256xf32, #tpu.memory_space<vmem>>, vector<1x256xf32>
    %cst_100 = arith.constant 0.000000e+00 : f32
    %467 = vector.broadcast %cst_100 : f32 to vector<2x256xf32>
    %c12 = arith.constant 12 : index
    %468 = memref.load %arg5[%c12] : memref<98xf32, #tpu.memory_space<smem>>
    %c13 = arith.constant 13 : index
    %469 = memref.load %arg5[%c13] : memref<98xf32, #tpu.memory_space<smem>>
    %470 = vector.broadcast %468 : f32 to vector<2x1xf32>
    %471 = vector.broadcast %469 : f32 to vector<2x1xf32>
    %472 = arith.select %56, %470, %471 : vector<2x1xi1>, vector<2x1xf32>
    %c0_101 = arith.constant 0 : index
    %c83 = arith.constant 83 : index
    %473 = vector.load %arg8[%c0_101, %c83] : memref<2x512xf32, #tpu.memory_space<vmem>>, vector<2x256xf32>
    %474 = vector.broadcast %472 : vector<2x1xf32> to vector<2x256xf32>
    %475 = arith.mulf %474, %473 : vector<2x256xf32>
    %476 = arith.addf %467, %475 : vector<2x256xf32>
    %c26 = arith.constant 26 : index
    %477 = memref.load %arg5[%c26] : memref<98xf32, #tpu.memory_space<smem>>
    %c27 = arith.constant 27 : index
    %478 = memref.load %arg5[%c27] : memref<98xf32, #tpu.memory_space<smem>>
    %479 = vector.broadcast %477 : f32 to vector<2x1xf32>
    %480 = vector.broadcast %478 : f32 to vector<2x1xf32>
    %481 = arith.select %56, %479, %480 : vector<2x1xi1>, vector<2x1xf32>
    %c0_102 = arith.constant 0 : index
    %c99 = arith.constant 99 : index
    %482 = vector.load %arg8[%c0_102, %c99] : memref<2x512xf32, #tpu.memory_space<vmem>>, vector<2x256xf32>
    %483 = vector.broadcast %481 : vector<2x1xf32> to vector<2x256xf32>
    %484 = arith.mulf %483, %482 : vector<2x256xf32>
    %485 = arith.addf %476, %484 : vector<2x256xf32>
    %c40 = arith.constant 40 : index
    %486 = memref.load %arg5[%c40] : memref<98xf32, #tpu.memory_space<smem>>
    %c41 = arith.constant 41 : index
    %487 = memref.load %arg5[%c41] : memref<98xf32, #tpu.memory_space<smem>>
    %488 = vector.broadcast %486 : f32 to vector<2x1xf32>
    %489 = vector.broadcast %487 : f32 to vector<2x1xf32>
    %490 = arith.select %56, %488, %489 : vector<2x1xi1>, vector<2x1xf32>
    %c0_103 = arith.constant 0 : index
    %c115 = arith.constant 115 : index
    %491 = vector.load %arg8[%c0_103, %c115] : memref<2x512xf32, #tpu.memory_space<vmem>>, vector<2x256xf32>
    %492 = vector.broadcast %490 : vector<2x1xf32> to vector<2x256xf32>
    %493 = arith.mulf %492, %491 : vector<2x256xf32>
    %494 = arith.addf %485, %493 : vector<2x256xf32>
    %c54 = arith.constant 54 : index
    %495 = memref.load %arg5[%c54] : memref<98xf32, #tpu.memory_space<smem>>
    %c55 = arith.constant 55 : index
    %496 = memref.load %arg5[%c55] : memref<98xf32, #tpu.memory_space<smem>>
    %497 = vector.broadcast %495 : f32 to vector<2x1xf32>
    %498 = vector.broadcast %496 : f32 to vector<2x1xf32>
    %499 = arith.select %56, %497, %498 : vector<2x1xi1>, vector<2x1xf32>
    %c0_104 = arith.constant 0 : index
    %c131 = arith.constant 131 : index
    %500 = vector.load %arg8[%c0_104, %c131] : memref<2x512xf32, #tpu.memory_space<vmem>>, vector<2x256xf32>
    %501 = vector.broadcast %499 : vector<2x1xf32> to vector<2x256xf32>
    %502 = arith.mulf %501, %500 : vector<2x256xf32>
    %503 = arith.addf %494, %502 : vector<2x256xf32>
    %c68 = arith.constant 68 : index
    %504 = memref.load %arg5[%c68] : memref<98xf32, #tpu.memory_space<smem>>
    %c69 = arith.constant 69 : index
    %505 = memref.load %arg5[%c69] : memref<98xf32, #tpu.memory_space<smem>>
    %506 = vector.broadcast %504 : f32 to vector<2x1xf32>
    %507 = vector.broadcast %505 : f32 to vector<2x1xf32>
    %508 = arith.select %56, %506, %507 : vector<2x1xi1>, vector<2x1xf32>
    %c0_105 = arith.constant 0 : index
    %c147 = arith.constant 147 : index
    %509 = vector.load %arg8[%c0_105, %c147] : memref<2x512xf32, #tpu.memory_space<vmem>>, vector<2x256xf32>
    %510 = vector.broadcast %508 : vector<2x1xf32> to vector<2x256xf32>
    %511 = arith.mulf %510, %509 : vector<2x256xf32>
    %512 = arith.addf %503, %511 : vector<2x256xf32>
    %c82_106 = arith.constant 82 : index
    %513 = memref.load %arg5[%c82_106] : memref<98xf32, #tpu.memory_space<smem>>
    %c83_107 = arith.constant 83 : index
    %514 = memref.load %arg5[%c83_107] : memref<98xf32, #tpu.memory_space<smem>>
    %515 = vector.broadcast %513 : f32 to vector<2x1xf32>
    %516 = vector.broadcast %514 : f32 to vector<2x1xf32>
    %517 = arith.select %56, %515, %516 : vector<2x1xi1>, vector<2x1xf32>
    %c0_108 = arith.constant 0 : index
    %c163 = arith.constant 163 : index
    %518 = vector.load %arg8[%c0_108, %c163] : memref<2x512xf32, #tpu.memory_space<vmem>>, vector<2x256xf32>
    %519 = vector.broadcast %517 : vector<2x1xf32> to vector<2x256xf32>
    %520 = arith.mulf %519, %518 : vector<2x256xf32>
    %521 = arith.addf %512, %520 : vector<2x256xf32>
    %c96_109 = arith.constant 96 : index
    %522 = memref.load %arg5[%c96_109] : memref<98xf32, #tpu.memory_space<smem>>
    %c97_110 = arith.constant 97 : index
    %523 = memref.load %arg5[%c97_110] : memref<98xf32, #tpu.memory_space<smem>>
    %524 = vector.broadcast %522 : f32 to vector<2x1xf32>
    %525 = vector.broadcast %523 : f32 to vector<2x1xf32>
    %526 = arith.select %56, %524, %525 : vector<2x1xi1>, vector<2x1xf32>
    %c0_111 = arith.constant 0 : index
    %c179 = arith.constant 179 : index
    %527 = vector.load %arg8[%c0_111, %c179] : memref<2x512xf32, #tpu.memory_space<vmem>>, vector<2x256xf32>
    %528 = vector.broadcast %526 : vector<2x1xf32> to vector<2x256xf32>
    %529 = arith.mulf %528, %527 : vector<2x256xf32>
    %530 = arith.addf %521, %529 : vector<2x256xf32>
    %531 = vector.broadcast %466 : vector<1x256xf32> to vector<2x256xf32>
    %532 = arith.mulf %531, %530 : vector<2x256xf32>
    %533 = arith.addf %465, %532 : vector<2x256xf32>
    %534 = vector.extract_strided_slice %533 {offsets = [0, 0], sizes = [1, 256], strides = [1, 1]} : vector<2x256xf32> to vector<1x256xf32>
    %535 = vector.extract_strided_slice %533 {offsets = [1, 0], sizes = [1, 256], strides = [1, 1]} : vector<2x256xf32> to vector<1x256xf32>
    %536 = arith.addf %534, %535 : vector<1x256xf32>
    %c0_112 = arith.constant 0 : index
    %537 = memref.load %arg6[%c0_112] : memref<1xf32, #tpu.memory_space<smem>>
    %538 = vector.broadcast %537 : f32 to vector<1x256xf32>
    %539 = arith.addf %536, %538 : vector<1x256xf32>
    %540 = math.absf %539 : vector<1x256xf32>
    %cst_113 = arith.constant 0.000000e+00 : f32
    %541 = vector.broadcast %cst_113 : f32 to vector<1x256xf32>
    %542 = arith.subf %541, %540 : vector<1x256xf32>
    %543 = math.exp %542 : vector<1x256xf32>
    %cst_114 = arith.constant 1.000000e+00 : f32
    %544 = vector.broadcast %cst_114 : f32 to vector<1x256xf32>
    %545 = arith.addf %544, %543 : vector<1x256xf32>
    %cst_115 = arith.constant 1.000000e+00 : f32
    %546 = vector.broadcast %cst_115 : f32 to vector<1x256xf32>
    %547 = arith.divf %546, %545 : vector<1x256xf32>
    %cst_116 = arith.constant 0.000000e+00 : f32
    %548 = vector.broadcast %cst_116 : f32 to vector<1x256xf32>
    %549 = arith.cmpf oge, %539, %548 : vector<1x256xf32>
    %cst_117 = arith.constant 1.000000e+00 : f32
    %550 = vector.broadcast %cst_117 : f32 to vector<1x256xf32>
    %551 = arith.subf %550, %547 : vector<1x256xf32>
    %552 = arith.select %549, %547, %551 : vector<1x256xi1>, vector<1x256xf32>
    %553 = vector.broadcast %552 : vector<1x256xf32> to vector<64x256xf32>
    %554 = arith.mulf %1, %553 : vector<64x256xf32>
    %555 = vector.broadcast %39 : vector<64x1xf32> to vector<64x256xf32>
    %556 = arith.mulf %554, %555 : vector<64x256xf32>
    %c0_118 = arith.constant 0 : index
    %c0_119 = arith.constant 0 : index
    %c0_120 = arith.constant 0 : index
    %557 = vector.load %arg7[%c0_118, %c0_119, %c0_120] : memref<1x64x256xf32, #tpu.memory_space<vmem>>, vector<1x64x256xf32>
    %558 = vector.shape_cast %557 : vector<1x64x256xf32> to vector<64x256xf32>
    %559 = vector.shape_cast %556 : vector<64x256xf32> to vector<1x64x256xf32>
    tpu.vector_store %arg7[%c0_118, %c0_119, %c0_120], %559 {strides = array<i32>} : memref<1x64x256xf32, #tpu.memory_space<vmem>>, vector<1x64x256xf32>,
    return
  }
  func.func @transform_0(%arg0: i32) -> (i32, i32, i32) {
    %c0_i32 = arith.constant 0 : i32
    %c0_i32_0 = arith.constant 0 : i32
    %c0_i32_1 = arith.constant 0 : i32
    return %arg0, %c0_i32, %c0_i32_0 : i32, i32, i32
  }
  func.func @transform_1(%arg0: i32) -> (i32, i32) {
    %c0_i32 = arith.constant 0 : i32
    %c0_i32_0 = arith.constant 0 : i32
    %c0_i32_1 = arith.constant 0 : i32
    return %c0_i32, %c0_i32_0 : i32, i32
  }
  func.func @transform_2(%arg0: i32) -> (i32, i32) {
    %c0_i32 = arith.constant 0 : i32
    %c0_i32_0 = arith.constant 0 : i32
    %c0_i32_1 = arith.constant 0 : i32
    return %c0_i32, %c0_i32_0 : i32, i32
  }
  func.func @transform_3(%arg0: i32) -> (i32, i32) {
    %c0_i32 = arith.constant 0 : i32
    %c0_i32_0 = arith.constant 0 : i32
    %c0_i32_1 = arith.constant 0 : i32
    return %c0_i32, %c0_i32_0 : i32, i32
  }
  func.func @transform_4(%arg0: i32) -> i32 {
    %c0_i32 = arith.constant 0 : i32
    %c0_i32_0 = arith.constant 0 : i32
    return %c0_i32 : i32
  }
  func.func @transform_5(%arg0: i32) -> i32 {
    %c0_i32 = arith.constant 0 : i32
    %c0_i32_0 = arith.constant 0 : i32
    return %c0_i32 : i32
  }
  func.func @transform_6(%arg0: i32) -> (i32, i32, i32) {
    %c0_i32 = arith.constant 0 : i32
    %c0_i32_0 = arith.constant 0 : i32
    %c0_i32_1 = arith.constant 0 : i32
    return %arg0, %c0_i32, %c0_i32_0 : i32, i32, i32
  }
}

</mosaic_0001>

<llo_original>
// kernel: cbam_plus_forward.1
$region0: #{cbam_plus_forward.1}
  #allocation0 [shape = 'u32[]', space=smem, size = 0x4, offset = 0x4, fixed_abs, tag = 'smem constant byte address 0x4 - core index']
  #allocation1 [shape = 'u32[72,128]{1,0:T(1,128)}', space=vmem, size = 0x9000, scoped, tag = 'internal scratch']
  #allocation2 [shape = 'f32[2,512]{1,0:T(2,128)}', space=vmem, size = 0x1000, scoped, tag = 'scratch operand']
  #allocation3 [shape = 'f32[1]{0:T(128)S(6)}', space=smem, size = 0x200, scoped, tag = 'scoped memory for cbam_plus_forward.1']
  %s0 = inlined_call_operand.vmem [shape: f32[2,64,256], index: 0, kind: input, shape index: {}]
  %s1 = inlined_call_operand.vmem [shape: f32[64,4], index: 1, kind: input, shape index: {}]
  %s2 = inlined_call_operand.vmem [shape: f32[64,4], index: 2, kind: input, shape index: {}]
  %s3 = inlined_call_operand.vmem [shape: f32[7,256], index: 3, kind: input, shape index: {}]
  %s4 = inlined_call_operand.vmem [shape: f32[98], index: 4, kind: input, shape index: {}]
  %s5 = inlined_call_operand.<no memory space> [shape: f32[1], index: 5, kind: input, shape index: {}]
  %s6 = inlined_call_operand.vmem [shape: f32[2,64,256], index: 6, kind: output, shape index: {}]
  %s7 = sld [smem:[#allocation0]]
  $region61: #{cbam_plus_forward.1} parent=0
    _
  %s9 = ssub.s32 1, %s7
  %s10 = scalar_select 0, %s9, %s7
  %11 = sst [smem:[#allocation3]] %s5
  $region1: #{cbam_plus_forward.1} parent=0
    #allocation4 [shape = 'u8[512]{0}', space=smem, size = 0x200, scoped, tag = 'input window, operand 4, single buffered']
    #allocation5 [shape = 's32[2]{0}', space=sflag, size = 0x8, scoped, tag = 'scoped memory for cbam_plus_forward.1']
    %12 = vsyncpa [#allocation5], 0
    loop: start=0, step=1, limit=4
    $region2: #{cbam_plus_forward.1} parent=1 // loop_pre_header
      _
    $region3: #{cbam_plus_forward.1} parent=1 // loop_header
      %s14 = sphi 0, %s18
      %p15 = scmp.ge.s32.totalorder %s14, 4
      %s24 = sphi 0, %s26
      %s27 = sphi 0, %s24
      %s28 = sphi 0, %s27
      %s44 = sphi 0, %s28
      %s48 = sphi 0, %s48
      %s50 = sphi 0, %s48
      %s51 = sphi 0, %s50
      %s65 = sphi 0, %s51
      %s69 = sphi 0, %s69
      %s71 = sphi 0, %s69
      %s72 = sphi 0, %s71
      %s86 = sphi 0, %s72
      %s90 = sphi 0, %s90
      %s92 = sphi 0, %s90
      %s93 = sphi 0, %s92
      %s107 = sphi 0, %s93
      %s111 = sphi 0, %s111
      %s113 = sphi 0, %s111
      %s114 = sphi 0, %s113
      %s128 = sphi 0, %s114
      %s132 = sphi 0, %s132
      %s134 = sphi 0, %s132
      %s135 = sphi 0, %s134
      %s149 = sphi 0, %s135
      %s155 = sphi 0, %s157
      %s158 = sphi 0, %s155
      %s159 = sphi 0, %s158
      %s175 = sphi 0, %s159
    $region4: #{cbam_plus_forward.1} parent=1 // loop_header_branch
      %17 = sbr.rel (%p15) target = $region8
    $region5: #{cbam_plus_forward.1} parent=1 // loop_body
      %s19 = ssub.s32 %s14, 1
      %s20 = ssub.s32 %s14, 2
      %s21 = sadd.s32 %s14, 1
      %s22 = ssub.s32 %s14, %s21
      %p23 = scmp.eq.s32.totalorder %s22, 0
      %s25 = sadd.s32 %s24, 1
      %s26 = scalar_select %p23, %s24, %s25
      %p29 = pneg %p23
      %p30 = scmp.eq.s32.totalorder %s14, 1
      %p31 = por %p29, %p30
      %p32 = scmp.ne.s32.totalorder %s24, %s27
      %p33 = scmp.eq.s32.totalorder %s14, 0
      %p34 = por %p32, %p33
      %p35 = scmp.ne.s32.totalorder %s24, %s27
      %p36 = scmp.eq.s32.totalorder %s19, 1
      %p37 = por %p35, %p36
      %p38 = scmp.ne.s32.totalorder %s27, %s28
      %p39 = scmp.eq.s32.totalorder %s19, 0
      %p40 = por %p38, %p39
      %p41 = scmp.ne.s32.totalorder %s27, %s28
      %p42 = scmp.eq.s32.totalorder %s20, 1
      %p43 = por %p41, %p42
      %p45 = scmp.ne.s32.totalorder %s28, %s44
      %p46 = scmp.eq.s32.totalorder %s20, 0
      %p47 = por %p45, %p46
      %s49 = sadd.s32 %s48, 1
      %p52 = scmp.eq.s32.totalorder %s14, 1
      %p53 = scmp.ne.s32.totalorder %s48, %s50
      %p54 = scmp.eq.s32.totalorder %s14, 0
      %p55 = por %p53, %p54
      %p56 = scmp.ne.s32.totalorder %s48, %s50
      %p57 = scmp.eq.s32.totalorder %s19, 1
      %p58 = por %p56, %p57
      %p59 = scmp.ne.s32.totalorder %s50, %s51
      %p60 = scmp.eq.s32.totalorder %s19, 0
      %p61 = por %p59, %p60
      %p62 = scmp.ne.s32.totalorder %s50, %s51
      %p63 = scmp.eq.s32.totalorder %s20, 1
      %p64 = por %p62, %p63
      %p66 = scmp.ne.s32.totalorder %s51, %s65
      %p67 = scmp.eq.s32.totalorder %s20, 0
      %p68 = por %p66, %p67
      %s70 = sadd.s32 %s69, 1
      %p73 = scmp.eq.s32.totalorder %s14, 1
      %p74 = scmp.ne.s32.totalorder %s69, %s71
      %p75 = scmp.eq.s32.totalorder %s14, 0
      %p76 = por %p74, %p75
      %p77 = scmp.ne.s32.totalorder %s69, %s71
      %p78 = scmp.eq.s32.totalorder %s19, 1
      %p79 = por %p77, %p78
      %p80 = scmp.ne.s32.totalorder %s71, %s72
      %p81 = scmp.eq.s32.totalorder %s19, 0
      %p82 = por %p80, %p81
      %p83 = scmp.ne.s32.totalorder %s71, %s72
      %p84 = scmp.eq.s32.totalorder %s20, 1
      %p85 = por %p83, %p84
      %p87 = scmp.ne.s32.totalorder %s72, %s86
      %p88 = scmp.eq.s32.totalorder %s20, 0
      %p89 = por %p87, %p88
      %s91 = sadd.s32 %s90, 1
      %p94 = scmp.eq.s32.totalorder %s14, 1
      %p95 = scmp.ne.s32.totalorder %s90, %s92
      %p96 = scmp.eq.s32.totalorder %s14, 0
      %p97 = por %p95, %p96
      %p98 = scmp.ne.s32.totalorder %s90, %s92
      %p99 = scmp.eq.s32.totalorder %s19, 1
      %p100 = por %p98, %p99
      %p101 = scmp.ne.s32.totalorder %s92, %s93
      %p102 = scmp.eq.s32.totalorder %s19, 0
      %p103 = por %p101, %p102
      %p104 = scmp.ne.s32.totalorder %s92, %s93
      %p105 = scmp.eq.s32.totalorder %s20, 1
      %p106 = por %p104, %p105
      %p108 = scmp.ne.s32.totalorder %s93, %s107
      %p109 = scmp.eq.s32.totalorder %s20, 0
      %p110 = por %p108, %p109
      %s112 = sadd.s32 %s111, 1
      %p115 = scmp.eq.s32.totalorder %s14, 1
      %p116 = scmp.ne.s32.totalorder %s111, %s113
      %p117 = scmp.eq.s32.totalorder %s14, 0
      %p118 = por %p116, %p117
      %p119 = scmp.ne.s32.totalorder %s111, %s113
      %p120 = scmp.eq.s32.totalorder %s19, 1
      %p121 = por %p119, %p120
      %p122 = scmp.ne.s32.totalorder %s113, %s114
      %p123 = scmp.eq.s32.totalorder %s19, 0
      %p124 = por %p122, %p123
      %p125 = scmp.ne.s32.totalorder %s113, %s114
      %p126 = scmp.eq.s32.totalorder %s20, 1
      %p127 = por %p125, %p126
      %p129 = scmp.ne.s32.totalorder %s114, %s128
      %p130 = scmp.eq.s32.totalorder %s20, 0
      %p131 = por %p129, %p130
      %s133 = sadd.s32 %s132, 1
      %p136 = scmp.eq.s32.totalorder %s14, 1
      %p137 = scmp.ne.s32.totalorder %s132, %s134
      %p138 = scmp.eq.s32.totalorder %s14, 0
      %p139 = por %p137, %p138
      %p140 = scmp.ne.s32.totalorder %s132, %s134
      %p141 = scmp.eq.s32.totalorder %s19, 1
      %p142 = por %p140, %p141
      %p143 = scmp.ne.s32.totalorder %s134, %s135
      %p144 = scmp.eq.s32.totalorder %s19, 0
      %p145 = por %p143, %p144
      %p146 = scmp.ne.s32.totalorder %s134, %s135
      %p147 = scmp.eq.s32.totalorder %s20, 1
      %p148 = por %p146, %p147
      %p150 = scmp.ne.s32.totalorder %s135, %s149
      %p151 = scmp.eq.s32.totalorder %s20, 0
      %p152 = por %p150, %p151
      %s153 = ssub.s32 %s14, %s21
      %p154 = scmp.eq.s32.totalorder %s153, 0
      %s156 = sadd.s32 %s155, 1
      %s157 = scalar_select %p154, %s155, %s156
      %p160 = pneg %p154
      %p161 = scmp.eq.s32.totalorder %s14, 1
      %p162 = por %p160, %p161
      %p163 = scmp.ne.s32.totalorder %s155, %s158
      %p164 = scmp.eq.s32.totalorder %s14, 0
      %p165 = por %p163, %p164
      %p166 = scmp.ne.s32.totalorder %s155, %s158
      %p167 = scmp.eq.s32.totalorder %s19, 1
      %p168 = por %p166, %p167
      %p169 = scmp.ne.s32.totalorder %s158, %s159
      %p170 = scmp.eq.s32.totalorder %s19, 0
      %p171 = por %p169, %p170
      %p172 = scmp.ne.s32.totalorder %s158, %s159
      %p173 = scmp.eq.s32.totalorder %s20, 1
      %p174 = por %p172, %p173
      %p176 = scmp.ne.s32.totalorder %s159, %s175
      %p177 = scmp.eq.s32.totalorder %s20, 0
      %p178 = por %p176, %p177
      %p179 = scmp.le.s32.totalorder 1, %s14
      %p180 = scmp.lt.s32.totalorder %s14, 3
      %p181 = pnand %p179, %p180
      %p182 = pneg %p181
      // Predicated region
      $region9: #{cbam_plus_forward.1} parent=5 // pred_check
        _
      $region10: #{cbam_plus_forward.1} parent=5 // pred_check_branch
        %184 = sbr.rel (%p181) target = $region12
      $region11: #{cbam_plus_forward.1} parent=5 // pred_region
        %s185 = ssub.s32 %s14, 1
        // Predicated region
        $region13: #{cbam_plus_forward.1} parent=11 // pred_check
          %p186 = pneg %p61
        $region14: #{cbam_plus_forward.1} parent=11 // pred_check_branch
          %188 = sbr.rel (%p186) target = $region16
        $region15: #{cbam_plus_forward.1} parent=11 // pred_region
          _
        $region16: #{cbam_plus_forward.1} parent=11 // pred_fallthru
          _
        // Predicated region
        $region17: #{cbam_plus_forward.1} parent=11 // pred_check
          %p189 = pneg %p82
        $region18: #{cbam_plus_forward.1} parent=11 // pred_check_branch
          %191 = sbr.rel (%p189) target = $region20
        $region19: #{cbam_plus_forward.1} parent=11 // pred_region
          _
        $region20: #{cbam_plus_forward.1} parent=11 // pred_fallthru
          _
        // Predicated region
        $region21: #{cbam_plus_forward.1} parent=11 // pred_check
          %p192 = pneg %p103
        $region22: #{cbam_plus_forward.1} parent=11 // pred_check_branch
          %194 = sbr.rel (%p192) target = $region24
        $region23: #{cbam_plus_forward.1} parent=11 // pred_region
          _
        $region24: #{cbam_plus_forward.1} parent=11 // pred_fallthru
          _
        // Predicated region
        $region25: #{cbam_plus_forward.1} parent=11 // pred_check
          %p195 = pneg %p124
        $region26: #{cbam_plus_forward.1} parent=11 // pred_check_branch
          %197 = sbr.rel (%p195) target = $region28
        $region27: #{cbam_plus_forward.1} parent=11 // pred_region
          %199 = vsyncadd [#allocation5], 0
          %s201 = sshll.u32 %s4, 4
          %s202 = int_to_ptr.vmem [resolvable:$true] %s201
          %204 = dma.vmem_to_smem %s202, 16, [#allocation4], [#allocation5]
        $region28: #{cbam_plus_forward.1} parent=11 // pred_fallthru
          _
        // Predicated region
        $region29: #{cbam_plus_forward.1} parent=11 // pred_check
          %p205 = pneg %p145
        $region30: #{cbam_plus_forward.1} parent=11 // pred_check_branch
          %207 = sbr.rel (%p205) target = $region32
        $region31: #{cbam_plus_forward.1} parent=11 // pred_region
          _
        $region32: #{cbam_plus_forward.1} parent=11 // pred_fallthru
          _
      $region12: #{cbam_plus_forward.1} parent=5 // pred_fallthru
        _
      %p208 = scmp.lt.s32.totalorder %s14, 2
      // Predicated region
      $region33: #{cbam_plus_forward.1} parent=5 // pred_check
        %p209 = pneg %p208
      $region34: #{cbam_plus_forward.1} parent=5 // pred_check_branch
        %211 = sbr.rel (%p209) target = $region36
      $region35: #{cbam_plus_forward.1} parent=5 // pred_region
        // Predicated region
        $region37: #{cbam_plus_forward.1} parent=35 // pred_check
          %p212 = pneg %p34
        $region38: #{cbam_plus_forward.1} parent=35 // pred_check_branch
          %214 = sbr.rel (%p212) target = $region40
        $region39: #{cbam_plus_forward.1} parent=35 // pred_region
          %p215 = scmp.lt.s32.totalorder %s14, 1
          %s216 = scalar_select %p215, %s14, 1
          %s217 = smul.addr %s216, 16
          %s218 = smul.addr %s217, 8
          %s219 = scalar_lea.vmem %s0, %s218
        $region40: #{cbam_plus_forward.1} parent=35 // pred_fallthru
          _
      $region36: #{cbam_plus_forward.1} parent=5 // pred_fallthru
        _
      %p220 = scmp.le.s32.totalorder 1, %s14
      %p221 = scmp.lt.s32.totalorder %s14, 3
      %p222 = pnand %p220, %p221
      %p223 = pneg %p222
      // Predicated region
      $region41: #{cbam_plus_forward.1} parent=5 // pred_check
        _
      $region42: #{cbam_plus_forward.1} parent=5 // pred_check_branch
        %225 = sbr.rel (%p222) target = $region44
      $region43: #{cbam_plus_forward.1} parent=5 // pred_region
        %s226 = ssub.s32 %s14, 1
        // Predicated region
        $region45: #{cbam_plus_forward.1} parent=43 // pred_check
          %p227 = pneg %p124
        $region46: #{cbam_plus_forward.1} parent=43 // pred_check_branch
          %229 = sbr.rel (%p227) target = $region48
        $region47: #{cbam_plus_forward.1} parent=43 // pred_region
          %231 = dma.done [#allocation5], 16
        $region48: #{cbam_plus_forward.1} parent=43 // pred_fallthru
          _
        %232 = sfence
        %p233 = scmp.lt.s32.totalorder %s19, 1
        %s234 = scalar_select %p233, %s19, 1
        %s235 = smul.addr %s234, 16
        %s236 = smul.addr %s235, 8
        %s237 = scalar_lea.vmem %s0, %s236
        %p238 = pneg %p40
        %p239 = pneg %p37
        %p240 = pneg %p61
        %p241 = pneg %p58
        %p242 = pneg %p82
        %p243 = pneg %p79
        %p244 = pneg %p103
        %p245 = pneg %p100
        %p246 = pneg %p124
        %p247 = pneg %p121
        %p248 = pneg %p145
        %p249 = pneg %p142
        %p250 = pneg %p171
        %p251 = pneg %p168
        %p252 = scmp.lt.s32.totalorder %s19, 1
        %s253 = scalar_select %p252, %s19, 1
        %s254 = smul.addr %s253, 16
        %s255 = smul.addr %s254, 8
        %s256 = scalar_lea.vmem %s6, %s255
        %p257 = scmp.lt.s32.totalorder %s19, 1
        %s258 = scalar_select %p257, %s19, 1
        %s259 = smul.addr %s258, 16
        %s260 = smul.addr %s259, 8
        %s261 = scalar_lea.vmem %s0, %s260
        %p262 = scmp.lt.s32.totalorder %s19, 1
        %s263 = scalar_select %p262, %s19, 1
        %s264 = smul.addr %s263, 16
        %s265 = smul.addr %s264, 8
        %s266 = scalar_lea.vmem %s6, %s265
        %v267 = vld [vmem:[%s261] sm:$0xff]
        %v268 = vld [vmem:[%s261 + $0x8] sm:$0xff]
        %v269 = vld [vmem:[%s261 + $0x10] sm:$0xff]
        %v270 = vld [vmem:[%s261 + $0x18] sm:$0xff]
        %v271 = vld [vmem:[%s261 + $0x20] sm:$0xff]
        %v272 = vld [vmem:[%s261 + $0x28] sm:$0xff]
        %v273 = vld [vmem:[%s261 + $0x30] sm:$0xff]
        %v274 = vld [vmem:[%s261 + $0x38] sm:$0xff]
        %v275 = vld [vmem:[%s261 + $0x40] sm:$0xff]
        %v276 = vld [vmem:[%s261 + $0x48] sm:$0xff]
        %v277 = vld [vmem:[%s261 + $0x50] sm:$0xff]
        %v278 = vld [vmem:[%s261 + $0x58] sm:$0xff]
        %v279 = vld [vmem:[%s261 + $0x60] sm:$0xff]
        %v280 = vld [vmem:[%s261 + $0x68] sm:$0xff]
        %v281 = vld [vmem:[%s261 + $0x70] sm:$0xff]
        %v282 = vld [vmem:[%s261 + $0x78] sm:$0xff]
        %v283 = vadd.f32 %v267, %v268
        %284 = vadd.xlane.f32.xlu0 %v283
        %v285 = vpop.xlane.xlu0 %284
        %v286 = vadd.f32 %v269, %v270
        %287 = vadd.xlane.f32.xlu0 %v286
        %v288 = vpop.xlane.xlu0 %287
        %v289 = vadd.f32 %v271, %v272
        %290 = vadd.xlane.f32.xlu0 %v289
        %v291 = vpop.xlane.xlu0 %290
        %v292 = vadd.f32 %v273, %v274
        %293 = vadd.xlane.f32.xlu0 %v292
        %v294 = vpop.xlane.xlu0 %293
        %v295 = vadd.f32 %v275, %v276
        %296 = vadd.xlane.f32.xlu0 %v295
        %v297 = vpop.xlane.xlu0 %296
        %v298 = vadd.f32 %v277, %v278
        %299 = vadd.xlane.f32.xlu0 %v298
        %v300 = vpop.xlane.xlu0 %299
        %v301 = vadd.f32 %v279, %v280
        %302 = vadd.xlane.f32.xlu0 %v301
        %v303 = vpop.xlane.xlu0 %302
        %v304 = vadd.f32 %v281, %v282
        %305 = vadd.xlane.f32.xlu0 %v304
        %v306 = vpop.xlane.xlu0 %305
        %v307 = vrcp.pop 256.0
        %v308 = vmul.f32 256.0, %v307
        %v309 = vsub.f32 1.0, %v308
        %v310 = vmul.f32 %v307, %v309
        %v311 = vadd.f32 %v307, %v310
        %vm312 = vweird.f32 %v307
        %v313 = vsel %vm312, %v307, %v311
        %v314 = vmul.f32 %v285, %v313
        %v315 = vmul.f32 %v288, %v313
        %v316 = vmul.f32 %v291, %v313
        %v317 = vmul.f32 %v294, %v313
        %v318 = vmul.f32 %v297, %v313
        %v319 = vmul.f32 %v300, %v313
        %v320 = vmul.f32 %v303, %v313
        %v321 = vmul.f32 %v306, %v313
        %v322 = vmax.f32 %v267, %v268
        %323 = vmax.xlane.f32.xlu0 %v322
        %v324 = vpop.xlane.xlu0 %323
        %v325 = vmax.f32 %v269, %v270
        %326 = vmax.xlane.f32.xlu0 %v325
        %v327 = vpop.xlane.xlu0 %326
        %v328 = vmax.f32 %v271, %v272
        %329 = vmax.xlane.f32.xlu0 %v328
        %v330 = vpop.xlane.xlu0 %329
        %v331 = vmax.f32 %v273, %v274
        %332 = vmax.xlane.f32.xlu0 %v331
        %v333 = vpop.xlane.xlu0 %332
        %v334 = vmax.f32 %v275, %v276
        %335 = vmax.xlane.f32.xlu0 %v334
        %v336 = vpop.xlane.xlu0 %335
        %v337 = vmax.f32 %v277, %v278
        %338 = vmax.xlane.f32.xlu0 %v337
        %v339 = vpop.xlane.xlu0 %338
        %v340 = vmax.f32 %v279, %v280
        %341 = vmax.xlane.f32.xlu0 %v340
        %v342 = vpop.xlane.xlu0 %341
        %v343 = vmax.f32 %v281, %v282
        %344 = vmax.xlane.f32.xlu0 %v343
        %v345 = vpop.xlane.xlu0 %344
        %v346 = vld [vmem:[%s1] sm:$0xff]
        %v347 = vld [vmem:[%s1 + $0x8] sm:$0xff]
        %v348 = vld [vmem:[%s1 + $0x10] sm:$0xff]
        %v349 = vld [vmem:[%s1 + $0x18] sm:$0xff]
        %v350 = vld [vmem:[%s1 + $0x20] sm:$0xff]
        %v351 = vld [vmem:[%s1 + $0x28] sm:$0xff]
        %v352 = vld [vmem:[%s1 + $0x30] sm:$0xff]
        %v353 = vld [vmem:[%s1 + $0x38] sm:$0xff]
        %v354 = vmul.f32 %v346, %v314
        %v355 = vmul.f32 %v347, %v315
        %v356 = vmul.f32 %v348, %v316
        %v357 = vmul.f32 %v349, %v317
        %v358 = vmul.f32 %v350, %v318
        %v359 = vmul.f32 %v351, %v319
        %v360 = vmul.f32 %v352, %v320
        %v361 = vmul.f32 %v353, %v321
        %vm362 = vcmask 31744
        %v363 = vsel %vm362, %v354, 0.0
        %v364 = vsel %vm362, %v355, 0.0
        %v365 = vadd.f32 %v363, %v364
        %v366 = vsel %vm362, %v356, 0.0
        %v367 = vadd.f32 %v365, %v366
        %v368 = vsel %vm362, %v357, 0.0
        %v369 = vadd.f32 %v367, %v368
        %v370 = vsel %vm362, %v358, 0.0
        %v371 = vadd.f32 %v369, %v370
        %v372 = vsel %vm362, %v359, 0.0
        %v373 = vadd.f32 %v371, %v372
        %v374 = vsel %vm362, %v360, 0.0
        %v375 = vadd.f32 %v373, %v374
        %v376 = vsel %vm362, %v361, 0.0
        %v377 = vadd.f32 %v375, %v376
        %v378 = vrot.slane %v377, 4
        %v379 = vadd.f32 %v377, %v378
        %v380 = vrot.slane %v379, 2
        %v381 = vadd.f32 %v379, %v380
        %v382 = vrot.slane %v381, 1
        %v383 = vadd.f32 %v381, %v382
        %v384 = vmax.f32 %v383, 0.0
        %v385 = vmul.f32 %v346, %v324
        %v386 = vmul.f32 %v347, %v327
        %v387 = vmul.f32 %v348, %v330
        %v388 = vmul.f32 %v349, %v333
        %v389 = vmul.f32 %v350, %v336
        %v390 = vmul.f32 %v351, %v339
        %v391 = vmul.f32 %v352, %v342
        %v392 = vmul.f32 %v353, %v345
        %v393 = vsel %vm362, %v385, 0.0
        %v394 = vsel %vm362, %v386, 0.0
        %v395 = vadd.f32 %v393, %v394
        %v396 = vsel %vm362, %v387, 0.0
        %v397 = vadd.f32 %v395, %v396
        %v398 = vsel %vm362, %v388, 0.0
        %v399 = vadd.f32 %v397, %v398
        %v400 = vsel %vm362, %v389, 0.0
        %v401 = vadd.f32 %v399, %v400
        %v402 = vsel %vm362, %v390, 0.0
        %v403 = vadd.f32 %v401, %v402
        %v404 = vsel %vm362, %v391, 0.0
        %v405 = vadd.f32 %v403, %v404
        %v406 = vsel %vm362, %v392, 0.0
        %v407 = vadd.f32 %v405, %v406
        %v408 = vrot.slane %v407, 4
        %v409 = vadd.f32 %v407, %v408
        %v410 = vrot.slane %v409, 2
        %v411 = vadd.f32 %v409, %v410
        %v412 = vrot.slane %v411, 1
        %v413 = vadd.f32 %v411, %v412
        %v414 = vmax.f32 %v413, 0.0
        %v415 = vadd.f32 %v384, %v414
        %v416 = vld [vmem:[%s2] sm:$0xff]
        %v417 = vld [vmem:[%s2 + $0x8] sm:$0xff]
        %v418 = vld [vmem:[%s2 + $0x10] sm:$0xff]
        %v419 = vld [vmem:[%s2 + $0x18] sm:$0xff]
        %v420 = vld [vmem:[%s2 + $0x20] sm:$0xff]
        %v421 = vld [vmem:[%s2 + $0x28] sm:$0xff]
        %v422 = vld [vmem:[%s2 + $0x30] sm:$0xff]
        %v423 = vld [vmem:[%s2 + $0x38] sm:$0xff]
        %v424 = vmul.f32 %v416, %v415
        %v425 = vmul.f32 %v417, %v415
        %v426 = vmul.f32 %v418, %v415
        %v427 = vmul.f32 %v419, %v415
        %v428 = vmul.f32 %v420, %v415
        %v429 = vmul.f32 %v421, %v415
        %v430 = vmul.f32 %v422, %v415
        %v431 = vmul.f32 %v423, %v415
        %v432 = vsel %vm362, %v424, 0.0
        %433 = vadd.xlane.f32.xlu0 %v432
        %v434 = vpop.xlane.xlu0 %433
        %v435 = vsel %vm362, %v425, 0.0
        %436 = vadd.xlane.f32.xlu0 %v435
        %v437 = vpop.xlane.xlu0 %436
        %v438 = vsel %vm362, %v426, 0.0
        %439 = vadd.xlane.f32.xlu0 %v438
        %v440 = vpop.xlane.xlu0 %439
        %v441 = vsel %vm362, %v427, 0.0
        %442 = vadd.xlane.f32.xlu0 %v441
        %v443 = vpop.xlane.xlu0 %442
        %v444 = vsel %vm362, %v428, 0.0
        %445 = vadd.xlane.f32.xlu0 %v444
        %v446 = vpop.xlane.xlu0 %445
        %v447 = vsel %vm362, %v429, 0.0
        %448 = vadd.xlane.f32.xlu0 %v447
        %v449 = vpop.xlane.xlu0 %448
        %v450 = vsel %vm362, %v430, 0.0
        %451 = vadd.xlane.f32.xlu0 %v450
        %v452 = vpop.xlane.xlu0 %451
        %v453 = vsel %vm362, %v431, 0.0
        %454 = vadd.xlane.f32.xlu0 %v453
        %v455 = vpop.xlane.xlu0 %454
        %v456 = vand.u32 2147483647, %v434
        %v457 = vand.u32 2147483647, %v437
        %v458 = vand.u32 2147483647, %v440
        %v459 = vand.u32 2147483647, %v443
        %v460 = vand.u32 2147483647, %v446
        %v461 = vand.u32 2147483647, %v449
        %v462 = vand.u32 2147483647, %v452
        %v463 = vand.u32 2147483647, %v455
        %v464 = vsub.f32 0.0, %v456
        %v465 = vsub.f32 0.0, %v457
        %v466 = vsub.f32 0.0, %v458
        %v467 = vsub.f32 0.0, %v459
        %v468 = vsub.f32 0.0, %v460
        %v469 = vsub.f32 0.0, %v461
        %v470 = vsub.f32 0.0, %v462
        %v471 = vsub.f32 0.0, %v463
        %v472 = vmul.f32 %v464, 1.442695
        %v473 = vpow.pop %v472
        %v474 = vmul.f32 %v465, 1.442695
        %v475 = vpow.pop %v474
        %v476 = vmul.f32 %v466, 1.442695
        %v477 = vpow.pop %v476
        %v478 = vmul.f32 %v467, 1.442695
        %v479 = vpow.pop %v478
        %v480 = vmul.f32 %v468, 1.442695
        %v481 = vpow.pop %v480
        %v482 = vmul.f32 %v469, 1.442695
        %v483 = vpow.pop %v482
        %v484 = vmul.f32 %v470, 1.442695
        %v485 = vpow.pop %v484
        %v486 = vmul.f32 %v471, 1.442695
        %v487 = vpow.pop %v486
        %v488 = vadd.f32 %v473, 1.0
        %v489 = vadd.f32 %v475, 1.0
        %v490 = vadd.f32 %v477, 1.0
        %v491 = vadd.f32 %v479, 1.0
        %v492 = vadd.f32 %v481, 1.0
        %v493 = vadd.f32 %v483, 1.0
        %v494 = vadd.f32 %v485, 1.0
        %v495 = vadd.f32 %v487, 1.0
        %v496 = vrcp.pop %v488
        %v497 = vmul.f32 %v488, %v496
        %v498 = vsub.f32 1.0, %v497
        %v499 = vmul.f32 %v496, %v498
        %v500 = vadd.f32 %v496, %v499
        %vm501 = vweird.f32 %v488
        %vm502 = vweird.f32 %v496
        %vm503 = vmor %vm501, %vm502
        %v504 = vsel %vm503, %v496, %v500
        %v505 = vand.u32 2147483647, %v488
        %vm506 = vcmp.eq.f32.partialorder %v505, 8.507059e+37
        %v507 = vand.u32 %v488, 2147483648
        %v508 = vor.u32 1.1754944e-38, %v507
        %v509 = vsel %vm506, %v508, %v504
        %v510 = vmul.f32 1.0, %v509
        %v511 = vrcp.pop %v489
        %v512 = vmul.f32 %v489, %v511
        %v513 = vsub.f32 1.0, %v512
        %v514 = vmul.f32 %v511, %v513
        %v515 = vadd.f32 %v511, %v514
        %vm516 = vweird.f32 %v489
        %vm517 = vweird.f32 %v511
        %vm518 = vmor %vm516, %vm517
        %v519 = vsel %vm518, %v511, %v515
        %v520 = vand.u32 2147483647, %v489
        %vm521 = vcmp.eq.f32.partialorder %v520, 8.507059e+37
        %v522 = vand.u32 %v489, 2147483648
        %v523 = vor.u32 1.1754944e-38, %v522
        %v524 = vsel %vm521, %v523, %v519
        %v525 = vmul.f32 1.0, %v524
        %v526 = vrcp.pop %v490
        %v527 = vmul.f32 %v490, %v526
        %v528 = vsub.f32 1.0, %v527
        %v529 = vmul.f32 %v526, %v528
        %v530 = vadd.f32 %v526, %v529
        %vm531 = vweird.f32 %v490
        %vm532 = vweird.f32 %v526
        %vm533 = vmor %vm531, %vm532
        %v534 = vsel %vm533, %v526, %v530
        %v535 = vand.u32 2147483647, %v490
        %vm536 = vcmp.eq.f32.partialorder %v535, 8.507059e+37
        %v537 = vand.u32 %v490, 2147483648
        %v538 = vor.u32 1.1754944e-38, %v537
        %v539 = vsel %vm536, %v538, %v534
        %v540 = vmul.f32 1.0, %v539
        %v541 = vrcp.pop %v491
        %v542 = vmul.f32 %v491, %v541
        %v543 = vsub.f32 1.0, %v542
        %v544 = vmul.f32 %v541, %v543
        %v545 = vadd.f32 %v541, %v544
        %vm546 = vweird.f32 %v491
        %vm547 = vweird.f32 %v541
        %vm548 = vmor %vm546, %vm547
        %v549 = vsel %vm548, %v541, %v545
        %v550 = vand.u32 2147483647, %v491
        %vm551 = vcmp.eq.f32.partialorder %v550, 8.507059e+37
        %v552 = vand.u32 %v491, 2147483648
        %v553 = vor.u32 1.1754944e-38, %v552
        %v554 = vsel %vm551, %v553, %v549
        %v555 = vmul.f32 1.0, %v554
        %v556 = vrcp.pop %v492
        %v557 = vmul.f32 %v492, %v556
        %v558 = vsub.f32 1.0, %v557
        %v559 = vmul.f32 %v556, %v558
        %v560 = vadd.f32 %v556, %v559
        %vm561 = vweird.f32 %v492
        %vm562 = vweird.f32 %v556
        %vm563 = vmor %vm561, %vm562
        %v564 = vsel %vm563, %v556, %v560
        %v565 = vand.u32 2147483647, %v492
        %vm566 = vcmp.eq.f32.partialorder %v565, 8.507059e+37
        %v567 = vand.u32 %v492, 2147483648
        %v568 = vor.u32 1.1754944e-38, %v567
        %v569 = vsel %vm566, %v568, %v564
        %v570 = vmul.f32 1.0, %v569
        %v571 = vrcp.pop %v493
        %v572 = vmul.f32 %v493, %v571
        %v573 = vsub.f32 1.0, %v572
        %v574 = vmul.f32 %v571, %v573
        %v575 = vadd.f32 %v571, %v574
        %vm576 = vweird.f32 %v493
        %vm577 = vweird.f32 %v571
        %vm578 = vmor %vm576, %vm577
        %v579 = vsel %vm578, %v571, %v575
        %v580 = vand.u32 2147483647, %v493
        %vm581 = vcmp.eq.f32.partialorder %v580, 8.507059e+37
        %v582 = vand.u32 %v493, 2147483648
        %v583 = vor.u32 1.1754944e-38, %v582
        %v584 = vsel %vm581, %v583, %v579
        %v585 = vmul.f32 1.0, %v584
        %v586 = vrcp.pop %v494
        %v587 = vmul.f32 %v494, %v586
        %v588 = vsub.f32 1.0, %v587
        %v589 = vmul.f32 %v586, %v588
        %v590 = vadd.f32 %v586, %v589
        %vm591 = vweird.f32 %v494
        %vm592 = vweird.f32 %v586
        %vm593 = vmor %vm591, %vm592
        %v594 = vsel %vm593, %v586, %v590
        %v595 = vand.u32 2147483647, %v494
        %vm596 = vcmp.eq.f32.partialorder %v595, 8.507059e+37
        %v597 = vand.u32 %v494, 2147483648
        %v598 = vor.u32 1.1754944e-38, %v597
        %v599 = vsel %vm596, %v598, %v594
        %v600 = vmul.f32 1.0, %v599
        %v601 = vrcp.pop %v495
        %v602 = vmul.f32 %v495, %v601
        %v603 = vsub.f32 1.0, %v602
        %v604 = vmul.f32 %v601, %v603
        %v605 = vadd.f32 %v601, %v604
        %vm606 = vweird.f32 %v495
        %vm607 = vweird.f32 %v601
        %vm608 = vmor %vm606, %vm607
        %v609 = vsel %vm608, %v601, %v605
        %v610 = vand.u32 2147483647, %v495
        %vm611 = vcmp.eq.f32.partialorder %v610, 8.507059e+37
        %v612 = vand.u32 %v495, 2147483648
        %v613 = vor.u32 1.1754944e-38, %v612
        %v614 = vsel %vm611, %v613, %v609
        %v615 = vmul.f32 1.0, %v614
        %vm616 = vcmp.ge.f32.partialorder %v434, 0.0
        %vm617 = vcmp.ge.f32.partialorder %v437, 0.0
        %vm618 = vcmp.ge.f32.partialorder %v440, 0.0
        %vm619 = vcmp.ge.f32.partialorder %v443, 0.0
        %vm620 = vcmp.ge.f32.partialorder %v446, 0.0
        %vm621 = vcmp.ge.f32.partialorder %v449, 0.0
        %vm622 = vcmp.ge.f32.partialorder %v452, 0.0
        %vm623 = vcmp.ge.f32.partialorder %v455, 0.0
        %v624 = vsub.f32 1.0, %v510
        %v625 = vsub.f32 1.0, %v525
        %v626 = vsub.f32 1.0, %v540
        %v627 = vsub.f32 1.0, %v555
        %v628 = vsub.f32 1.0, %v570
        %v629 = vsub.f32 1.0, %v585
        %v630 = vsub.f32 1.0, %v600
        %v631 = vsub.f32 1.0, %v615
        %v632 = vsel %vm616, %v510, %v624
        %v633 = vsel %vm617, %v525, %v625
        %v634 = vsel %vm618, %v540, %v626
        %v635 = vsel %vm619, %v555, %v627
        %v636 = vsel %vm620, %v570, %v628
        %v637 = vsel %vm621, %v585, %v629
        %v638 = vsel %vm622, %v600, %v630
        %v639 = vsel %vm623, %v615, %v631
        %v640 = vmul.f32 %v267, %v632
        %v641 = vmul.f32 %v268, %v632
        %v642 = vmul.f32 %v269, %v633
        %v643 = vmul.f32 %v270, %v633
        %v644 = vmul.f32 %v271, %v634
        %v645 = vmul.f32 %v272, %v634
        %v646 = vmul.f32 %v273, %v635
        %v647 = vmul.f32 %v274, %v635
        %v648 = vmul.f32 %v275, %v636
        %v649 = vmul.f32 %v276, %v636
        %v650 = vmul.f32 %v277, %v637
        %v651 = vmul.f32 %v278, %v637
        %v652 = vmul.f32 %v279, %v638
        %v653 = vmul.f32 %v280, %v638
        %v654 = vmul.f32 %v281, %v639
        %v655 = vmul.f32 %v282, %v639
        %v656 = vadd.f32 %v640, %v642
        %v657 = vadd.f32 %v656, %v644
        %v658 = vadd.f32 %v657, %v646
        %v659 = vadd.f32 %v658, %v648
        %v660 = vadd.f32 %v659, %v650
        %v661 = vadd.f32 %v660, %v652
        %v662 = vadd.f32 %v661, %v654
        %v663 = vrot.slane %v662, 4
        %v664 = vadd.f32 %v662, %v663
        %v665 = vrot.slane %v664, 2
        %v666 = vadd.f32 %v664, %v665
        %v667 = vrot.slane %v666, 1
        %v668 = vadd.f32 %v666, %v667
        %v669 = vadd.f32 %v641, %v643
        %v670 = vadd.f32 %v669, %v645
        %v671 = vadd.f32 %v670, %v647
        %v672 = vadd.f32 %v671, %v649
        %v673 = vadd.f32 %v672, %v651
        %v674 = vadd.f32 %v673, %v653
        %v675 = vadd.f32 %v674, %v655
        %v676 = vrot.slane %v675, 4
        %v677 = vadd.f32 %v675, %v676
        %v678 = vrot.slane %v677, 2
        %v679 = vadd.f32 %v677, %v678
        %v680 = vrot.slane %v679, 1
        %v681 = vadd.f32 %v679, %v680
        %v682 = vrcp.pop 64.0
        %v683 = vmul.f32 64.0, %v682
        %v684 = vsub.f32 1.0, %v683
        %v685 = vmul.f32 %v682, %v684
        %v686 = vadd.f32 %v682, %v685
        %vm687 = vweird.f32 %v682
        %v688 = vsel %vm687, %v682, %v686
        %v689 = vmul.f32 %v668, %v688
        %v690 = vmul.f32 %v681, %v688
        %v691 = vmax.f32 %v640, %v644
        %v692 = vmax.f32 %v642, %v646
        %v693 = vmax.f32 %v691, %v648
        %v694 = vmax.f32 %v692, %v650
        %v695 = vmax.f32 %v693, %v652
        %v696 = vmax.f32 %v694, %v654
        %v697 = vmax.f32 %v695, %v696
        %v698 = vrot.slane %v697, 4
        %v699 = vmax.f32 %v697, %v698
        %v700 = vrot.slane %v699, 2
        %v701 = vmax.f32 %v699, %v700
        %v702 = vrot.slane %v701, 1
        %v703 = vmax.f32 %v701, %v702
        %v704 = vmax.f32 %v641, %v645
        %v705 = vmax.f32 %v643, %v647
        %v706 = vmax.f32 %v704, %v649
        %v707 = vmax.f32 %v705, %v651
        %v708 = vmax.f32 %v706, %v653
        %v709 = vmax.f32 %v707, %v655
        %v710 = vmax.f32 %v708, %v709
        %v711 = vrot.slane %v710, 4
        %v712 = vmax.f32 %v710, %v711
        %v713 = vrot.slane %v712, 2
        %v714 = vmax.f32 %v712, %v713
        %v715 = vrot.slane %v714, 1
        %v716 = vmax.f32 %v714, %v715
        %717 = vst [vmem:[#allocation2] sm:$0x3] 0.0
        %718 = vst [vmem:[#allocation2 + $0x6] sm:$0x3] 0.0
        %vm719 = vcmask 1040384
        %v720 = vsel %vm719, %v689, %v703
        %v721 = vsel %vm719, %v690, %v716
        %v724 = vrot.slane %v721, 6
        %vm725 = vcmask 1041408
        %v726 = vsel %vm725, %v720, %v724
        %728 = vst [vmem:[#allocation2 + $0x2] sm:$0xf] %v726
        %v729 = vlaneseq
        %v730 = vshrl.u32 %v729, 7
        %vm731 = vcmp.eq.s32.totalorder %v730, 0
        %v732 = vld [vmem:[%s3] ss:$8 sm:$0x3]
        %s733 = sld [smem:[#allocation4]]
        %s734 = sld [smem:[#allocation4 + $0x1]]
        %v735 = vstv %s733
        %v736 = vstv %s734
        %v737 = vsel %vm731, %v735, %v736
        %v738 = vld [vmem:[#allocation2] sm:$0x3f]
        %740 = vst [vmem:[#allocation1] ss:$4 sm:$0xff] %v738
        %v741 = vld.sshfl [vmem:[#allocation1] sm:$0xff pattern:$0x73625140]
        %v742 = vld.sshfl [vmem:[#allocation1 + $0x8] sm:$0xff pattern:$0x73625140]
        %v743 = vld.sshfl [vmem:[#allocation1 + $0x10] sm:$0xff pattern:$0x73625140]
        %744 = vrot.lane.b32.xlu0 %v741, 51
        %v745 = vpop.permute.xlu0 %744
        %746 = vrot.lane.b32.xlu0 %v742, 51
        %v747 = vpop.permute.xlu0 %746
        %748 = vrot.lane.b32.xlu0 %v743, 51
        %v749 = vpop.permute.xlu0 %748
        %vm750 = vcmask 416768
        %v751 = vsel %vm750, %v745, %v747
        %v752 = vsel %vm750, %v747, %v749
        %v755 = vmul.f32 %v737, %v751
        %v756 = vmul.f32 %v737, %v752
        %v757 = vadd.f32 %v755, 0.0
        %v758 = vadd.f32 %v756, 0.0
        %s759 = sld [smem:[#allocation4 + $0xe]]
        %s760 = sld [smem:[#allocation4 + $0xf]]
        %v761 = vstv %s759
        %v762 = vstv %s760
        %v763 = vsel %vm731, %v761, %v762
        %v764 = vld [vmem:[#allocation2] sm:$0x3f]
        %766 = vst [vmem:[#allocation1] ss:$4 sm:$0xff] %v764
        %v767 = vld.sshfl [vmem:[#allocation1] sm:$0xff pattern:$0x73625140]
        %v768 = vld.sshfl [vmem:[#allocation1 + $0x8] sm:$0xff pattern:$0x73625140]
        %v769 = vld.sshfl [vmem:[#allocation1 + $0x10] sm:$0xff pattern:$0x73625140]
        %770 = vrot.lane.b32.xlu0 %v767, 35
        %v771 = vpop.permute.xlu0 %770
        %772 = vrot.lane.b32.xlu0 %v768, 35
        %v773 = vpop.permute.xlu0 %772
        %774 = vrot.lane.b32.xlu0 %v769, 35
        %v775 = vpop.permute.xlu0 %774
        %vm776 = vcmask 285696
        %v777 = vsel %vm776, %v771, %v773
        %v778 = vsel %vm776, %v773, %v775
        %v781 = vmul.f32 %v763, %v777
        %v782 = vmul.f32 %v763, %v778
        %v783 = vadd.f32 %v757, %v781
        %v784 = vadd.f32 %v758, %v782
        %s785 = sld [smem:[#allocation4 + $0x1c]]
        %s786 = sld [smem:[#allocation4 + $0x1d]]
        %v787 = vstv %s785
        %v788 = vstv %s786
        %v789 = vsel %vm731, %v787, %v788
        %v790 = vld [vmem:[#allocation2] sm:$0x3f]
        %792 = vst [vmem:[#allocation1] ss:$4 sm:$0xff] %v790
        %v793 = vld.sshfl [vmem:[#allocation1] sm:$0xff pattern:$0x73625140]
        %v794 = vld.sshfl [vmem:[#allocation1 + $0x8] sm:$0xff pattern:$0x73625140]
        %v795 = vld.sshfl [vmem:[#allocation1 + $0x10] sm:$0xff pattern:$0x73625140]
        %796 = vrot.lane.b32.xlu0 %v793, 19
        %v797 = vpop.permute.xlu0 %796
        %798 = vrot.lane.b32.xlu0 %v794, 19
        %v799 = vpop.permute.xlu0 %798
        %800 = vrot.lane.b32.xlu0 %v795, 19
        %v801 = vpop.permute.xlu0 %800
        %vm802 = vcmask 154624
        %v803 = vsel %vm802, %v797, %v799
        %v804 = vsel %vm802, %v799, %v801
        %v807 = vmul.f32 %v789, %v803
        %v808 = vmul.f32 %v789, %v804
        %v809 = vadd.f32 %v783, %v807
        %v810 = vadd.f32 %v784, %v808
        %s811 = sld [smem:[#allocation4 + $0x2a]]
        %s812 = sld [smem:[#allocation4 + $0x2b]]
        %v813 = vstv %s811
        %v814 = vstv %s812
        %v815 = vsel %vm731, %v813, %v814
        %v816 = vld [vmem:[#allocation2] sm:$0x3f]
        %818 = vst [vmem:[#allocation1] ss:$4 sm:$0xff] %v816
        %v819 = vld.sshfl [vmem:[#allocation1] sm:$0xff pattern:$0x73625140]
        %v820 = vld.sshfl [vmem:[#allocation1 + $0x8] sm:$0xff pattern:$0x73625140]
        %v821 = vld.sshfl [vmem:[#allocation1 + $0x10] sm:$0xff pattern:$0x73625140]
        %822 = vrot.lane.b32.xlu0 %v819, 3
        %v823 = vpop.permute.xlu0 %822
        %824 = vrot.lane.b32.xlu0 %v820, 3
        %v825 = vpop.permute.xlu0 %824
        %826 = vrot.lane.b32.xlu0 %v821, 3
        %v827 = vpop.permute.xlu0 %826
        %vm828 = vcmask 23552
        %v829 = vsel %vm828, %v823, %v825
        %v830 = vsel %vm828, %v825, %v827
        %v833 = vmul.f32 %v815, %v829
        %v834 = vmul.f32 %v815, %v830
        %v835 = vadd.f32 %v809, %v833
        %v836 = vadd.f32 %v810, %v834
        %s837 = sld [smem:[#allocation4 + $0x38]]
        %s838 = sld [smem:[#allocation4 + $0x39]]
        %v839 = vstv %s837
        %v840 = vstv %s838
        %v841 = vsel %vm731, %v839, %v840
        %v842 = vld [vmem:[#allocation2 + $0x2] sm:$0x3f]
        %844 = vst [vmem:[#allocation1] ss:$4 sm:$0xff] %v842
        %v845 = vld.sshfl [vmem:[#allocation1] sm:$0xff pattern:$0x73625140]
        %v846 = vld.sshfl [vmem:[#allocation1 + $0x8] sm:$0xff pattern:$0x73625140]
        %v847 = vld.sshfl [vmem:[#allocation1 + $0x10] sm:$0xff pattern:$0x73625140]
        %848 = vrot.lane.b32.xlu0 %v845, 115
        %v849 = vpop.permute.xlu0 %848
        %850 = vrot.lane.b32.xlu0 %v846, 115
        %v851 = vpop.permute.xlu0 %850
        %852 = vrot.lane.b32.xlu0 %v847, 115
        %v853 = vpop.permute.xlu0 %852
        %vm854 = vcmask 941056
        %v855 = vsel %vm854, %v849, %v851
        %v856 = vsel %vm854, %v851, %v853
        %v859 = vmul.f32 %v841, %v855
        %v860 = vmul.f32 %v841, %v856
        %v861 = vadd.f32 %v835, %v859
        %v862 = vadd.f32 %v836, %v860
        %s863 = sld [smem:[#allocation4 + $0x46]]
        %s864 = sld [smem:[#allocation4 + $0x47]]
        %v865 = vstv %s863
        %v866 = vstv %s864
        %v867 = vsel %vm731, %v865, %v866
        %v868 = vld [vmem:[#allocation2 + $0x2] sm:$0x3f]
        %870 = vst [vmem:[#allocation1] ss:$4 sm:$0xff] %v868
        %v871 = vld.sshfl [vmem:[#allocation1] sm:$0xff pattern:$0x73625140]
        %v872 = vld.sshfl [vmem:[#allocation1 + $0x8] sm:$0xff pattern:$0x73625140]
        %v873 = vld.sshfl [vmem:[#allocation1 + $0x10] sm:$0xff pattern:$0x73625140]
        %874 = vrot.lane.b32.xlu0 %v871, 99
        %v875 = vpop.permute.xlu0 %874
        %876 = vrot.lane.b32.xlu0 %v872, 99
        %v877 = vpop.permute.xlu0 %876
        %878 = vrot.lane.b32.xlu0 %v873, 99
        %v879 = vpop.permute.xlu0 %878
        %vm880 = vcmask 809984
        %v881 = vsel %vm880, %v875, %v877
        %v882 = vsel %vm880, %v877, %v879
        %v885 = vmul.f32 %v867, %v881
        %v886 = vmul.f32 %v867, %v882
        %v887 = vadd.f32 %v861, %v885
        %v888 = vadd.f32 %v862, %v886
        %s889 = sld [smem:[#allocation4 + $0x54]]
        %s890 = sld [smem:[#allocation4 + $0x55]]
        %v891 = vstv %s889
        %v892 = vstv %s890
        %v893 = vsel %vm731, %v891, %v892
        %v894 = vld [vmem:[#allocation2 + $0x2] sm:$0x3f]
        %896 = vst [vmem:[#allocation1] ss:$4 sm:$0xff] %v894
        %v897 = vld.sshfl [vmem:[#allocation1] sm:$0xff pattern:$0x73625140]
        %v898 = vld.sshfl [vmem:[#allocation1 + $0x8] sm:$0xff pattern:$0x73625140]
        %v899 = vld.sshfl [vmem:[#allocation1 + $0x10] sm:$0xff pattern:$0x73625140]
        %900 = vrot.lane.b32.xlu0 %v897, 83
        %v901 = vpop.permute.xlu0 %900
        %902 = vrot.lane.b32.xlu0 %v898, 83
        %v903 = vpop.permute.xlu0 %902
        %904 = vrot.lane.b32.xlu0 %v899, 83
        %v905 = vpop.permute.xlu0 %904
        %vm906 = vcmask 678912
        %v907 = vsel %vm906, %v901, %v903
        %v908 = vsel %vm906, %v903, %v905
        %v911 = vmul.f32 %v893, %v907
        %v912 = vmul.f32 %v893, %v908
        %v913 = vadd.f32 %v887, %v911
        %v914 = vadd.f32 %v888, %v912
        %v916 = vperm.slane %v732, 0
        %v917 = vperm.slane %v732, 1
        %v920 = vmul.f32 %v916, %v913
        %v921 = vmul.f32 %v917, %v914
        %v922 = vadd.f32 %v920, 0.0
        %v923 = vadd.f32 %v921, 0.0
        %s924 = scalar_lea.vmem %s3, 1
        %v925 = vld [vmem:[%s924] ss:$8 sm:$0x3]
        %s926 = sld [smem:[#allocation4 + $0x2]]
        %s927 = sld [smem:[#allocation4 + $0x3]]
        %v928 = vstv %s926
        %v929 = vstv %s927
        %v930 = vsel %vm731, %v928, %v929
        %v931 = vld [vmem:[#allocation2] sm:$0x3f]
        %933 = vst [vmem:[#allocation1] ss:$4 sm:$0xff] %v931
        %v934 = vld.sshfl [vmem:[#allocation1] sm:$0xff pattern:$0x73625140]
        %v935 = vld.sshfl [vmem:[#allocation1 + $0x8] sm:$0xff pattern:$0x73625140]
        %v936 = vld.sshfl [vmem:[#allocation1 + $0x10] sm:$0xff pattern:$0x73625140]
        %937 = vrot.lane.b32.xlu0 %v934, 50
        %v938 = vpop.permute.xlu0 %937
        %939 = vrot.lane.b32.xlu0 %v935, 50
        %v940 = vpop.permute.xlu0 %939
        %941 = vrot.lane.b32.xlu0 %v936, 50
        %v942 = vpop.permute.xlu0 %941
        %vm943 = vcmask 408576
        %v944 = vsel %vm943, %v938, %v940
        %v945 = vsel %vm943, %v940, %v942
        %v948 = vmul.f32 %v930, %v944
        %v949 = vmul.f32 %v930, %v945
        %v950 = vadd.f32 %v948, 0.0
        %v951 = vadd.f32 %v949, 0.0
        %s952 = sld [smem:[#allocation4 + $0x10]]
        %s953 = sld [smem:[#allocation4 + $0x11]]
        %v954 = vstv %s952
        %v955 = vstv %s953
        %v956 = vsel %vm731, %v954, %v955
        %v957 = vld [vmem:[#allocation2] sm:$0x3f]
        %959 = vst [vmem:[#allocation1] ss:$4 sm:$0xff] %v957
        %v960 = vld.sshfl [vmem:[#allocation1] sm:$0xff pattern:$0x73625140]
        %v961 = vld.sshfl [vmem:[#allocation1 + $0x8] sm:$0xff pattern:$0x73625140]
        %v962 = vld.sshfl [vmem:[#allocation1 + $0x10] sm:$0xff pattern:$0x73625140]
        %963 = vrot.lane.b32.xlu0 %v960, 34
        %v964 = vpop.permute.xlu0 %963
        %965 = vrot.lane.b32.xlu0 %v961, 34
        %v966 = vpop.permute.xlu0 %965
        %967 = vrot.lane.b32.xlu0 %v962, 34
        %v968 = vpop.permute.xlu0 %967
        %vm969 = vcmask 277504
        %v970 = vsel %vm969, %v964, %v966
        %v971 = vsel %vm969, %v966, %v968
        %v974 = vmul.f32 %v956, %v970
        %v975 = vmul.f32 %v956, %v971
        %v976 = vadd.f32 %v950, %v974
        %v977 = vadd.f32 %v951, %v975
        %s978 = sld [smem:[#allocation4 + $0x1e]]
        %s979 = sld [smem:[#allocation4 + $0x1f]]
        %v980 = vstv %s978
        %v981 = vstv %s979
        %v982 = vsel %vm731, %v980, %v981
        %v983 = vld [vmem:[#allocation2] sm:$0x3f]
        %985 = vst [vmem:[#allocation1] ss:$4 sm:$0xff] %v983
        %v986 = vld.sshfl [vmem:[#allocation1] sm:$0xff pattern:$0x73625140]
        %v987 = vld.sshfl [vmem:[#allocation1 + $0x8] sm:$0xff pattern:$0x73625140]
        %v988 = vld.sshfl [vmem:[#allocation1 + $0x10] sm:$0xff pattern:$0x73625140]
        %989 = vrot.lane.b32.xlu0 %v986, 18
        %v990 = vpop.permute.xlu0 %989
        %991 = vrot.lane.b32.xlu0 %v987, 18
        %v992 = vpop.permute.xlu0 %991
        %993 = vrot.lane.b32.xlu0 %v988, 18
        %v994 = vpop.permute.xlu0 %993
        %vm995 = vcmask 146432
        %v996 = vsel %vm995, %v990, %v992
        %v997 = vsel %vm995, %v992, %v994
        %v1000 = vmul.f32 %v982, %v996
        %v1001 = vmul.f32 %v982, %v997
        %v1002 = vadd.f32 %v976, %v1000
        %v1003 = vadd.f32 %v977, %v1001
        %s1004 = sld [smem:[#allocation4 + $0x2c]]
        %s1005 = sld [smem:[#allocation4 + $0x2d]]
        %v1006 = vstv %s1004
        %v1007 = vstv %s1005
        %v1008 = vsel %vm731, %v1006, %v1007
        %v1009 = vld [vmem:[#allocation2] sm:$0x3f]
        %1011 = vst [vmem:[#allocation1] ss:$4 sm:$0xff] %v1009
        %v1012 = vld.sshfl [vmem:[#allocation1] sm:$0xff pattern:$0x73625140]
        %v1013 = vld.sshfl [vmem:[#allocation1 + $0x8] sm:$0xff pattern:$0x73625140]
        %v1014 = vld.sshfl [vmem:[#allocation1 + $0x10] sm:$0xff pattern:$0x73625140]
        %1015 = vrot.lane.b32.xlu0 %v1012, 2
        %v1016 = vpop.permute.xlu0 %1015
        %1017 = vrot.lane.b32.xlu0 %v1013, 2
        %v1018 = vpop.permute.xlu0 %1017
        %1019 = vrot.lane.b32.xlu0 %v1014, 2
        %v1020 = vpop.permute.xlu0 %1019
        %vm1021 = vcmask 15360
        %v1022 = vsel %vm1021, %v1016, %v1018
        %v1023 = vsel %vm1021, %v1018, %v1020
        %v1026 = vmul.f32 %v1008, %v1022
        %v1027 = vmul.f32 %v1008, %v1023
        %v1028 = vadd.f32 %v1002, %v1026
        %v1029 = vadd.f32 %v1003, %v1027
        %s1030 = sld [smem:[#allocation4 + $0x3a]]
        %s1031 = sld [smem:[#allocation4 + $0x3b]]
        %v1032 = vstv %s1030
        %v1033 = vstv %s1031
        %v1034 = vsel %vm731, %v1032, %v1033
        %v1035 = vld [vmem:[#allocation2 + $0x2] sm:$0x3f]
        %1037 = vst [vmem:[#allocation1] ss:$4 sm:$0xff] %v1035
        %v1038 = vld.sshfl [vmem:[#allocation1] sm:$0xff pattern:$0x73625140]
        %v1039 = vld.sshfl [vmem:[#allocation1 + $0x8] sm:$0xff pattern:$0x73625140]
        %v1040 = vld.sshfl [vmem:[#allocation1 + $0x10] sm:$0xff pattern:$0x73625140]
        %1041 = vrot.lane.b32.xlu0 %v1038, 114
        %v1042 = vpop.permute.xlu0 %1041
        %1043 = vrot.lane.b32.xlu0 %v1039, 114
        %v1044 = vpop.permute.xlu0 %1043
        %1045 = vrot.lane.b32.xlu0 %v1040, 114
        %v1046 = vpop.permute.xlu0 %1045
        %vm1047 = vcmask 932864
        %v1048 = vsel %vm1047, %v1042, %v1044
        %v1049 = vsel %vm1047, %v1044, %v1046
        %v1052 = vmul.f32 %v1034, %v1048
        %v1053 = vmul.f32 %v1034, %v1049
        %v1054 = vadd.f32 %v1028, %v1052
        %v1055 = vadd.f32 %v1029, %v1053
        %s1056 = sld [smem:[#allocation4 + $0x48]]
        %s1057 = sld [smem:[#allocation4 + $0x49]]
        %v1058 = vstv %s1056
        %v1059 = vstv %s1057
        %v1060 = vsel %vm731, %v1058, %v1059
        %v1061 = vld [vmem:[#allocation2 + $0x2] sm:$0x3f]
        %1063 = vst [vmem:[#allocation1] ss:$4 sm:$0xff] %v1061
        %v1064 = vld.sshfl [vmem:[#allocation1] sm:$0xff pattern:$0x73625140]
        %v1065 = vld.sshfl [vmem:[#allocation1 + $0x8] sm:$0xff pattern:$0x73625140]
        %v1066 = vld.sshfl [vmem:[#allocation1 + $0x10] sm:$0xff pattern:$0x73625140]
        %1067 = vrot.lane.b32.xlu0 %v1064, 98
        %v1068 = vpop.permute.xlu0 %1067
        %1069 = vrot.lane.b32.xlu0 %v1065, 98
        %v1070 = vpop.permute.xlu0 %1069
        %1071 = vrot.lane.b32.xlu0 %v1066, 98
        %v1072 = vpop.permute.xlu0 %1071
        %vm1073 = vcmask 801792
        %v1074 = vsel %vm1073, %v1068, %v1070
        %v1075 = vsel %vm1073, %v1070, %v1072
        %v1078 = vmul.f32 %v1060, %v1074
        %v1079 = vmul.f32 %v1060, %v1075
        %v1080 = vadd.f32 %v1054, %v1078
        %v1081 = vadd.f32 %v1055, %v1079
        %s1082 = sld [smem:[#allocation4 + $0x56]]
        %s1083 = sld [smem:[#allocation4 + $0x57]]
        %v1084 = vstv %s1082
        %v1085 = vstv %s1083
        %v1086 = vsel %vm731, %v1084, %v1085
        %v1087 = vld [vmem:[#allocation2 + $0x2] sm:$0x3f]
        %1089 = vst [vmem:[#allocation1] ss:$4 sm:$0xff] %v1087
        %v1090 = vld.sshfl [vmem:[#allocation1] sm:$0xff pattern:$0x73625140]
        %v1091 = vld.sshfl [vmem:[#allocation1 + $0x8] sm:$0xff pattern:$0x73625140]
        %v1092 = vld.sshfl [vmem:[#allocation1 + $0x10] sm:$0xff pattern:$0x73625140]
        %1093 = vrot.lane.b32.xlu0 %v1090, 82
        %v1094 = vpop.permute.xlu0 %1093
        %1095 = vrot.lane.b32.xlu0 %v1091, 82
        %v1096 = vpop.permute.xlu0 %1095
        %1097 = vrot.lane.b32.xlu0 %v1092, 82
        %v1098 = vpop.permute.xlu0 %1097
        %vm1099 = vcmask 670720
        %v1100 = vsel %vm1099, %v1094, %v1096
        %v1101 = vsel %vm1099, %v1096, %v1098
        %v1104 = vmul.f32 %v1086, %v1100
        %v1105 = vmul.f32 %v1086, %v1101
        %v1106 = vadd.f32 %v1080, %v1104
        %v1107 = vadd.f32 %v1081, %v1105
        %v1109 = vperm.slane %v925, 0
        %v1110 = vperm.slane %v925, 1
        %v1113 = vmul.f32 %v1109, %v1106
        %v1114 = vmul.f32 %v1110, %v1107
        %v1115 = vadd.f32 %v922, %v1113
        %v1116 = vadd.f32 %v923, %v1114
        %s1117 = scalar_lea.vmem %s3, 2
        %v1118 = vld [vmem:[%s1117] ss:$8 sm:$0x3]
        %s1119 = sld [smem:[#allocation4 + $0x4]]
        %s1120 = sld [smem:[#allocation4 + $0x5]]
        %v1121 = vstv %s1119
        %v1122 = vstv %s1120
        %v1123 = vsel %vm731, %v1121, %v1122
        %v1124 = vld [vmem:[#allocation2] sm:$0x3f]
        %1126 = vst [vmem:[#allocation1] ss:$4 sm:$0xff] %v1124
        %v1127 = vld.sshfl [vmem:[#allocation1] sm:$0xff pattern:$0x73625140]
        %v1128 = vld.sshfl [vmem:[#allocation1 + $0x8] sm:$0xff pattern:$0x73625140]
        %v1129 = vld.sshfl [vmem:[#allocation1 + $0x10] sm:$0xff pattern:$0x73625140]
        %1130 = vrot.lane.b32.xlu0 %v1127, 49
        %v1131 = vpop.permute.xlu0 %1130
        %1132 = vrot.lane.b32.xlu0 %v1128, 49
        %v1133 = vpop.permute.xlu0 %1132
        %1134 = vrot.lane.b32.xlu0 %v1129, 49
        %v1135 = vpop.permute.xlu0 %1134
        %vm1136 = vcmask 400384
        %v1137 = vsel %vm1136, %v1131, %v1133
        %v1138 = vsel %vm1136, %v1133, %v1135
        %v1141 = vmul.f32 %v1123, %v1137
        %v1142 = vmul.f32 %v1123, %v1138
        %v1143 = vadd.f32 %v1141, 0.0
        %v1144 = vadd.f32 %v1142, 0.0
        %s1145 = sld [smem:[#allocation4 + $0x12]]
        %s1146 = sld [smem:[#allocation4 + $0x13]]
        %v1147 = vstv %s1145
        %v1148 = vstv %s1146
        %v1149 = vsel %vm731, %v1147, %v1148
        %v1150 = vld [vmem:[#allocation2] sm:$0x3f]
        %1152 = vst [vmem:[#allocation1] ss:$4 sm:$0xff] %v1150
        %v1153 = vld.sshfl [vmem:[#allocation1] sm:$0xff pattern:$0x73625140]
        %v1154 = vld.sshfl [vmem:[#allocation1 + $0x8] sm:$0xff pattern:$0x73625140]
        %v1155 = vld.sshfl [vmem:[#allocation1 + $0x10] sm:$0xff pattern:$0x73625140]
        %1156 = vrot.lane.b32.xlu0 %v1153, 33
        %v1157 = vpop.permute.xlu0 %1156
        %1158 = vrot.lane.b32.xlu0 %v1154, 33
        %v1159 = vpop.permute.xlu0 %1158
        %1160 = vrot.lane.b32.xlu0 %v1155, 33
        %v1161 = vpop.permute.xlu0 %1160
        %vm1162 = vcmask 269312
        %v1163 = vsel %vm1162, %v1157, %v1159
        %v1164 = vsel %vm1162, %v1159, %v1161
        %v1167 = vmul.f32 %v1149, %v1163
        %v1168 = vmul.f32 %v1149, %v1164
        %v1169 = vadd.f32 %v1143, %v1167
        %v1170 = vadd.f32 %v1144, %v1168
        %s1171 = sld [smem:[#allocation4 + $0x20]]
        %s1172 = sld [smem:[#allocation4 + $0x21]]
        %v1173 = vstv %s1171
        %v1174 = vstv %s1172
        %v1175 = vsel %vm731, %v1173, %v1174
        %v1176 = vld [vmem:[#allocation2] sm:$0x3f]
        %1178 = vst [vmem:[#allocation1] ss:$4 sm:$0xff] %v1176
        %v1179 = vld.sshfl [vmem:[#allocation1] sm:$0xff pattern:$0x73625140]
        %v1180 = vld.sshfl [vmem:[#allocation1 + $0x8] sm:$0xff pattern:$0x73625140]
        %v1181 = vld.sshfl [vmem:[#allocation1 + $0x10] sm:$0xff pattern:$0x73625140]
        %1182 = vrot.lane.b32.xlu0 %v1179, 17
        %v1183 = vpop.permute.xlu0 %1182
        %1184 = vrot.lane.b32.xlu0 %v1180, 17
        %v1185 = vpop.permute.xlu0 %1184
        %1186 = vrot.lane.b32.xlu0 %v1181, 17
        %v1187 = vpop.permute.xlu0 %1186
        %vm1188 = vcmask 138240
        %v1189 = vsel %vm1188, %v1183, %v1185
        %v1190 = vsel %vm1188, %v1185, %v1187
        %v1193 = vmul.f32 %v1175, %v1189
        %v1194 = vmul.f32 %v1175, %v1190
        %v1195 = vadd.f32 %v1169, %v1193
        %v1196 = vadd.f32 %v1170, %v1194
        %s1197 = sld [smem:[#allocation4 + $0x2e]]
        %s1198 = sld [smem:[#allocation4 + $0x2f]]
        %v1199 = vstv %s1197
        %v1200 = vstv %s1198
        %v1201 = vsel %vm731, %v1199, %v1200
        %v1202 = vld [vmem:[#allocation2] sm:$0x3f]
        %1204 = vst [vmem:[#allocation1] ss:$4 sm:$0xff] %v1202
        %v1205 = vld.sshfl [vmem:[#allocation1] sm:$0xff pattern:$0x73625140]
        %v1206 = vld.sshfl [vmem:[#allocation1 + $0x8] sm:$0xff pattern:$0x73625140]
        %v1207 = vld.sshfl [vmem:[#allocation1 + $0x10] sm:$0xff pattern:$0x73625140]
        %1208 = vrot.lane.b32.xlu0 %v1205, 1
        %v1209 = vpop.permute.xlu0 %1208
        %1210 = vrot.lane.b32.xlu0 %v1206, 1
        %v1211 = vpop.permute.xlu0 %1210
        %1212 = vrot.lane.b32.xlu0 %v1207, 1
        %v1213 = vpop.permute.xlu0 %1212
        %vm1214 = vcmask 7168
        %v1215 = vsel %vm1214, %v1209, %v1211
        %v1216 = vsel %vm1214, %v1211, %v1213
        %v1219 = vmul.f32 %v1201, %v1215
        %v1220 = vmul.f32 %v1201, %v1216
        %v1221 = vadd.f32 %v1195, %v1219
        %v1222 = vadd.f32 %v1196, %v1220
        %s1223 = sld [smem:[#allocation4 + $0x3c]]
        %s1224 = sld [smem:[#allocation4 + $0x3d]]
        %v1225 = vstv %s1223
        %v1226 = vstv %s1224
        %v1227 = vsel %vm731, %v1225, %v1226
        %v1228 = vld [vmem:[#allocation2 + $0x2] sm:$0x3f]
        %1230 = vst [vmem:[#allocation1] ss:$4 sm:$0xff] %v1228
        %v1231 = vld.sshfl [vmem:[#allocation1] sm:$0xff pattern:$0x73625140]
        %v1232 = vld.sshfl [vmem:[#allocation1 + $0x8] sm:$0xff pattern:$0x73625140]
        %v1233 = vld.sshfl [vmem:[#allocation1 + $0x10] sm:$0xff pattern:$0x73625140]
        %1234 = vrot.lane.b32.xlu0 %v1231, 113
        %v1235 = vpop.permute.xlu0 %1234
        %1236 = vrot.lane.b32.xlu0 %v1232, 113
        %v1237 = vpop.permute.xlu0 %1236
        %1238 = vrot.lane.b32.xlu0 %v1233, 113
        %v1239 = vpop.permute.xlu0 %1238
        %vm1240 = vcmask 924672
        %v1241 = vsel %vm1240, %v1235, %v1237
        %v1242 = vsel %vm1240, %v1237, %v1239
        %v1245 = vmul.f32 %v1227, %v1241
        %v1246 = vmul.f32 %v1227, %v1242
        %v1247 = vadd.f32 %v1221, %v1245
        %v1248 = vadd.f32 %v1222, %v1246
        %s1249 = sld [smem:[#allocation4 + $0x4a]]
        %s1250 = sld [smem:[#allocation4 + $0x4b]]
        %v1251 = vstv %s1249
        %v1252 = vstv %s1250
        %v1253 = vsel %vm731, %v1251, %v1252
        %v1254 = vld [vmem:[#allocation2 + $0x2] sm:$0x3f]
        %1256 = vst [vmem:[#allocation1] ss:$4 sm:$0xff] %v1254
        %v1257 = vld.sshfl [vmem:[#allocation1] sm:$0xff pattern:$0x73625140]
        %v1258 = vld.sshfl [vmem:[#allocation1 + $0x8] sm:$0xff pattern:$0x73625140]
        %v1259 = vld.sshfl [vmem:[#allocation1 + $0x10] sm:$0xff pattern:$0x73625140]
        %1260 = vrot.lane.b32.xlu0 %v1257, 97
        %v1261 = vpop.permute.xlu0 %1260
        %1262 = vrot.lane.b32.xlu0 %v1258, 97
        %v1263 = vpop.permute.xlu0 %1262
        %1264 = vrot.lane.b32.xlu0 %v1259, 97
        %v1265 = vpop.permute.xlu0 %1264
        %vm1266 = vcmask 793600
        %v1267 = vsel %vm1266, %v1261, %v1263
        %v1268 = vsel %vm1266, %v1263, %v1265
        %v1271 = vmul.f32 %v1253, %v1267
        %v1272 = vmul.f32 %v1253, %v1268
        %v1273 = vadd.f32 %v1247, %v1271
        %v1274 = vadd.f32 %v1248, %v1272
        %s1275 = sld [smem:[#allocation4 + $0x58]]
        %s1276 = sld [smem:[#allocation4 + $0x59]]
        %v1277 = vstv %s1275
        %v1278 = vstv %s1276
        %v1279 = vsel %vm731, %v1277, %v1278
        %v1280 = vld [vmem:[#allocation2 + $0x2] sm:$0x3f]
        %1282 = vst [vmem:[#allocation1] ss:$4 sm:$0xff] %v1280
        %v1283 = vld.sshfl [vmem:[#allocation1] sm:$0xff pattern:$0x73625140]
        %v1284 = vld.sshfl [vmem:[#allocation1 + $0x8] sm:$0xff pattern:$0x73625140]
        %v1285 = vld.sshfl [vmem:[#allocation1 + $0x10] sm:$0xff pattern:$0x73625140]
        %1286 = vrot.lane.b32.xlu0 %v1283, 81
        %v1287 = vpop.permute.xlu0 %1286
        %1288 = vrot.lane.b32.xlu0 %v1284, 81
        %v1289 = vpop.permute.xlu0 %1288
        %1290 = vrot.lane.b32.xlu0 %v1285, 81
        %v1291 = vpop.permute.xlu0 %1290
        %vm1292 = vcmask 662528
        %v1293 = vsel %vm1292, %v1287, %v1289
        %v1294 = vsel %vm1292, %v1289, %v1291
        %v1297 = vmul.f32 %v1279, %v1293
        %v1298 = vmul.f32 %v1279, %v1294
        %v1299 = vadd.f32 %v1273, %v1297
        %v1300 = vadd.f32 %v1274, %v1298
        %v1302 = vperm.slane %v1118, 0
        %v1303 = vperm.slane %v1118, 1
        %v1306 = vmul.f32 %v1302, %v1299
        %v1307 = vmul.f32 %v1303, %v1300
        %v1308 = vadd.f32 %v1115, %v1306
        %v1309 = vadd.f32 %v1116, %v1307
        %s1310 = scalar_lea.vmem %s3, 3
        %v1311 = vld [vmem:[%s1310] ss:$8 sm:$0x3]
        %s1312 = sld [smem:[#allocation4 + $0x6]]
        %s1313 = sld [smem:[#allocation4 + $0x7]]
        %v1314 = vstv %s1312
        %v1315 = vstv %s1313
        %v1316 = vsel %vm731, %v1314, %v1315
        %v1317 = vld [vmem:[#allocation2] sm:$0x3f]
        %1319 = vst [vmem:[#allocation1] ss:$4 sm:$0xff] %v1317
        %v1320 = vld.sshfl [vmem:[#allocation1] sm:$0xff pattern:$0x73625140]
        %v1321 = vld.sshfl [vmem:[#allocation1 + $0x8] sm:$0xff pattern:$0x73625140]
        %v1322 = vld.sshfl [vmem:[#allocation1 + $0x10] sm:$0xff pattern:$0x73625140]
        %1323 = vrot.lane.b32.xlu0 %v1320, 48
        %v1324 = vpop.permute.xlu0 %1323
        %1325 = vrot.lane.b32.xlu0 %v1321, 48
        %v1326 = vpop.permute.xlu0 %1325
        %1327 = vrot.lane.b32.xlu0 %v1322, 48
        %v1328 = vpop.permute.xlu0 %1327
        %vm1329 = vcmask 392192
        %v1330 = vsel %vm1329, %v1324, %v1326
        %v1331 = vsel %vm1329, %v1326, %v1328
        %v1334 = vmul.f32 %v1316, %v1330
        %v1335 = vmul.f32 %v1316, %v1331
        %v1336 = vadd.f32 %v1334, 0.0
        %v1337 = vadd.f32 %v1335, 0.0
        %s1338 = sld [smem:[#allocation4 + $0x14]]
        %s1339 = sld [smem:[#allocation4 + $0x15]]
        %v1340 = vstv %s1338
        %v1341 = vstv %s1339
        %v1342 = vsel %vm731, %v1340, %v1341
        %v1343 = vld [vmem:[#allocation2] sm:$0x3f]
        %1345 = vst [vmem:[#allocation1] ss:$4 sm:$0xff] %v1343
        %v1346 = vld.sshfl [vmem:[#allocation1] sm:$0xff pattern:$0x73625140]
        %v1347 = vld.sshfl [vmem:[#allocation1 + $0x8] sm:$0xff pattern:$0x73625140]
        %v1348 = vld.sshfl [vmem:[#allocation1 + $0x10] sm:$0xff pattern:$0x73625140]
        %1349 = vrot.lane.b32.xlu0 %v1346, 32
        %v1350 = vpop.permute.xlu0 %1349
        %1351 = vrot.lane.b32.xlu0 %v1347, 32
        %v1352 = vpop.permute.xlu0 %1351
        %1353 = vrot.lane.b32.xlu0 %v1348, 32
        %v1354 = vpop.permute.xlu0 %1353
        %vm1355 = vcmask 261120
        %v1356 = vsel %vm1355, %v1350, %v1352
        %v1357 = vsel %vm1355, %v1352, %v1354
        %v1360 = vmul.f32 %v1342, %v1356
        %v1361 = vmul.f32 %v1342, %v1357
        %v1362 = vadd.f32 %v1336, %v1360
        %v1363 = vadd.f32 %v1337, %v1361
        %s1364 = sld [smem:[#allocation4 + $0x22]]
        %s1365 = sld [smem:[#allocation4 + $0x23]]
        %v1366 = vstv %s1364
        %v1367 = vstv %s1365
        %v1368 = vsel %vm731, %v1366, %v1367
        %v1369 = vld [vmem:[#allocation2] sm:$0x3f]
        %1371 = vst [vmem:[#allocation1] ss:$4 sm:$0xff] %v1369
        %v1372 = vld.sshfl [vmem:[#allocation1] sm:$0xff pattern:$0x73625140]
        %v1373 = vld.sshfl [vmem:[#allocation1 + $0x8] sm:$0xff pattern:$0x73625140]
        %v1374 = vld.sshfl [vmem:[#allocation1 + $0x10] sm:$0xff pattern:$0x73625140]
        %1375 = vrot.lane.b32.xlu0 %v1372, 16
        %v1376 = vpop.permute.xlu0 %1375
        %1377 = vrot.lane.b32.xlu0 %v1373, 16
        %v1378 = vpop.permute.xlu0 %1377
        %1379 = vrot.lane.b32.xlu0 %v1374, 16
        %v1380 = vpop.permute.xlu0 %1379
        %vm1381 = vcmask 130048
        %v1382 = vsel %vm1381, %v1376, %v1378
        %v1383 = vsel %vm1381, %v1378, %v1380
        %v1386 = vmul.f32 %v1368, %v1382
        %v1387 = vmul.f32 %v1368, %v1383
        %v1388 = vadd.f32 %v1362, %v1386
        %v1389 = vadd.f32 %v1363, %v1387
        %s1390 = sld [smem:[#allocation4 + $0x30]]
        %s1391 = sld [smem:[#allocation4 + $0x31]]
        %v1392 = vstv %s1390
        %v1393 = vstv %s1391
        %v1394 = vsel %vm731, %v1392, %v1393
        %v1395 = vld [vmem:[#allocation2 + $0x2] sm:$0xf]
        %1397 = vst [vmem:[#allocation1] ss:$4 sm:$0xff] %v1395
        %v1398 = vld.sshfl [vmem:[#allocation1] sm:$0xff pattern:$0x73625140]
        %v1399 = vld.sshfl [vmem:[#allocation1 + $0x8] sm:$0xff pattern:$0x73625140]
        %v1402 = vmul.f32 %v1394, %v1398
        %v1403 = vmul.f32 %v1394, %v1399
        %v1404 = vadd.f32 %v1388, %v1402
        %v1405 = vadd.f32 %v1389, %v1403
        %s1406 = sld [smem:[#allocation4 + $0x3e]]
        %s1407 = sld [smem:[#allocation4 + $0x3f]]
        %v1408 = vstv %s1406
        %v1409 = vstv %s1407
        %v1410 = vsel %vm731, %v1408, %v1409
        %v1411 = vld [vmem:[#allocation2 + $0x2] sm:$0x3f]
        %1413 = vst [vmem:[#allocation1] ss:$4 sm:$0xff] %v1411
        %v1414 = vld.sshfl [vmem:[#allocation1] sm:$0xff pattern:$0x73625140]
        %v1415 = vld.sshfl [vmem:[#allocation1 + $0x8] sm:$0xff pattern:$0x73625140]
        %v1416 = vld.sshfl [vmem:[#allocation1 + $0x10] sm:$0xff pattern:$0x73625140]
        %1417 = vrot.lane.b32.xlu0 %v1414, 112
        %v1418 = vpop.permute.xlu0 %1417
        %1419 = vrot.lane.b32.xlu0 %v1415, 112
        %v1420 = vpop.permute.xlu0 %1419
        %1421 = vrot.lane.b32.xlu0 %v1416, 112
        %v1422 = vpop.permute.xlu0 %1421
        %vm1423 = vcmask 916480
        %v1424 = vsel %vm1423, %v1418, %v1420
        %v1425 = vsel %vm1423, %v1420, %v1422
        %v1428 = vmul.f32 %v1410, %v1424
        %v1429 = vmul.f32 %v1410, %v1425
        %v1430 = vadd.f32 %v1404, %v1428
        %v1431 = vadd.f32 %v1405, %v1429
        %s1432 = sld [smem:[#allocation4 + $0x4c]]
        %s1433 = sld [smem:[#allocation4 + $0x4d]]
        %v1434 = vstv %s1432
        %v1435 = vstv %s1433
        %v1436 = vsel %vm731, %v1434, %v1435
        %v1437 = vld [vmem:[#allocation2 + $0x2] sm:$0x3f]
        %1439 = vst [vmem:[#allocation1] ss:$4 sm:$0xff] %v1437
        %v1440 = vld.sshfl [vmem:[#allocation1] sm:$0xff pattern:$0x73625140]
        %v1441 = vld.sshfl [vmem:[#allocation1 + $0x8] sm:$0xff pattern:$0x73625140]
        %v1442 = vld.sshfl [vmem:[#allocation1 + $0x10] sm:$0xff pattern:$0x73625140]
        %1443 = vrot.lane.b32.xlu0 %v1440, 96
        %v1444 = vpop.permute.xlu0 %1443
        %1445 = vrot.lane.b32.xlu0 %v1441, 96
        %v1446 = vpop.permute.xlu0 %1445
        %1447 = vrot.lane.b32.xlu0 %v1442, 96
        %v1448 = vpop.permute.xlu0 %1447
        %vm1449 = vcmask 785408
        %v1450 = vsel %vm1449, %v1444, %v1446
        %v1451 = vsel %vm1449, %v1446, %v1448
        %v1454 = vmul.f32 %v1436, %v1450
        %v1455 = vmul.f32 %v1436, %v1451
        %v1456 = vadd.f32 %v1430, %v1454
        %v1457 = vadd.f32 %v1431, %v1455
        %s1458 = sld [smem:[#allocation4 + $0x5a]]
        %s1459 = sld [smem:[#allocation4 + $0x5b]]
        %v1460 = vstv %s1458
        %v1461 = vstv %s1459
        %v1462 = vsel %vm731, %v1460, %v1461
        %v1463 = vld [vmem:[#allocation2 + $0x2] sm:$0x3f]
        %1465 = vst [vmem:[#allocation1] ss:$4 sm:$0xff] %v1463
        %v1466 = vld.sshfl [vmem:[#allocation1] sm:$0xff pattern:$0x73625140]
        %v1467 = vld.sshfl [vmem:[#allocation1 + $0x8] sm:$0xff pattern:$0x73625140]
        %v1468 = vld.sshfl [vmem:[#allocation1 + $0x10] sm:$0xff pattern:$0x73625140]
        %1469 = vrot.lane.b32.xlu0 %v1466, 80
        %v1470 = vpop.permute.xlu0 %1469
        %1471 = vrot.lane.b32.xlu0 %v1467, 80
        %v1472 = vpop.permute.xlu0 %1471
        %1473 = vrot.lane.b32.xlu0 %v1468, 80
        %v1474 = vpop.permute.xlu0 %1473
        %vm1475 = vcmask 654336
        %v1476 = vsel %vm1475, %v1470, %v1472
        %v1477 = vsel %vm1475, %v1472, %v1474
        %v1480 = vmul.f32 %v1462, %v1476
        %v1481 = vmul.f32 %v1462, %v1477
        %v1482 = vadd.f32 %v1456, %v1480
        %v1483 = vadd.f32 %v1457, %v1481
        %v1485 = vperm.slane %v1311, 0
        %v1486 = vperm.slane %v1311, 1
        %v1489 = vmul.f32 %v1485, %v1482
        %v1490 = vmul.f32 %v1486, %v1483
        %v1491 = vadd.f32 %v1308, %v1489
        %v1492 = vadd.f32 %v1309, %v1490
        %s1493 = scalar_lea.vmem %s3, 4
        %v1494 = vld [vmem:[%s1493] ss:$8 sm:$0x3]
        %s1495 = sld [smem:[#allocation4 + $0x8]]
        %s1496 = sld [smem:[#allocation4 + $0x9]]
        %v1497 = vstv %s1495
        %v1498 = vstv %s1496
        %v1499 = vsel %vm731, %v1497, %v1498
        %v1500 = vld [vmem:[#allocation2] sm:$0x3f]
        %1502 = vst [vmem:[#allocation1] ss:$4 sm:$0xff] %v1500
        %v1503 = vld.sshfl [vmem:[#allocation1] sm:$0xff pattern:$0x73625140]
        %v1504 = vld.sshfl [vmem:[#allocation1 + $0x8] sm:$0xff pattern:$0x73625140]
        %v1505 = vld.sshfl [vmem:[#allocation1 + $0x10] sm:$0xff pattern:$0x73625140]
        %1506 = vrot.lane.b32.xlu0 %v1503, 47
        %v1507 = vpop.permute.xlu0 %1506
        %1508 = vrot.lane.b32.xlu0 %v1504, 47
        %v1509 = vpop.permute.xlu0 %1508
        %1510 = vrot.lane.b32.xlu0 %v1505, 47
        %v1511 = vpop.permute.xlu0 %1510
        %vm1512 = vcmask 384000
        %v1513 = vsel %vm1512, %v1507, %v1509
        %v1514 = vsel %vm1512, %v1509, %v1511
        %v1517 = vmul.f32 %v1499, %v1513
        %v1518 = vmul.f32 %v1499, %v1514
        %v1519 = vadd.f32 %v1517, 0.0
        %v1520 = vadd.f32 %v1518, 0.0
        %s1521 = sld [smem:[#allocation4 + $0x16]]
        %s1522 = sld [smem:[#allocation4 + $0x17]]
        %v1523 = vstv %s1521
        %v1524 = vstv %s1522
        %v1525 = vsel %vm731, %v1523, %v1524
        %v1526 = vld [vmem:[#allocation2] sm:$0x3f]
        %1528 = vst [vmem:[#allocation1] ss:$4 sm:$0xff] %v1526
        %v1529 = vld.sshfl [vmem:[#allocation1] sm:$0xff pattern:$0x73625140]
        %v1530 = vld.sshfl [vmem:[#allocation1 + $0x8] sm:$0xff pattern:$0x73625140]
        %v1531 = vld.sshfl [vmem:[#allocation1 + $0x10] sm:$0xff pattern:$0x73625140]
        %1532 = vrot.lane.b32.xlu0 %v1529, 31
        %v1533 = vpop.permute.xlu0 %1532
        %1534 = vrot.lane.b32.xlu0 %v1530, 31
        %v1535 = vpop.permute.xlu0 %1534
        %1536 = vrot.lane.b32.xlu0 %v1531, 31
        %v1537 = vpop.permute.xlu0 %1536
        %vm1538 = vcmask 252928
        %v1539 = vsel %vm1538, %v1533, %v1535
        %v1540 = vsel %vm1538, %v1535, %v1537
        %v1543 = vmul.f32 %v1525, %v1539
        %v1544 = vmul.f32 %v1525, %v1540
        %v1545 = vadd.f32 %v1519, %v1543
        %v1546 = vadd.f32 %v1520, %v1544
        %s1547 = sld [smem:[#allocation4 + $0x24]]
        %s1548 = sld [smem:[#allocation4 + $0x25]]
        %v1549 = vstv %s1547
        %v1550 = vstv %s1548
        %v1551 = vsel %vm731, %v1549, %v1550
        %v1552 = vld [vmem:[#allocation2] sm:$0x3f]
        %1554 = vst [vmem:[#allocation1] ss:$4 sm:$0xff] %v1552
        %v1555 = vld.sshfl [vmem:[#allocation1] sm:$0xff pattern:$0x73625140]
        %v1556 = vld.sshfl [vmem:[#allocation1 + $0x8] sm:$0xff pattern:$0x73625140]
        %v1557 = vld.sshfl [vmem:[#allocation1 + $0x10] sm:$0xff pattern:$0x73625140]
        %1558 = vrot.lane.b32.xlu0 %v1555, 15
        %v1559 = vpop.permute.xlu0 %1558
        %1560 = vrot.lane.b32.xlu0 %v1556, 15
        %v1561 = vpop.permute.xlu0 %1560
        %1562 = vrot.lane.b32.xlu0 %v1557, 15
        %v1563 = vpop.permute.xlu0 %1562
        %vm1564 = vcmask 121856
        %v1565 = vsel %vm1564, %v1559, %v1561
        %v1566 = vsel %vm1564, %v1561, %v1563
        %v1569 = vmul.f32 %v1551, %v1565
        %v1570 = vmul.f32 %v1551, %v1566
        %v1571 = vadd.f32 %v1545, %v1569
        %v1572 = vadd.f32 %v1546, %v1570
        %s1573 = sld [smem:[#allocation4 + $0x32]]
        %s1574 = sld [smem:[#allocation4 + $0x33]]
        %v1575 = vstv %s1573
        %v1576 = vstv %s1574
        %v1577 = vsel %vm731, %v1575, %v1576
        %v1578 = vld [vmem:[#allocation2 + $0x2] sm:$0x3f]
        %1580 = vst [vmem:[#allocation1] ss:$4 sm:$0xff] %v1578
        %v1581 = vld.sshfl [vmem:[#allocation1] sm:$0xff pattern:$0x73625140]
        %v1582 = vld.sshfl [vmem:[#allocation1 + $0x8] sm:$0xff pattern:$0x73625140]
        %v1583 = vld.sshfl [vmem:[#allocation1 + $0x10] sm:$0xff pattern:$0x73625140]
        %1584 = vrot.lane.b32.xlu0 %v1581, 127
        %v1585 = vpop.permute.xlu0 %1584
        %1586 = vrot.lane.b32.xlu0 %v1582, 127
        %v1587 = vpop.permute.xlu0 %1586
        %1588 = vrot.lane.b32.xlu0 %v1583, 127
        %v1589 = vpop.permute.xlu0 %1588
        %vm1590 = vcmask 1039360
        %v1591 = vsel %vm1590, %v1585, %v1587
        %v1592 = vsel %vm1590, %v1587, %v1589
        %v1595 = vmul.f32 %v1577, %v1591
        %v1596 = vmul.f32 %v1577, %v1592
        %v1597 = vadd.f32 %v1571, %v1595
        %v1598 = vadd.f32 %v1572, %v1596
        %s1599 = sld [smem:[#allocation4 + $0x40]]
        %s1600 = sld [smem:[#allocation4 + $0x41]]
        %v1601 = vstv %s1599
        %v1602 = vstv %s1600
        %v1603 = vsel %vm731, %v1601, %v1602
        %v1604 = vld [vmem:[#allocation2 + $0x2] sm:$0x3f]
        %1606 = vst [vmem:[#allocation1] ss:$4 sm:$0xff] %v1604
        %v1607 = vld.sshfl [vmem:[#allocation1] sm:$0xff pattern:$0x73625140]
        %v1608 = vld.sshfl [vmem:[#allocation1 + $0x8] sm:$0xff pattern:$0x73625140]
        %v1609 = vld.sshfl [vmem:[#allocation1 + $0x10] sm:$0xff pattern:$0x73625140]
        %1610 = vrot.lane.b32.xlu0 %v1607, 111
        %v1611 = vpop.permute.xlu0 %1610
        %1612 = vrot.lane.b32.xlu0 %v1608, 111
        %v1613 = vpop.permute.xlu0 %1612
        %1614 = vrot.lane.b32.xlu0 %v1609, 111
        %v1615 = vpop.permute.xlu0 %1614
        %vm1616 = vcmask 908288
        %v1617 = vsel %vm1616, %v1611, %v1613
        %v1618 = vsel %vm1616, %v1613, %v1615
        %v1621 = vmul.f32 %v1603, %v1617
        %v1622 = vmul.f32 %v1603, %v1618
        %v1623 = vadd.f32 %v1597, %v1621
        %v1624 = vadd.f32 %v1598, %v1622
        %s1625 = sld [smem:[#allocation4 + $0x4e]]
        %s1626 = sld [smem:[#allocation4 + $0x4f]]
        %v1627 = vstv %s1625
        %v1628 = vstv %s1626
        %v1629 = vsel %vm731, %v1627, %v1628
        %v1630 = vld [vmem:[#allocation2 + $0x2] sm:$0x3f]
        %1632 = vst [vmem:[#allocation1] ss:$4 sm:$0xff] %v1630
        %v1633 = vld.sshfl [vmem:[#allocation1] sm:$0xff pattern:$0x73625140]
        %v1634 = vld.sshfl [vmem:[#allocation1 + $0x8] sm:$0xff pattern:$0x73625140]
        %v1635 = vld.sshfl [vmem:[#allocation1 + $0x10] sm:$0xff pattern:$0x73625140]
        %1636 = vrot.lane.b32.xlu0 %v1633, 95
        %v1637 = vpop.permute.xlu0 %1636
        %1638 = vrot.lane.b32.xlu0 %v1634, 95
        %v1639 = vpop.permute.xlu0 %1638
        %1640 = vrot.lane.b32.xlu0 %v1635, 95
        %v1641 = vpop.permute.xlu0 %1640
        %vm1642 = vcmask 777216
        %v1643 = vsel %vm1642, %v1637, %v1639
        %v1644 = vsel %vm1642, %v1639, %v1641
        %v1647 = vmul.f32 %v1629, %v1643
        %v1648 = vmul.f32 %v1629, %v1644
        %v1649 = vadd.f32 %v1623, %v1647
        %v1650 = vadd.f32 %v1624, %v1648
        %s1651 = sld [smem:[#allocation4 + $0x5c]]
        %s1652 = sld [smem:[#allocation4 + $0x5d]]
        %v1653 = vstv %s1651
        %v1654 = vstv %s1652
        %v1655 = vsel %vm731, %v1653, %v1654
        %v1656 = vld [vmem:[#allocation2 + $0x2] sm:$0x3f]
        %1658 = vst [vmem:[#allocation1] ss:$4 sm:$0xff] %v1656
        %v1659 = vld.sshfl [vmem:[#allocation1] sm:$0xff pattern:$0x73625140]
        %v1660 = vld.sshfl [vmem:[#allocation1 + $0x8] sm:$0xff pattern:$0x73625140]
        %v1661 = vld.sshfl [vmem:[#allocation1 + $0x10] sm:$0xff pattern:$0x73625140]
        %1662 = vrot.lane.b32.xlu0 %v1659, 79
        %v1663 = vpop.permute.xlu0 %1662
        %1664 = vrot.lane.b32.xlu0 %v1660, 79
        %v1665 = vpop.permute.xlu0 %1664
        %1666 = vrot.lane.b32.xlu0 %v1661, 79
        %v1667 = vpop.permute.xlu0 %1666
        %vm1668 = vcmask 646144
        %v1669 = vsel %vm1668, %v1663, %v1665
        %v1670 = vsel %vm1668, %v1665, %v1667
        %v1673 = vmul.f32 %v1655, %v1669
        %v1674 = vmul.f32 %v1655, %v1670
        %v1675 = vadd.f32 %v1649, %v1673
        %v1676 = vadd.f32 %v1650, %v1674
        %v1678 = vperm.slane %v1494, 0
        %v1679 = vperm.slane %v1494, 1
        %v1682 = vmul.f32 %v1678, %v1675
        %v1683 = vmul.f32 %v1679, %v1676
        %v1684 = vadd.f32 %v1491, %v1682
        %v1685 = vadd.f32 %v1492, %v1683
        %s1686 = scalar_lea.vmem %s3, 5
        %v1687 = vld [vmem:[%s1686] ss:$8 sm:$0x3]
        %s1688 = sld [smem:[#allocation4 + $0xa]]
        %s1689 = sld [smem:[#allocation4 + $0xb]]
        %v1690 = vstv %s1688
        %v1691 = vstv %s1689
        %v1692 = vsel %vm731, %v1690, %v1691
        %v1693 = vld [vmem:[#allocation2] sm:$0x3f]
        %1695 = vst [vmem:[#allocation1] ss:$4 sm:$0xff] %v1693
        %v1696 = vld.sshfl [vmem:[#allocation1] sm:$0xff pattern:$0x73625140]
        %v1697 = vld.sshfl [vmem:[#allocation1 + $0x8] sm:$0xff pattern:$0x73625140]
        %v1698 = vld.sshfl [vmem:[#allocation1 + $0x10] sm:$0xff pattern:$0x73625140]
        %1699 = vrot.lane.b32.xlu0 %v1696, 46
        %v1700 = vpop.permute.xlu0 %1699
        %1701 = vrot.lane.b32.xlu0 %v1697, 46
        %v1702 = vpop.permute.xlu0 %1701
        %1703 = vrot.lane.b32.xlu0 %v1698, 46
        %v1704 = vpop.permute.xlu0 %1703
        %vm1705 = vcmask 375808
        %v1706 = vsel %vm1705, %v1700, %v1702
        %v1707 = vsel %vm1705, %v1702, %v1704
        %v1710 = vmul.f32 %v1692, %v1706
        %v1711 = vmul.f32 %v1692, %v1707
        %v1712 = vadd.f32 %v1710, 0.0
        %v1713 = vadd.f32 %v1711, 0.0
        %s1714 = sld [smem:[#allocation4 + $0x18]]
        %s1715 = sld [smem:[#allocation4 + $0x19]]
        %v1716 = vstv %s1714
        %v1717 = vstv %s1715
        %v1718 = vsel %vm731, %v1716, %v1717
        %v1719 = vld [vmem:[#allocation2] sm:$0x3f]
        %1721 = vst [vmem:[#allocation1] ss:$4 sm:$0xff] %v1719
        %v1722 = vld.sshfl [vmem:[#allocation1] sm:$0xff pattern:$0x73625140]
        %v1723 = vld.sshfl [vmem:[#allocation1 + $0x8] sm:$0xff pattern:$0x73625140]
        %v1724 = vld.sshfl [vmem:[#allocation1 + $0x10] sm:$0xff pattern:$0x73625140]
        %1725 = vrot.lane.b32.xlu0 %v1722, 30
        %v1726 = vpop.permute.xlu0 %1725
        %1727 = vrot.lane.b32.xlu0 %v1723, 30
        %v1728 = vpop.permute.xlu0 %1727
        %1729 = vrot.lane.b32.xlu0 %v1724, 30
        %v1730 = vpop.permute.xlu0 %1729
        %vm1731 = vcmask 244736
        %v1732 = vsel %vm1731, %v1726, %v1728
        %v1733 = vsel %vm1731, %v1728, %v1730
        %v1736 = vmul.f32 %v1718, %v1732
        %v1737 = vmul.f32 %v1718, %v1733
        %v1738 = vadd.f32 %v1712, %v1736
        %v1739 = vadd.f32 %v1713, %v1737
        %s1740 = sld [smem:[#allocation4 + $0x26]]
        %s1741 = sld [smem:[#allocation4 + $0x27]]
        %v1742 = vstv %s1740
        %v1743 = vstv %s1741
        %v1744 = vsel %vm731, %v1742, %v1743
        %v1745 = vld [vmem:[#allocation2] sm:$0x3f]
        %1747 = vst [vmem:[#allocation1] ss:$4 sm:$0xff] %v1745
        %v1748 = vld.sshfl [vmem:[#allocation1] sm:$0xff pattern:$0x73625140]
        %v1749 = vld.sshfl [vmem:[#allocation1 + $0x8] sm:$0xff pattern:$0x73625140]
        %v1750 = vld.sshfl [vmem:[#allocation1 + $0x10] sm:$0xff pattern:$0x73625140]
        %1751 = vrot.lane.b32.xlu0 %v1748, 14
        %v1752 = vpop.permute.xlu0 %1751
        %1753 = vrot.lane.b32.xlu0 %v1749, 14
        %v1754 = vpop.permute.xlu0 %1753
        %1755 = vrot.lane.b32.xlu0 %v1750, 14
        %v1756 = vpop.permute.xlu0 %1755
        %vm1757 = vcmask 113664
        %v1758 = vsel %vm1757, %v1752, %v1754
        %v1759 = vsel %vm1757, %v1754, %v1756
        %v1762 = vmul.f32 %v1744, %v1758
        %v1763 = vmul.f32 %v1744, %v1759
        %v1764 = vadd.f32 %v1738, %v1762
        %v1765 = vadd.f32 %v1739, %v1763
        %s1766 = sld [smem:[#allocation4 + $0x34]]
        %s1767 = sld [smem:[#allocation4 + $0x35]]
        %v1768 = vstv %s1766
        %v1769 = vstv %s1767
        %v1770 = vsel %vm731, %v1768, %v1769
        %v1771 = vld [vmem:[#allocation2 + $0x2] sm:$0x3f]
        %1773 = vst [vmem:[#allocation1] ss:$4 sm:$0xff] %v1771
        %v1774 = vld.sshfl [vmem:[#allocation1] sm:$0xff pattern:$0x73625140]
        %v1775 = vld.sshfl [vmem:[#allocation1 + $0x8] sm:$0xff pattern:$0x73625140]
        %v1776 = vld.sshfl [vmem:[#allocation1 + $0x10] sm:$0xff pattern:$0x73625140]
        %1777 = vrot.lane.b32.xlu0 %v1774, 126
        %v1778 = vpop.permute.xlu0 %1777
        %1779 = vrot.lane.b32.xlu0 %v1775, 126
        %v1780 = vpop.permute.xlu0 %1779
        %1781 = vrot.lane.b32.xlu0 %v1776, 126
        %v1782 = vpop.permute.xlu0 %1781
        %vm1783 = vcmask 1031168
        %v1784 = vsel %vm1783, %v1778, %v1780
        %v1785 = vsel %vm1783, %v1780, %v1782
        %v1788 = vmul.f32 %v1770, %v1784
        %v1789 = vmul.f32 %v1770, %v1785
        %v1790 = vadd.f32 %v1764, %v1788
        %v1791 = vadd.f32 %v1765, %v1789
        %s1792 = sld [smem:[#allocation4 + $0x42]]
        %s1793 = sld [smem:[#allocation4 + $0x43]]
        %v1794 = vstv %s1792
        %v1795 = vstv %s1793
        %v1796 = vsel %vm731, %v1794, %v1795
        %v1797 = vld [vmem:[#allocation2 + $0x2] sm:$0x3f]
        %1799 = vst [vmem:[#allocation1] ss:$4 sm:$0xff] %v1797
        %v1800 = vld.sshfl [vmem:[#allocation1] sm:$0xff pattern:$0x73625140]
        %v1801 = vld.sshfl [vmem:[#allocation1 + $0x8] sm:$0xff pattern:$0x73625140]
        %v1802 = vld.sshfl [vmem:[#allocation1 + $0x10] sm:$0xff pattern:$0x73625140]
        %1803 = vrot.lane.b32.xlu0 %v1800, 110
        %v1804 = vpop.permute.xlu0 %1803
        %1805 = vrot.lane.b32.xlu0 %v1801, 110
        %v1806 = vpop.permute.xlu0 %1805
        %1807 = vrot.lane.b32.xlu0 %v1802, 110
        %v1808 = vpop.permute.xlu0 %1807
        %vm1809 = vcmask 900096
        %v1810 = vsel %vm1809, %v1804, %v1806
        %v1811 = vsel %vm1809, %v1806, %v1808
        %v1814 = vmul.f32 %v1796, %v1810
        %v1815 = vmul.f32 %v1796, %v1811
        %v1816 = vadd.f32 %v1790, %v1814
        %v1817 = vadd.f32 %v1791, %v1815
        %s1818 = sld [smem:[#allocation4 + $0x50]]
        %s1819 = sld [smem:[#allocation4 + $0x51]]
        %v1820 = vstv %s1818
        %v1821 = vstv %s1819
        %v1822 = vsel %vm731, %v1820, %v1821
        %v1823 = vld [vmem:[#allocation2 + $0x2] sm:$0x3f]
        %1825 = vst [vmem:[#allocation1] ss:$4 sm:$0xff] %v1823
        %v1826 = vld.sshfl [vmem:[#allocation1] sm:$0xff pattern:$0x73625140]
        %v1827 = vld.sshfl [vmem:[#allocation1 + $0x8] sm:$0xff pattern:$0x73625140]
        %v1828 = vld.sshfl [vmem:[#allocation1 + $0x10] sm:$0xff pattern:$0x73625140]
        %1829 = vrot.lane.b32.xlu0 %v1826, 94
        %v1830 = vpop.permute.xlu0 %1829
        %1831 = vrot.lane.b32.xlu0 %v1827, 94
        %v1832 = vpop.permute.xlu0 %1831
        %1833 = vrot.lane.b32.xlu0 %v1828, 94
        %v1834 = vpop.permute.xlu0 %1833
        %vm1835 = vcmask 769024
        %v1836 = vsel %vm1835, %v1830, %v1832
        %v1837 = vsel %vm1835, %v1832, %v1834
        %v1840 = vmul.f32 %v1822, %v1836
        %v1841 = vmul.f32 %v1822, %v1837
        %v1842 = vadd.f32 %v1816, %v1840
        %v1843 = vadd.f32 %v1817, %v1841
        %s1844 = sld [smem:[#allocation4 + $0x5e]]
        %s1845 = sld [smem:[#allocation4 + $0x5f]]
        %v1846 = vstv %s1844
        %v1847 = vstv %s1845
        %v1848 = vsel %vm731, %v1846, %v1847
        %v1849 = vld [vmem:[#allocation2 + $0x2] sm:$0x3f]
        %1851 = vst [vmem:[#allocation1] ss:$4 sm:$0xff] %v1849
        %v1852 = vld.sshfl [vmem:[#allocation1] sm:$0xff pattern:$0x73625140]
        %v1853 = vld.sshfl [vmem:[#allocation1 + $0x8] sm:$0xff pattern:$0x73625140]
        %v1854 = vld.sshfl [vmem:[#allocation1 + $0x10] sm:$0xff pattern:$0x73625140]
        %1855 = vrot.lane.b32.xlu0 %v1852, 78
        %v1856 = vpop.permute.xlu0 %1855
        %1857 = vrot.lane.b32.xlu0 %v1853, 78
        %v1858 = vpop.permute.xlu0 %1857
        %1859 = vrot.lane.b32.xlu0 %v1854, 78
        %v1860 = vpop.permute.xlu0 %1859
        %vm1861 = vcmask 637952
        %v1862 = vsel %vm1861, %v1856, %v1858
        %v1863 = vsel %vm1861, %v1858, %v1860
        %v1866 = vmul.f32 %v1848, %v1862
        %v1867 = vmul.f32 %v1848, %v1863
        %v1868 = vadd.f32 %v1842, %v1866
        %v1869 = vadd.f32 %v1843, %v1867
        %v1871 = vperm.slane %v1687, 0
        %v1872 = vperm.slane %v1687, 1
        %v1875 = vmul.f32 %v1871, %v1868
        %v1876 = vmul.f32 %v1872, %v1869
        %v1877 = vadd.f32 %v1684, %v1875
        %v1878 = vadd.f32 %v1685, %v1876
        %s1879 = scalar_lea.vmem %s3, 6
        %v1880 = vld [vmem:[%s1879] ss:$8 sm:$0x3]
        %s1881 = sld [smem:[#allocation4 + $0xc]]
        %s1882 = sld [smem:[#allocation4 + $0xd]]
        %v1883 = vstv %s1881
        %v1884 = vstv %s1882
        %v1885 = vsel %vm731, %v1883, %v1884
        %v1886 = vld [vmem:[#allocation2] sm:$0x3f]
        %1888 = vst [vmem:[#allocation1] ss:$4 sm:$0xff] %v1886
        %v1889 = vld.sshfl [vmem:[#allocation1] sm:$0xff pattern:$0x73625140]
        %v1890 = vld.sshfl [vmem:[#allocation1 + $0x8] sm:$0xff pattern:$0x73625140]
        %v1891 = vld.sshfl [vmem:[#allocation1 + $0x10] sm:$0xff pattern:$0x73625140]
        %1892 = vrot.lane.b32.xlu0 %v1889, 45
        %v1893 = vpop.permute.xlu0 %1892
        %1894 = vrot.lane.b32.xlu0 %v1890, 45
        %v1895 = vpop.permute.xlu0 %1894
        %1896 = vrot.lane.b32.xlu0 %v1891, 45
        %v1897 = vpop.permute.xlu0 %1896
        %vm1898 = vcmask 367616
        %v1899 = vsel %vm1898, %v1893, %v1895
        %v1900 = vsel %vm1898, %v1895, %v1897
        %v1903 = vmul.f32 %v1885, %v1899
        %v1904 = vmul.f32 %v1885, %v1900
        %v1905 = vadd.f32 %v1903, 0.0
        %v1906 = vadd.f32 %v1904, 0.0
        %s1907 = sld [smem:[#allocation4 + $0x1a]]
        %s1908 = sld [smem:[#allocation4 + $0x1b]]
        %v1909 = vstv %s1907
        %v1910 = vstv %s1908
        %v1911 = vsel %vm731, %v1909, %v1910
        %v1912 = vld [vmem:[#allocation2] sm:$0x3f]
        %1914 = vst [vmem:[#allocation1] ss:$4 sm:$0xff] %v1912
        %v1915 = vld.sshfl [vmem:[#allocation1] sm:$0xff pattern:$0x73625140]
        %v1916 = vld.sshfl [vmem:[#allocation1 + $0x8] sm:$0xff pattern:$0x73625140]
        %v1917 = vld.sshfl [vmem:[#allocation1 + $0x10] sm:$0xff pattern:$0x73625140]
        %1918 = vrot.lane.b32.xlu0 %v1915, 29
        %v1919 = vpop.permute.xlu0 %1918
        %1920 = vrot.lane.b32.xlu0 %v1916, 29
        %v1921 = vpop.permute.xlu0 %1920
        %1922 = vrot.lane.b32.xlu0 %v1917, 29
        %v1923 = vpop.permute.xlu0 %1922
        %vm1924 = vcmask 236544
        %v1925 = vsel %vm1924, %v1919, %v1921
        %v1926 = vsel %vm1924, %v1921, %v1923
        %v1929 = vmul.f32 %v1911, %v1925
        %v1930 = vmul.f32 %v1911, %v1926
        %v1931 = vadd.f32 %v1905, %v1929
        %v1932 = vadd.f32 %v1906, %v1930
        %s1933 = sld [smem:[#allocation4 + $0x28]]
        %s1934 = sld [smem:[#allocation4 + $0x29]]
        %v1935 = vstv %s1933
        %v1936 = vstv %s1934
        %v1937 = vsel %vm731, %v1935, %v1936
        %v1938 = vld [vmem:[#allocation2] sm:$0x3f]
        %1940 = vst [vmem:[#allocation1] ss:$4 sm:$0xff] %v1938
        %v1941 = vld.sshfl [vmem:[#allocation1] sm:$0xff pattern:$0x73625140]
        %v1942 = vld.sshfl [vmem:[#allocation1 + $0x8] sm:$0xff pattern:$0x73625140]
        %v1943 = vld.sshfl [vmem:[#allocation1 + $0x10] sm:$0xff pattern:$0x73625140]
        %1944 = vrot.lane.b32.xlu0 %v1941, 13
        %v1945 = vpop.permute.xlu0 %1944
        %1946 = vrot.lane.b32.xlu0 %v1942, 13
        %v1947 = vpop.permute.xlu0 %1946
        %1948 = vrot.lane.b32.xlu0 %v1943, 13
        %v1949 = vpop.permute.xlu0 %1948
        %vm1950 = vcmask 105472
        %v1951 = vsel %vm1950, %v1945, %v1947
        %v1952 = vsel %vm1950, %v1947, %v1949
        %v1955 = vmul.f32 %v1937, %v1951
        %v1956 = vmul.f32 %v1937, %v1952
        %v1957 = vadd.f32 %v1931, %v1955
        %v1958 = vadd.f32 %v1932, %v1956
        %s1959 = sld [smem:[#allocation4 + $0x36]]
        %s1960 = sld [smem:[#allocation4 + $0x37]]
        %v1961 = vstv %s1959
        %v1962 = vstv %s1960
        %v1963 = vsel %vm731, %v1961, %v1962
        %v1964 = vld [vmem:[#allocation2 + $0x2] sm:$0x3f]
        %1966 = vst [vmem:[#allocation1] ss:$4 sm:$0xff] %v1964
        %v1967 = vld.sshfl [vmem:[#allocation1] sm:$0xff pattern:$0x73625140]
        %v1968 = vld.sshfl [vmem:[#allocation1 + $0x8] sm:$0xff pattern:$0x73625140]
        %v1969 = vld.sshfl [vmem:[#allocation1 + $0x10] sm:$0xff pattern:$0x73625140]
        %1970 = vrot.lane.b32.xlu0 %v1967, 125
        %v1971 = vpop.permute.xlu0 %1970
        %1972 = vrot.lane.b32.xlu0 %v1968, 125
        %v1973 = vpop.permute.xlu0 %1972
        %1974 = vrot.lane.b32.xlu0 %v1969, 125
        %v1975 = vpop.permute.xlu0 %1974
        %vm1976 = vcmask 1022976
        %v1977 = vsel %vm1976, %v1971, %v1973
        %v1978 = vsel %vm1976, %v1973, %v1975
        %v1981 = vmul.f32 %v1963, %v1977
        %v1982 = vmul.f32 %v1963, %v1978
        %v1983 = vadd.f32 %v1957, %v1981
        %v1984 = vadd.f32 %v1958, %v1982
        %s1985 = sld [smem:[#allocation4 + $0x44]]
        %s1986 = sld [smem:[#allocation4 + $0x45]]
        %v1987 = vstv %s1985
        %v1988 = vstv %s1986
        %v1989 = vsel %vm731, %v1987, %v1988
        %v1990 = vld [vmem:[#allocation2 + $0x2] sm:$0x3f]
        %1992 = vst [vmem:[#allocation1] ss:$4 sm:$0xff] %v1990
        %v1993 = vld.sshfl [vmem:[#allocation1] sm:$0xff pattern:$0x73625140]
        %v1994 = vld.sshfl [vmem:[#allocation1 + $0x8] sm:$0xff pattern:$0x73625140]
        %v1995 = vld.sshfl [vmem:[#allocation1 + $0x10] sm:$0xff pattern:$0x73625140]
        %1996 = vrot.lane.b32.xlu0 %v1993, 109
        %v1997 = vpop.permute.xlu0 %1996
        %1998 = vrot.lane.b32.xlu0 %v1994, 109
        %v1999 = vpop.permute.xlu0 %1998
        %2000 = vrot.lane.b32.xlu0 %v1995, 109
        %v2001 = vpop.permute.xlu0 %2000
        %vm2002 = vcmask 891904
        %v2003 = vsel %vm2002, %v1997, %v1999
        %v2004 = vsel %vm2002, %v1999, %v2001
        %v2007 = vmul.f32 %v1989, %v2003
        %v2008 = vmul.f32 %v1989, %v2004
        %v2009 = vadd.f32 %v1983, %v2007
        %v2010 = vadd.f32 %v1984, %v2008
        %s2011 = sld [smem:[#allocation4 + $0x52]]
        %s2012 = sld [smem:[#allocation4 + $0x53]]
        %v2013 = vstv %s2011
        %v2014 = vstv %s2012
        %v2015 = vsel %vm731, %v2013, %v2014
        %v2016 = vld [vmem:[#allocation2 + $0x2] sm:$0x3f]
        %2018 = vst [vmem:[#allocation1] ss:$4 sm:$0xff] %v2016
        %v2019 = vld.sshfl [vmem:[#allocation1] sm:$0xff pattern:$0x73625140]
        %v2020 = vld.sshfl [vmem:[#allocation1 + $0x8] sm:$0xff pattern:$0x73625140]
        %v2021 = vld.sshfl [vmem:[#allocation1 + $0x10] sm:$0xff pattern:$0x73625140]
        %2022 = vrot.lane.b32.xlu0 %v2019, 93
        %v2023 = vpop.permute.xlu0 %2022
        %2024 = vrot.lane.b32.xlu0 %v2020, 93
        %v2025 = vpop.permute.xlu0 %2024
        %2026 = vrot.lane.b32.xlu0 %v2021, 93
        %v2027 = vpop.permute.xlu0 %2026
        %vm2028 = vcmask 760832
        %v2029 = vsel %vm2028, %v2023, %v2025
        %v2030 = vsel %vm2028, %v2025, %v2027
        %v2033 = vmul.f32 %v2015, %v2029
        %v2034 = vmul.f32 %v2015, %v2030
        %v2035 = vadd.f32 %v2009, %v2033
        %v2036 = vadd.f32 %v2010, %v2034
        %s2037 = sld [smem:[#allocation4 + $0x60]]
        %s2038 = sld [smem:[#allocation4 + $0x61]]
        %v2039 = vstv %s2037
        %v2040 = vstv %s2038
        %v2041 = vsel %vm731, %v2039, %v2040
        %v2042 = vld [vmem:[#allocation2 + $0x2] sm:$0x3f]
        %2044 = vst [vmem:[#allocation1] ss:$4 sm:$0xff] %v2042
        %v2045 = vld.sshfl [vmem:[#allocation1] sm:$0xff pattern:$0x73625140]
        %v2046 = vld.sshfl [vmem:[#allocation1 + $0x8] sm:$0xff pattern:$0x73625140]
        %v2047 = vld.sshfl [vmem:[#allocation1 + $0x10] sm:$0xff pattern:$0x73625140]
        %2048 = vrot.lane.b32.xlu0 %v2045, 77
        %v2049 = vpop.permute.xlu0 %2048
        %2050 = vrot.lane.b32.xlu0 %v2046, 77
        %v2051 = vpop.permute.xlu0 %2050
        %2052 = vrot.lane.b32.xlu0 %v2047, 77
        %v2053 = vpop.permute.xlu0 %2052
        %vm2054 = vcmask 629760
        %v2055 = vsel %vm2054, %v2049, %v2051
        %v2056 = vsel %vm2054, %v2051, %v2053
        %v2059 = vmul.f32 %v2041, %v2055
        %v2060 = vmul.f32 %v2041, %v2056
        %v2061 = vadd.f32 %v2035, %v2059
        %v2062 = vadd.f32 %v2036, %v2060
        %v2064 = vperm.slane %v1880, 0
        %v2065 = vperm.slane %v1880, 1
        %v2068 = vmul.f32 %v2064, %v2061
        %v2069 = vmul.f32 %v2065, %v2062
        %v2070 = vadd.f32 %v1877, %v2068
        %v2071 = vadd.f32 %v1878, %v2069
        %v2074 = vrot.slane %v2070, 1
        %v2075 = vrot.slane %v2071, 1
        %v2078 = vadd.f32 %v2070, %v2074
        %v2079 = vadd.f32 %v2071, %v2075
        %s2080 = sld [smem:[#allocation3]]
        %v2081 = vstv %s2080
        %v2082 = vadd.f32 %v2078, %v2081
        %v2083 = vadd.f32 %v2079, %v2081
        %v2084 = vand.u32 2147483647, %v2082
        %v2085 = vand.u32 2147483647, %v2083
        %v2086 = vsub.f32 0.0, %v2084
        %v2087 = vsub.f32 0.0, %v2085
        %v2088 = vmul.f32 %v2086, 1.442695
        %v2089 = vpow.pop %v2088
        %v2090 = vmul.f32 %v2087, 1.442695
        %v2091 = vpow.pop %v2090
        %v2092 = vadd.f32 %v2089, 1.0
        %v2093 = vadd.f32 %v2091, 1.0
        %v2094 = vrcp.pop %v2092
        %v2095 = vmul.f32 %v2092, %v2094
        %v2096 = vsub.f32 1.0, %v2095
        %v2097 = vmul.f32 %v2094, %v2096
        %v2098 = vadd.f32 %v2094, %v2097
        %vm2099 = vweird.f32 %v2092
        %vm2100 = vweird.f32 %v2094
        %vm2101 = vmor %vm2099, %vm2100
        %v2102 = vsel %vm2101, %v2094, %v2098
        %v2103 = vand.u32 2147483647, %v2092
        %vm2104 = vcmp.eq.f32.partialorder %v2103, 8.507059e+37
        %v2105 = vand.u32 %v2092, 2147483648
        %v2106 = vor.u32 1.1754944e-38, %v2105
        %v2107 = vsel %vm2104, %v2106, %v2102
        %v2108 = vmul.f32 1.0, %v2107
        %v2109 = vrcp.pop %v2093
        %v2110 = vmul.f32 %v2093, %v2109
        %v2111 = vsub.f32 1.0, %v2110
        %v2112 = vmul.f32 %v2109, %v2111
        %v2113 = vadd.f32 %v2109, %v2112
        %vm2114 = vweird.f32 %v2093
        %vm2115 = vweird.f32 %v2109
        %vm2116 = vmor %vm2114, %vm2115
        %v2117 = vsel %vm2116, %v2109, %v2113
        %v2118 = vand.u32 2147483647, %v2093
        %vm2119 = vcmp.eq.f32.partialorder %v2118, 8.507059e+37
        %v2120 = vand.u32 %v2093, 2147483648
        %v2121 = vor.u32 1.1754944e-38, %v2120
        %v2122 = vsel %vm2119, %v2121, %v2117
        %v2123 = vmul.f32 1.0, %v2122
        %vm2124 = vcmp.ge.f32.partialorder %v2082, 0.0
        %vm2125 = vcmp.ge.f32.partialorder %v2083, 0.0
        %v2126 = vsub.f32 1.0, %v2108
        %v2127 = vsub.f32 1.0, %v2123
        %v2128 = vsel %vm2124, %v2108, %v2126
        %v2129 = vsel %vm2125, %v2123, %v2127
        %v2130 = vperm.slane %v2128, 0
        %v2131 = vperm.slane %v2129, 0
        %v2132 = vmul.f32 %v267, %v2130
        %v2133 = vmul.f32 %v268, %v2131
        %v2134 = vmul.f32 %v269, %v2130
        %v2135 = vmul.f32 %v270, %v2131
        %v2136 = vmul.f32 %v271, %v2130
        %v2137 = vmul.f32 %v272, %v2131
        %v2138 = vmul.f32 %v273, %v2130
        %v2139 = vmul.f32 %v274, %v2131
        %v2140 = vmul.f32 %v275, %v2130
        %v2141 = vmul.f32 %v276, %v2131
        %v2142 = vmul.f32 %v277, %v2130
        %v2143 = vmul.f32 %v278, %v2131
        %v2144 = vmul.f32 %v279, %v2130
        %v2145 = vmul.f32 %v280, %v2131
        %v2146 = vmul.f32 %v281, %v2130
        %v2147 = vmul.f32 %v282, %v2131
        %v2148 = vmul.f32 %v2132, %v632
        %v2149 = vmul.f32 %v2133, %v632
        %v2150 = vmul.f32 %v2134, %v633
        %v2151 = vmul.f32 %v2135, %v633
        %v2152 = vmul.f32 %v2136, %v634
        %v2153 = vmul.f32 %v2137, %v634
        %v2154 = vmul.f32 %v2138, %v635
        %v2155 = vmul.f32 %v2139, %v635
        %v2156 = vmul.f32 %v2140, %v636
        %v2157 = vmul.f32 %v2141, %v636
        %v2158 = vmul.f32 %v2142, %v637
        %v2159 = vmul.f32 %v2143, %v637
        %v2160 = vmul.f32 %v2144, %v638
        %v2161 = vmul.f32 %v2145, %v638
        %v2162 = vmul.f32 %v2146, %v639
        %v2163 = vmul.f32 %v2147, %v639
        %2164 = vst [vmem:[%s266] sm:$0xff] %v2148
        %2165 = vst [vmem:[%s266 + $0x8] sm:$0xff] %v2149
        %2166 = vst [vmem:[%s266 + $0x10] sm:$0xff] %v2150
        %2167 = vst [vmem:[%s266 + $0x18] sm:$0xff] %v2151
        %2168 = vst [vmem:[%s266 + $0x20] sm:$0xff] %v2152
        %2169 = vst [vmem:[%s266 + $0x28] sm:$0xff] %v2153
        %2170 = vst [vmem:[%s266 + $0x30] sm:$0xff] %v2154
        %2171 = vst [vmem:[%s266 + $0x38] sm:$0xff] %v2155
        %2172 = vst [vmem:[%s266 + $0x40] sm:$0xff] %v2156
        %2173 = vst [vmem:[%s266 + $0x48] sm:$0xff] %v2157
        %2174 = vst [vmem:[%s266 + $0x50] sm:$0xff] %v2158
        %2175 = vst [vmem:[%s266 + $0x58] sm:$0xff] %v2159
        %2176 = vst [vmem:[%s266 + $0x60] sm:$0xff] %v2160
        %2177 = vst [vmem:[%s266 + $0x68] sm:$0xff] %v2161
        %2178 = vst [vmem:[%s266 + $0x70] sm:$0xff] %v2162
        %2179 = vst [vmem:[%s266 + $0x78] sm:$0xff] %v2163
        %p2180 = scmp.lt.s32.totalorder %s19, 1
        %s2181 = scalar_select %p2180, %s19, 1
        %s2182 = smul.addr %s2181, 16
        %s2183 = smul.addr %s2182, 8
        %s2184 = scalar_lea.vmem %s6, %s2183
        // Predicated region
        $region49: #{cbam_plus_forward.1} parent=43 // pred_check
          %p2185 = pneg %p168
        $region50: #{cbam_plus_forward.1} parent=43 // pred_check_branch
          %2187 = sbr.rel (%p2185) target = $region52
        $region51: #{cbam_plus_forward.1} parent=43 // pred_region
          _
        $region52: #{cbam_plus_forward.1} parent=43 // pred_fallthru
          _
      $region44: #{cbam_plus_forward.1} parent=5 // pred_fallthru
        _
      %p2188 = scmp.le.s32.totalorder 2, %s14
      // Predicated region
      $region53: #{cbam_plus_forward.1} parent=5 // pred_check
        %p2189 = pneg %p2188
      $region54: #{cbam_plus_forward.1} parent=5 // pred_check_branch
        %2191 = sbr.rel (%p2189) target = $region56
      $region55: #{cbam_plus_forward.1} parent=5 // pred_region
        %s2192 = ssub.s32 %s14, 2
        // Predicated region
        $region57: #{cbam_plus_forward.1} parent=55 // pred_check
          %p2193 = pneg %p174
        $region58: #{cbam_plus_forward.1} parent=55 // pred_check_branch
          %2195 = sbr.rel (%p2193) target = $region60
        $region59: #{cbam_plus_forward.1} parent=55 // pred_region
          %p2196 = scmp.lt.s32.totalorder %s20, 1
          %s2197 = scalar_select %p2196, %s20, 1
          %s2198 = smul.addr %s2197, 16
          %s2199 = smul.addr %s2198, 8
          %s2200 = scalar_lea.vmem %s6, %s2199
        $region60: #{cbam_plus_forward.1} parent=55 // pred_fallthru
          _
      $region56: #{cbam_plus_forward.1} parent=5 // pred_fallthru
        _
    $region6: #{cbam_plus_forward.1} parent=1 // loop_footer
      %s18 = sadd.s32 1, %s14
    $region7: #{cbam_plus_forward.1} parent=1 // loop_footer_branch
      %13 = sbr.rel target = $region3
    $region8: #{cbam_plus_forward.1} parent=1 // loop_exit
      _
    %2201 = vsyncpa [#allocation5], 1
    %s2202 = scalar_lea.sflag [#allocation5], 1
    %2203 = vsyncpa %s2202, 1

</llo_original>
